<compile_context>
chip_gen: v7x
topology: tpu7x:2x2x1
jax: 0.10.0
libtpu: 0.0.40
codegen_flags: <defaults>
</compile_context>

<pallas_src>
import jax
import jax.numpy as jnp
from jax.experimental import pallas as pl
from jax.experimental.pallas import tpu as pltpu


def _round_up(x, m):
    return ((x + m - 1) // m) * m


def _rnn_kernel(x_ref, wx_ref, wh_ref, b_ref, wo_ref, bo_ref, out_ref, xp_ref):
    # x_ref  : (seq_len, block_b, input_p)   time-major, zero-padded
    # wx_ref : (input_p, hidden_p)           input->hidden weight (zero-padded)
    # wh_ref : (hidden_p, hidden_p)          hidden->hidden weight (zero-padded)
    # b_ref  : (1, hidden_p)
    # wo_ref : (hidden_p, ncls_p)
    # bo_ref : (1, ncls_p)
    # out_ref: (block_b, ncls_p)
    # xp_ref : (seq_len, block_b, hidden_p)  VMEM scratch holding x_proj
    seq_len, block_b, input_p = x_ref.shape
    hidden_p = wh_ref.shape[1]
    ncls_p = wo_ref.shape[1]

    # --- Hoisted input projection: one (T*B, I) @ (I, H) matmul + bias. ---
    x2d = x_ref[...].reshape(seq_len * block_b, input_p)
    xp = jnp.dot(x2d, wx_ref[...], preferred_element_type=jnp.float32)
    xp_ref[...] = (xp + b_ref[...]).reshape(seq_len, block_b, hidden_p)

    # --- Serial recurrence: h carried in vregs, one K=128 matmul per step. ---
    h = jnp.zeros((block_b, hidden_p), jnp.float32)
    for t in range(seq_len):  # seq_len is small & static -> fully unrolled
        pre = xp_ref[t] + jnp.dot(h, wh_ref[...],
                                  preferred_element_type=jnp.float32)
        h = jnp.tanh(pre)

    # --- Output head. ---
    out_ref[...] = (jnp.dot(h, wo_ref[...], preferred_element_type=jnp.float32)
                    + bo_ref[...]).astype(out_ref.dtype)


def rnn_forward(x, w_in, b_in, w_out, b_out, hidden_size):
    """x: (batch, seq_len, input_size) float32.
    w_in : (input_size + hidden_size, hidden_size)   (= fc_in.weight.T)
    b_in : (hidden_size,)
    w_out: (hidden_size, num_classes)                (= fc_out.weight.T)
    b_out: (num_classes,)
    returns (batch, num_classes)
    """
    batch, seq_len, input_size = x.shape
    num_classes = w_out.shape[1]

    # Lane/sublane-dense padding. Zero padding keeps the math exact: padded
    # weight rows/cols and bias lanes are zero, so padded hidden columns stay
    # tanh(0) = 0 through the recurrence and are sliced off at the end.
    input_p = _round_up(input_size, 128)
    hidden_p = _round_up(hidden_size, 128)
    ncls_p = _round_up(num_classes, 128)

    # Batch blocking: shard across TensorCores (v7x) only when batch is large
    # enough that splitting doesn't lengthen the serial chain on 1-TC chips.
    if batch >= 256:
        block_b = 128
        batch_p = _round_up(batch, block_b)
    else:
        batch_p = _round_up(batch, 8)
        block_b = batch_p
    num_b_blocks = batch_p // block_b

    # Time-major, padded x (transpose fused with the zero-pad).
    x_tm = jnp.transpose(x.astype(jnp.float32), (1, 0, 2))
    x_p = jnp.pad(x_tm, ((0, 0), (0, batch_p - batch),
                         (0, input_p - input_size)))

    # Split fc_in weight into the input part (hoisted) and recurrent part.
    wx_p = jnp.zeros((input_p, hidden_p), jnp.float32)
    wx_p = wx_p.at[:input_size, :hidden_size].set(w_in[:input_size])
    wh_p = jnp.zeros((hidden_p, hidden_p), jnp.float32)
    wh_p = wh_p.at[:hidden_size, :hidden_size].set(w_in[input_size:])

    b_p = jnp.zeros((1, hidden_p), jnp.float32).at[0, :hidden_size].set(b_in)
    wo_p = jnp.zeros((hidden_p, ncls_p), jnp.float32)
    wo_p = wo_p.at[:hidden_size, :num_classes].set(w_out)
    bo_p = jnp.zeros((1, ncls_p), jnp.float32).at[0, :num_classes].set(b_out)

    grid_spec = pltpu.PrefetchScalarGridSpec(
        num_scalar_prefetch=0,
        grid=(num_b_blocks,),  # independent batch blocks ("parallel")
        in_specs=[
            pl.BlockSpec((seq_len, block_b, input_p), lambda i: (0, i, 0)),
            pl.BlockSpec((input_p, hidden_p), lambda i: (0, 0)),
            pl.BlockSpec((hidden_p, hidden_p), lambda i: (0, 0)),
            pl.BlockSpec((1, hidden_p), lambda i: (0, 0)),
            pl.BlockSpec((hidden_p, ncls_p), lambda i: (0, 0)),
            pl.BlockSpec((1, ncls_p), lambda i: (0, 0)),
        ],
        out_specs=pl.BlockSpec((block_b, ncls_p), lambda i: (i, 0)),
        scratch_shapes=[pltpu.VMEM((seq_len, block_b, hidden_p), jnp.float32)],
    )

    # VMEM guard for scaled shapes (v7x: 64 MiB physical, 32 MiB default scope).
    vmem_bytes = 4 * (2 * seq_len * block_b * input_p          # x, double-buffered
                      + seq_len * block_b * hidden_p           # x_proj scratch
                      + 2 * (input_p * hidden_p + hidden_p * hidden_p
                             + hidden_p * ncls_p + hidden_p + ncls_p)
                      + 2 * block_b * ncls_p)
    vmem_limit = None
    if vmem_bytes > 30 * 1024 * 1024:
        vmem_limit = min(vmem_bytes + (8 << 20), 100 << 20)

    out_p = pl.pallas_call(
        _rnn_kernel,
        out_shape=jax.ShapeDtypeStruct((batch_p, ncls_p), jnp.float32),
        grid_spec=grid_spec,
        compiler_params=pltpu.CompilerParams(
            dimension_semantics=("parallel",),
            vmem_limit_bytes=vmem_limit),
    )(x_p, wx_p, wh_p, b_p, wo_p, bo_p)

    # Slice the padding off.
    return out_p[:batch, :num_classes]


def rnn_reference(x, w_in, b_in, w_out, b_out, hidden_size):
    batch, seq_len, input_size = x.shape
    h = jnp.zeros((batch, hidden_size), jnp.float32)
    for t in range(seq_len):
        combined = jnp.concatenate([x[:, t, :], h], axis=1)
        h = jnp.tanh(combined @ w_in + b_in)
    return h @ w_out + b_out


if __name__ == "__main__":
    # Hyperparameters matching the PyTorch script (MNIST-row RNN).
    input_size = 28
    hidden_size = 28
    num_classes = 10
    batch = 28
    seq_len = 28

    key = jax.random.PRNGKey(0)
    k1, k2, k3, k4, k5 = jax.random.split(key, 5)

    # Deterministic parameter init (uniform, like nn.Linear's default range).
    bound_in = 1.0 / jnp.sqrt(input_size + hidden_size)
    bound_out = 1.0 / jnp.sqrt(hidden_size)
    w_in = jax.random.uniform(k1, (input_size + hidden_size, hidden_size),
                              jnp.float32, -bound_in, bound_in)
    b_in = jax.random.uniform(k2, (hidden_size,), jnp.float32,
                              -bound_in, bound_in)
    w_out = jax.random.uniform(k3, (hidden_size, num_classes), jnp.float32,
                               -bound_out, bound_out)
    b_out = jax.random.uniform(k4, (num_classes,), jnp.float32,
                               -bound_out, bound_out)

    x = jax.random.normal(k5, (batch, seq_len, input_size), jnp.float32)

    out = rnn_forward(x, w_in, b_in, w_out, b_out, hidden_size)
    out = jax.block_until_ready(out)

    ref = rnn_reference(x, w_in, b_in, w_out, b_out, hidden_size)
    assert out.shape == (batch, num_classes)
    assert jnp.allclose(out, ref, atol=1e-4, rtol=1e-4), "mismatch vs reference"

    print("KERNEL_OK")
</pallas_src>

<mosaic_0001>
module attributes {stable_mosaic.version = 11 : i64} {
  func.func @_rnn_kernel(%arg0: i32, %arg1: memref<28x32x128xf32, #tpu.memory_space<vmem>>, %arg2: memref<128x128xf32, #tpu.memory_space<vmem>>, %arg3: memref<128x128xf32, #tpu.memory_space<vmem>>, %arg4: memref<1x128xf32, #tpu.memory_space<vmem>>, %arg5: memref<128x128xf32, #tpu.memory_space<vmem>>, %arg6: memref<1x128xf32, #tpu.memory_space<vmem>>, %arg7: memref<32x128xf32, #tpu.memory_space<vmem>>, %arg8: memref<28x32x128xf32, #tpu.memory_space<vmem>>) attributes {dimension_semantics = [#tpu.dimension_semantics<parallel>], iteration_bounds = array<i64: 1>, scalar_prefetch = 0 : i64, scratch_operands = 1 : i64, tpu.core_type = #tpu.core_type<tc>, window_params = [{transform_indices = @transform_0, window_bounds = array<i64: 28, 32, 128>}, {pipeline_mode = #tpu.pipeline_mode<synchronous>, transform_indices = @transform_1, window_bounds = array<i64: 128, 128>}, {pipeline_mode = #tpu.pipeline_mode<synchronous>, transform_indices = @transform_2, window_bounds = array<i64: 128, 128>}, {pipeline_mode = #tpu.pipeline_mode<synchronous>, transform_indices = @transform_3, window_bounds = array<i64: 1, 128>}, {pipeline_mode = #tpu.pipeline_mode<synchronous>, transform_indices = @transform_4, window_bounds = array<i64: 128, 128>}, {pipeline_mode = #tpu.pipeline_mode<synchronous>, transform_indices = @transform_5, window_bounds = array<i64: 1, 128>}, {transform_indices = @transform_6, window_bounds = array<i64: 32, 128>}]} {
    %c0 = arith.constant 0 : index
    %c0_0 = arith.constant 0 : index
    %c0_1 = arith.constant 0 : index
    %0 = vector.load %arg1[%c0, %c0_0, %c0_1] : memref<28x32x128xf32, #tpu.memory_space<vmem>>, vector<28x32x128xf32>
    %1 = vector.shape_cast %0 : vector<28x32x128xf32> to vector<896x128xf32>
    %c0_2 = arith.constant 0 : index
    %c0_3 = arith.constant 0 : index
    %2 = vector.load %arg2[%c0_2, %c0_3] : memref<128x128xf32, #tpu.memory_space<vmem>>, vector<128x128xf32>
    %cst = arith.constant dense<0.000000e+00> : vector<896x128xf32>
    %3 = tpu.matmul %1, %2, %cst {dimension_numbers = #tpu.dot_dimension_numbers<[1], [0], [0], [1], [0, 0, 1, 1], [], []>} : vector<896x128xf32>, vector<128x128xf32>, vector<896x128xf32> -> vector<896x128xf32>
    %c0_4 = arith.constant 0 : index
    %c0_5 = arith.constant 0 : index
    %4 = vector.load %arg4[%c0_4, %c0_5] : memref<1x128xf32, #tpu.memory_space<vmem>>, vector<1x128xf32>
    %5 = vector.broadcast %4 : vector<1x128xf32> to vector<896x128xf32>
    %6 = arith.addf %3, %5 : vector<896x128xf32>
    %7 = vector.shape_cast %6 : vector<896x128xf32> to vector<28x32x128xf32>
    %c0_6 = arith.constant 0 : index
    %c0_7 = arith.constant 0 : index
    %c0_8 = arith.constant 0 : index
    %8 = vector.load %arg8[%c0_6, %c0_7, %c0_8] : memref<28x32x128xf32, #tpu.memory_space<vmem>>, vector<28x32x128xf32>
    tpu.vector_store %arg8[%c0_6, %c0_7, %c0_8], %7 {strides = array<i32>} : memref<28x32x128xf32, #tpu.memory_space<vmem>>, vector<28x32x128xf32>,
    %cst_9 = arith.constant 0.000000e+00 : f32
    %9 = vector.broadcast %cst_9 : f32 to vector<32x128xf32>
    %c0_10 = arith.constant 0 : index
    %c0_11 = arith.constant 0 : index
    %c0_12 = arith.constant 0 : index
    %10 = vector.load %arg8[%c0_10, %c0_11, %c0_12] : memref<28x32x128xf32, #tpu.memory_space<vmem>>, vector<1x32x128xf32>
    %11 = vector.shape_cast %10 : vector<1x32x128xf32> to vector<32x128xf32>
    %c0_13 = arith.constant 0 : index
    %c0_14 = arith.constant 0 : index
    %12 = vector.load %arg3[%c0_13, %c0_14] : memref<128x128xf32, #tpu.memory_space<vmem>>, vector<128x128xf32>
    %cst_15 = arith.constant dense<0.000000e+00> : vector<32x128xf32>
    %13 = tpu.matmul %9, %12, %cst_15 {dimension_numbers = #tpu.dot_dimension_numbers<[1], [0], [0], [1], [0, 0, 1, 1], [], []>} : vector<32x128xf32>, vector<128x128xf32>, vector<32x128xf32> -> vector<32x128xf32>
    %14 = arith.addf %11, %13 : vector<32x128xf32>
    %15 = math.tanh %14 : vector<32x128xf32>
    %c1 = arith.constant 1 : index
    %c0_16 = arith.constant 0 : index
    %c0_17 = arith.constant 0 : index
    %16 = vector.load %arg8[%c1, %c0_16, %c0_17] : memref<28x32x128xf32, #tpu.memory_space<vmem>>, vector<1x32x128xf32>
    %17 = vector.shape_cast %16 : vector<1x32x128xf32> to vector<32x128xf32>
    %c0_18 = arith.constant 0 : index
    %c0_19 = arith.constant 0 : index
    %18 = vector.load %arg3[%c0_18, %c0_19] : memref<128x128xf32, #tpu.memory_space<vmem>>, vector<128x128xf32>
    %cst_20 = arith.constant dense<0.000000e+00> : vector<32x128xf32>
    %19 = tpu.matmul %15, %18, %cst_20 {dimension_numbers = #tpu.dot_dimension_numbers<[1], [0], [0], [1], [0, 0, 1, 1], [], []>} : vector<32x128xf32>, vector<128x128xf32>, vector<32x128xf32> -> vector<32x128xf32>
    %20 = arith.addf %17, %19 : vector<32x128xf32>
    %21 = math.tanh %20 : vector<32x128xf32>
    %c2 = arith.constant 2 : index
    %c0_21 = arith.constant 0 : index
    %c0_22 = arith.constant 0 : index
    %22 = vector.load %arg8[%c2, %c0_21, %c0_22] : memref<28x32x128xf32, #tpu.memory_space<vmem>>, vector<1x32x128xf32>
    %23 = vector.shape_cast %22 : vector<1x32x128xf32> to vector<32x128xf32>
    %c0_23 = arith.constant 0 : index
    %c0_24 = arith.constant 0 : index
    %24 = vector.load %arg3[%c0_23, %c0_24] : memref<128x128xf32, #tpu.memory_space<vmem>>, vector<128x128xf32>
    %cst_25 = arith.constant dense<0.000000e+00> : vector<32x128xf32>
    %25 = tpu.matmul %21, %24, %cst_25 {dimension_numbers = #tpu.dot_dimension_numbers<[1], [0], [0], [1], [0, 0, 1, 1], [], []>} : vector<32x128xf32>, vector<128x128xf32>, vector<32x128xf32> -> vector<32x128xf32>
    %26 = arith.addf %23, %25 : vector<32x128xf32>
    %27 = math.tanh %26 : vector<32x128xf32>
    %c3 = arith.constant 3 : index
    %c0_26 = arith.constant 0 : index
    %c0_27 = arith.constant 0 : index
    %28 = vector.load %arg8[%c3, %c0_26, %c0_27] : memref<28x32x128xf32, #tpu.memory_space<vmem>>, vector<1x32x128xf32>
    %29 = vector.shape_cast %28 : vector<1x32x128xf32> to vector<32x128xf32>
    %c0_28 = arith.constant 0 : index
    %c0_29 = arith.constant 0 : index
    %30 = vector.load %arg3[%c0_28, %c0_29] : memref<128x128xf32, #tpu.memory_space<vmem>>, vector<128x128xf32>
    %cst_30 = arith.constant dense<0.000000e+00> : vector<32x128xf32>
    %31 = tpu.matmul %27, %30, %cst_30 {dimension_numbers = #tpu.dot_dimension_numbers<[1], [0], [0], [1], [0, 0, 1, 1], [], []>} : vector<32x128xf32>, vector<128x128xf32>, vector<32x128xf32> -> vector<32x128xf32>
    %32 = arith.addf %29, %31 : vector<32x128xf32>
    %33 = math.tanh %32 : vector<32x128xf32>
    %c4 = arith.constant 4 : index
    %c0_31 = arith.constant 0 : index
    %c0_32 = arith.constant 0 : index
    %34 = vector.load %arg8[%c4, %c0_31, %c0_32] : memref<28x32x128xf32, #tpu.memory_space<vmem>>, vector<1x32x128xf32>
    %35 = vector.shape_cast %34 : vector<1x32x128xf32> to vector<32x128xf32>
    %c0_33 = arith.constant 0 : index
    %c0_34 = arith.constant 0 : index
    %36 = vector.load %arg3[%c0_33, %c0_34] : memref<128x128xf32, #tpu.memory_space<vmem>>, vector<128x128xf32>
    %cst_35 = arith.constant dense<0.000000e+00> : vector<32x128xf32>
    %37 = tpu.matmul %33, %36, %cst_35 {dimension_numbers = #tpu.dot_dimension_numbers<[1], [0], [0], [1], [0, 0, 1, 1], [], []>} : vector<32x128xf32>, vector<128x128xf32>, vector<32x128xf32> -> vector<32x128xf32>
    %38 = arith.addf %35, %37 : vector<32x128xf32>
    %39 = math.tanh %38 : vector<32x128xf32>
    %c5 = arith.constant 5 : index
    %c0_36 = arith.constant 0 : index
    %c0_37 = arith.constant 0 : index
    %40 = vector.load %arg8[%c5, %c0_36, %c0_37] : memref<28x32x128xf32, #tpu.memory_space<vmem>>, vector<1x32x128xf32>
    %41 = vector.shape_cast %40 : vector<1x32x128xf32> to vector<32x128xf32>
    %c0_38 = arith.constant 0 : index
    %c0_39 = arith.constant 0 : index
    %42 = vector.load %arg3[%c0_38, %c0_39] : memref<128x128xf32, #tpu.memory_space<vmem>>, vector<128x128xf32>
    %cst_40 = arith.constant dense<0.000000e+00> : vector<32x128xf32>
    %43 = tpu.matmul %39, %42, %cst_40 {dimension_numbers = #tpu.dot_dimension_numbers<[1], [0], [0], [1], [0, 0, 1, 1], [], []>} : vector<32x128xf32>, vector<128x128xf32>, vector<32x128xf32> -> vector<32x128xf32>
    %44 = arith.addf %41, %43 : vector<32x128xf32>
    %45 = math.tanh %44 : vector<32x128xf32>
    %c6 = arith.constant 6 : index
    %c0_41 = arith.constant 0 : index
    %c0_42 = arith.constant 0 : index
    %46 = vector.load %arg8[%c6, %c0_41, %c0_42] : memref<28x32x128xf32, #tpu.memory_space<vmem>>, vector<1x32x128xf32>
    %47 = vector.shape_cast %46 : vector<1x32x128xf32> to vector<32x128xf32>
    %c0_43 = arith.constant 0 : index
    %c0_44 = arith.constant 0 : index
    %48 = vector.load %arg3[%c0_43, %c0_44] : memref<128x128xf32, #tpu.memory_space<vmem>>, vector<128x128xf32>
    %cst_45 = arith.constant dense<0.000000e+00> : vector<32x128xf32>
    %49 = tpu.matmul %45, %48, %cst_45 {dimension_numbers = #tpu.dot_dimension_numbers<[1], [0], [0], [1], [0, 0, 1, 1], [], []>} : vector<32x128xf32>, vector<128x128xf32>, vector<32x128xf32> -> vector<32x128xf32>
    %50 = arith.addf %47, %49 : vector<32x128xf32>
    %51 = math.tanh %50 : vector<32x128xf32>
    %c7 = arith.constant 7 : index
    %c0_46 = arith.constant 0 : index
    %c0_47 = arith.constant 0 : index
    %52 = vector.load %arg8[%c7, %c0_46, %c0_47] : memref<28x32x128xf32, #tpu.memory_space<vmem>>, vector<1x32x128xf32>
    %53 = vector.shape_cast %52 : vector<1x32x128xf32> to vector<32x128xf32>
    %c0_48 = arith.constant 0 : index
    %c0_49 = arith.constant 0 : index
    %54 = vector.load %arg3[%c0_48, %c0_49] : memref<128x128xf32, #tpu.memory_space<vmem>>, vector<128x128xf32>
    %cst_50 = arith.constant dense<0.000000e+00> : vector<32x128xf32>
    %55 = tpu.matmul %51, %54, %cst_50 {dimension_numbers = #tpu.dot_dimension_numbers<[1], [0], [0], [1], [0, 0, 1, 1], [], []>} : vector<32x128xf32>, vector<128x128xf32>, vector<32x128xf32> -> vector<32x128xf32>
    %56 = arith.addf %53, %55 : vector<32x128xf32>
    %57 = math.tanh %56 : vector<32x128xf32>
    %c8 = arith.constant 8 : index
    %c0_51 = arith.constant 0 : index
    %c0_52 = arith.constant 0 : index
    %58 = vector.load %arg8[%c8, %c0_51, %c0_52] : memref<28x32x128xf32, #tpu.memory_space<vmem>>, vector<1x32x128xf32>
    %59 = vector.shape_cast %58 : vector<1x32x128xf32> to vector<32x128xf32>
    %c0_53 = arith.constant 0 : index
    %c0_54 = arith.constant 0 : index
    %60 = vector.load %arg3[%c0_53, %c0_54] : memref<128x128xf32, #tpu.memory_space<vmem>>, vector<128x128xf32>
    %cst_55 = arith.constant dense<0.000000e+00> : vector<32x128xf32>
    %61 = tpu.matmul %57, %60, %cst_55 {dimension_numbers = #tpu.dot_dimension_numbers<[1], [0], [0], [1], [0, 0, 1, 1], [], []>} : vector<32x128xf32>, vector<128x128xf32>, vector<32x128xf32> -> vector<32x128xf32>
    %62 = arith.addf %59, %61 : vector<32x128xf32>
    %63 = math.tanh %62 : vector<32x128xf32>
    %c9 = arith.constant 9 : index
    %c0_56 = arith.constant 0 : index
    %c0_57 = arith.constant 0 : index
    %64 = vector.load %arg8[%c9, %c0_56, %c0_57] : memref<28x32x128xf32, #tpu.memory_space<vmem>>, vector<1x32x128xf32>
    %65 = vector.shape_cast %64 : vector<1x32x128xf32> to vector<32x128xf32>
    %c0_58 = arith.constant 0 : index
    %c0_59 = arith.constant 0 : index
    %66 = vector.load %arg3[%c0_58, %c0_59] : memref<128x128xf32, #tpu.memory_space<vmem>>, vector<128x128xf32>
    %cst_60 = arith.constant dense<0.000000e+00> : vector<32x128xf32>
    %67 = tpu.matmul %63, %66, %cst_60 {dimension_numbers = #tpu.dot_dimension_numbers<[1], [0], [0], [1], [0, 0, 1, 1], [], []>} : vector<32x128xf32>, vector<128x128xf32>, vector<32x128xf32> -> vector<32x128xf32>
    %68 = arith.addf %65, %67 : vector<32x128xf32>
    %69 = math.tanh %68 : vector<32x128xf32>
    %c10 = arith.constant 10 : index
    %c0_61 = arith.constant 0 : index
    %c0_62 = arith.constant 0 : index
    %70 = vector.load %arg8[%c10, %c0_61, %c0_62] : memref<28x32x128xf32, #tpu.memory_space<vmem>>, vector<1x32x128xf32>
    %71 = vector.shape_cast %70 : vector<1x32x128xf32> to vector<32x128xf32>
    %c0_63 = arith.constant 0 : index
    %c0_64 = arith.constant 0 : index
    %72 = vector.load %arg3[%c0_63, %c0_64] : memref<128x128xf32, #tpu.memory_space<vmem>>, vector<128x128xf32>
    %cst_65 = arith.constant dense<0.000000e+00> : vector<32x128xf32>
    %73 = tpu.matmul %69, %72, %cst_65 {dimension_numbers = #tpu.dot_dimension_numbers<[1], [0], [0], [1], [0, 0, 1, 1], [], []>} : vector<32x128xf32>, vector<128x128xf32>, vector<32x128xf32> -> vector<32x128xf32>
    %74 = arith.addf %71, %73 : vector<32x128xf32>
    %75 = math.tanh %74 : vector<32x128xf32>
    %c11 = arith.constant 11 : index
    %c0_66 = arith.constant 0 : index
    %c0_67 = arith.constant 0 : index
    %76 = vector.load %arg8[%c11, %c0_66, %c0_67] : memref<28x32x128xf32, #tpu.memory_space<vmem>>, vector<1x32x128xf32>
    %77 = vector.shape_cast %76 : vector<1x32x128xf32> to vector<32x128xf32>
    %c0_68 = arith.constant 0 : index
    %c0_69 = arith.constant 0 : index
    %78 = vector.load %arg3[%c0_68, %c0_69] : memref<128x128xf32, #tpu.memory_space<vmem>>, vector<128x128xf32>
    %cst_70 = arith.constant dense<0.000000e+00> : vector<32x128xf32>
    %79 = tpu.matmul %75, %78, %cst_70 {dimension_numbers = #tpu.dot_dimension_numbers<[1], [0], [0], [1], [0, 0, 1, 1], [], []>} : vector<32x128xf32>, vector<128x128xf32>, vector<32x128xf32> -> vector<32x128xf32>
    %80 = arith.addf %77, %79 : vector<32x128xf32>
    %81 = math.tanh %80 : vector<32x128xf32>
    %c12 = arith.constant 12 : index
    %c0_71 = arith.constant 0 : index
    %c0_72 = arith.constant 0 : index
    %82 = vector.load %arg8[%c12, %c0_71, %c0_72] : memref<28x32x128xf32, #tpu.memory_space<vmem>>, vector<1x32x128xf32>
    %83 = vector.shape_cast %82 : vector<1x32x128xf32> to vector<32x128xf32>
    %c0_73 = arith.constant 0 : index
    %c0_74 = arith.constant 0 : index
    %84 = vector.load %arg3[%c0_73, %c0_74] : memref<128x128xf32, #tpu.memory_space<vmem>>, vector<128x128xf32>
    %cst_75 = arith.constant dense<0.000000e+00> : vector<32x128xf32>
    %85 = tpu.matmul %81, %84, %cst_75 {dimension_numbers = #tpu.dot_dimension_numbers<[1], [0], [0], [1], [0, 0, 1, 1], [], []>} : vector<32x128xf32>, vector<128x128xf32>, vector<32x128xf32> -> vector<32x128xf32>
    %86 = arith.addf %83, %85 : vector<32x128xf32>
    %87 = math.tanh %86 : vector<32x128xf32>
    %c13 = arith.constant 13 : index
    %c0_76 = arith.constant 0 : index
    %c0_77 = arith.constant 0 : index
    %88 = vector.load %arg8[%c13, %c0_76, %c0_77] : memref<28x32x128xf32, #tpu.memory_space<vmem>>, vector<1x32x128xf32>
    %89 = vector.shape_cast %88 : vector<1x32x128xf32> to vector<32x128xf32>
    %c0_78 = arith.constant 0 : index
    %c0_79 = arith.constant 0 : index
    %90 = vector.load %arg3[%c0_78, %c0_79] : memref<128x128xf32, #tpu.memory_space<vmem>>, vector<128x128xf32>
    %cst_80 = arith.constant dense<0.000000e+00> : vector<32x128xf32>
    %91 = tpu.matmul %87, %90, %cst_80 {dimension_numbers = #tpu.dot_dimension_numbers<[1], [0], [0], [1], [0, 0, 1, 1], [], []>} : vector<32x128xf32>, vector<128x128xf32>, vector<32x128xf32> -> vector<32x128xf32>
    %92 = arith.addf %89, %91 : vector<32x128xf32>
    %93 = math.tanh %92 : vector<32x128xf32>
    %c14 = arith.constant 14 : index
    %c0_81 = arith.constant 0 : index
    %c0_82 = arith.constant 0 : index
    %94 = vector.load %arg8[%c14, %c0_81, %c0_82] : memref<28x32x128xf32, #tpu.memory_space<vmem>>, vector<1x32x128xf32>
    %95 = vector.shape_cast %94 : vector<1x32x128xf32> to vector<32x128xf32>
    %c0_83 = arith.constant 0 : index
    %c0_84 = arith.constant 0 : index
    %96 = vector.load %arg3[%c0_83, %c0_84] : memref<128x128xf32, #tpu.memory_space<vmem>>, vector<128x128xf32>
    %cst_85 = arith.constant dense<0.000000e+00> : vector<32x128xf32>
    %97 = tpu.matmul %93, %96, %cst_85 {dimension_numbers = #tpu.dot_dimension_numbers<[1], [0], [0], [1], [0, 0, 1, 1], [], []>} : vector<32x128xf32>, vector<128x128xf32>, vector<32x128xf32> -> vector<32x128xf32>
    %98 = arith.addf %95, %97 : vector<32x128xf32>
    %99 = math.tanh %98 : vector<32x128xf32>
    %c15 = arith.constant 15 : index
    %c0_86 = arith.constant 0 : index
    %c0_87 = arith.constant 0 : index
    %100 = vector.load %arg8[%c15, %c0_86, %c0_87] : memref<28x32x128xf32, #tpu.memory_space<vmem>>, vector<1x32x128xf32>
    %101 = vector.shape_cast %100 : vector<1x32x128xf32> to vector<32x128xf32>
    %c0_88 = arith.constant 0 : index
    %c0_89 = arith.constant 0 : index
    %102 = vector.load %arg3[%c0_88, %c0_89] : memref<128x128xf32, #tpu.memory_space<vmem>>, vector<128x128xf32>
    %cst_90 = arith.constant dense<0.000000e+00> : vector<32x128xf32>
    %103 = tpu.matmul %99, %102, %cst_90 {dimension_numbers = #tpu.dot_dimension_numbers<[1], [0], [0], [1], [0, 0, 1, 1], [], []>} : vector<32x128xf32>, vector<128x128xf32>, vector<32x128xf32> -> vector<32x128xf32>
    %104 = arith.addf %101, %103 : vector<32x128xf32>
    %105 = math.tanh %104 : vector<32x128xf32>
    %c16 = arith.constant 16 : index
    %c0_91 = arith.constant 0 : index
    %c0_92 = arith.constant 0 : index
    %106 = vector.load %arg8[%c16, %c0_91, %c0_92] : memref<28x32x128xf32, #tpu.memory_space<vmem>>, vector<1x32x128xf32>
    %107 = vector.shape_cast %106 : vector<1x32x128xf32> to vector<32x128xf32>
    %c0_93 = arith.constant 0 : index
    %c0_94 = arith.constant 0 : index
    %108 = vector.load %arg3[%c0_93, %c0_94] : memref<128x128xf32, #tpu.memory_space<vmem>>, vector<128x128xf32>
    %cst_95 = arith.constant dense<0.000000e+00> : vector<32x128xf32>
    %109 = tpu.matmul %105, %108, %cst_95 {dimension_numbers = #tpu.dot_dimension_numbers<[1], [0], [0], [1], [0, 0, 1, 1], [], []>} : vector<32x128xf32>, vector<128x128xf32>, vector<32x128xf32> -> vector<32x128xf32>
    %110 = arith.addf %107, %109 : vector<32x128xf32>
    %111 = math.tanh %110 : vector<32x128xf32>
    %c17 = arith.constant 17 : index
    %c0_96 = arith.constant 0 : index
    %c0_97 = arith.constant 0 : index
    %112 = vector.load %arg8[%c17, %c0_96, %c0_97] : memref<28x32x128xf32, #tpu.memory_space<vmem>>, vector<1x32x128xf32>
    %113 = vector.shape_cast %112 : vector<1x32x128xf32> to vector<32x128xf32>
    %c0_98 = arith.constant 0 : index
    %c0_99 = arith.constant 0 : index
    %114 = vector.load %arg3[%c0_98, %c0_99] : memref<128x128xf32, #tpu.memory_space<vmem>>, vector<128x128xf32>
    %cst_100 = arith.constant dense<0.000000e+00> : vector<32x128xf32>
    %115 = tpu.matmul %111, %114, %cst_100 {dimension_numbers = #tpu.dot_dimension_numbers<[1], [0], [0], [1], [0, 0, 1, 1], [], []>} : vector<32x128xf32>, vector<128x128xf32>, vector<32x128xf32> -> vector<32x128xf32>
    %116 = arith.addf %113, %115 : vector<32x128xf32>
    %117 = math.tanh %116 : vector<32x128xf32>
    %c18 = arith.constant 18 : index
    %c0_101 = arith.constant 0 : index
    %c0_102 = arith.constant 0 : index
    %118 = vector.load %arg8[%c18, %c0_101, %c0_102] : memref<28x32x128xf32, #tpu.memory_space<vmem>>, vector<1x32x128xf32>
    %119 = vector.shape_cast %118 : vector<1x32x128xf32> to vector<32x128xf32>
    %c0_103 = arith.constant 0 : index
    %c0_104 = arith.constant 0 : index
    %120 = vector.load %arg3[%c0_103, %c0_104] : memref<128x128xf32, #tpu.memory_space<vmem>>, vector<128x128xf32>
    %cst_105 = arith.constant dense<0.000000e+00> : vector<32x128xf32>
    %121 = tpu.matmul %117, %120, %cst_105 {dimension_numbers = #tpu.dot_dimension_numbers<[1], [0], [0], [1], [0, 0, 1, 1], [], []>} : vector<32x128xf32>, vector<128x128xf32>, vector<32x128xf32> -> vector<32x128xf32>
    %122 = arith.addf %119, %121 : vector<32x128xf32>
    %123 = math.tanh %122 : vector<32x128xf32>
    %c19 = arith.constant 19 : index
    %c0_106 = arith.constant 0 : index
    %c0_107 = arith.constant 0 : index
    %124 = vector.load %arg8[%c19, %c0_106, %c0_107] : memref<28x32x128xf32, #tpu.memory_space<vmem>>, vector<1x32x128xf32>
    %125 = vector.shape_cast %124 : vector<1x32x128xf32> to vector<32x128xf32>
    %c0_108 = arith.constant 0 : index
    %c0_109 = arith.constant 0 : index
    %126 = vector.load %arg3[%c0_108, %c0_109] : memref<128x128xf32, #tpu.memory_space<vmem>>, vector<128x128xf32>
    %cst_110 = arith.constant dense<0.000000e+00> : vector<32x128xf32>
    %127 = tpu.matmul %123, %126, %cst_110 {dimension_numbers = #tpu.dot_dimension_numbers<[1], [0], [0], [1], [0, 0, 1, 1], [], []>} : vector<32x128xf32>, vector<128x128xf32>, vector<32x128xf32> -> vector<32x128xf32>
    %128 = arith.addf %125, %127 : vector<32x128xf32>
    %129 = math.tanh %128 : vector<32x128xf32>
    %c20 = arith.constant 20 : index
    %c0_111 = arith.constant 0 : index
    %c0_112 = arith.constant 0 : index
    %130 = vector.load %arg8[%c20, %c0_111, %c0_112] : memref<28x32x128xf32, #tpu.memory_space<vmem>>, vector<1x32x128xf32>
    %131 = vector.shape_cast %130 : vector<1x32x128xf32> to vector<32x128xf32>
    %c0_113 = arith.constant 0 : index
    %c0_114 = arith.constant 0 : index
    %132 = vector.load %arg3[%c0_113, %c0_114] : memref<128x128xf32, #tpu.memory_space<vmem>>, vector<128x128xf32>
    %cst_115 = arith.constant dense<0.000000e+00> : vector<32x128xf32>
    %133 = tpu.matmul %129, %132, %cst_115 {dimension_numbers = #tpu.dot_dimension_numbers<[1], [0], [0], [1], [0, 0, 1, 1], [], []>} : vector<32x128xf32>, vector<128x128xf32>, vector<32x128xf32> -> vector<32x128xf32>
    %134 = arith.addf %131, %133 : vector<32x128xf32>
    %135 = math.tanh %134 : vector<32x128xf32>
    %c21 = arith.constant 21 : index
    %c0_116 = arith.constant 0 : index
    %c0_117 = arith.constant 0 : index
    %136 = vector.load %arg8[%c21, %c0_116, %c0_117] : memref<28x32x128xf32, #tpu.memory_space<vmem>>, vector<1x32x128xf32>
    %137 = vector.shape_cast %136 : vector<1x32x128xf32> to vector<32x128xf32>
    %c0_118 = arith.constant 0 : index
    %c0_119 = arith.constant 0 : index
    %138 = vector.load %arg3[%c0_118, %c0_119] : memref<128x128xf32, #tpu.memory_space<vmem>>, vector<128x128xf32>
    %cst_120 = arith.constant dense<0.000000e+00> : vector<32x128xf32>
    %139 = tpu.matmul %135, %138, %cst_120 {dimension_numbers = #tpu.dot_dimension_numbers<[1], [0], [0], [1], [0, 0, 1, 1], [], []>} : vector<32x128xf32>, vector<128x128xf32>, vector<32x128xf32> -> vector<32x128xf32>
    %140 = arith.addf %137, %139 : vector<32x128xf32>
    %141 = math.tanh %140 : vector<32x128xf32>
    %c22 = arith.constant 22 : index
    %c0_121 = arith.constant 0 : index
    %c0_122 = arith.constant 0 : index
    %142 = vector.load %arg8[%c22, %c0_121, %c0_122] : memref<28x32x128xf32, #tpu.memory_space<vmem>>, vector<1x32x128xf32>
    %143 = vector.shape_cast %142 : vector<1x32x128xf32> to vector<32x128xf32>
    %c0_123 = arith.constant 0 : index
    %c0_124 = arith.constant 0 : index
    %144 = vector.load %arg3[%c0_123, %c0_124] : memref<128x128xf32, #tpu.memory_space<vmem>>, vector<128x128xf32>
    %cst_125 = arith.constant dense<0.000000e+00> : vector<32x128xf32>
    %145 = tpu.matmul %141, %144, %cst_125 {dimension_numbers = #tpu.dot_dimension_numbers<[1], [0], [0], [1], [0, 0, 1, 1], [], []>} : vector<32x128xf32>, vector<128x128xf32>, vector<32x128xf32> -> vector<32x128xf32>
    %146 = arith.addf %143, %145 : vector<32x128xf32>
    %147 = math.tanh %146 : vector<32x128xf32>
    %c23 = arith.constant 23 : index
    %c0_126 = arith.constant 0 : index
    %c0_127 = arith.constant 0 : index
    %148 = vector.load %arg8[%c23, %c0_126, %c0_127] : memref<28x32x128xf32, #tpu.memory_space<vmem>>, vector<1x32x128xf32>
    %149 = vector.shape_cast %148 : vector<1x32x128xf32> to vector<32x128xf32>
    %c0_128 = arith.constant 0 : index
    %c0_129 = arith.constant 0 : index
    %150 = vector.load %arg3[%c0_128, %c0_129] : memref<128x128xf32, #tpu.memory_space<vmem>>, vector<128x128xf32>
    %cst_130 = arith.constant dense<0.000000e+00> : vector<32x128xf32>
    %151 = tpu.matmul %147, %150, %cst_130 {dimension_numbers = #tpu.dot_dimension_numbers<[1], [0], [0], [1], [0, 0, 1, 1], [], []>} : vector<32x128xf32>, vector<128x128xf32>, vector<32x128xf32> -> vector<32x128xf32>
    %152 = arith.addf %149, %151 : vector<32x128xf32>
    %153 = math.tanh %152 : vector<32x128xf32>
    %c24 = arith.constant 24 : index
    %c0_131 = arith.constant 0 : index
    %c0_132 = arith.constant 0 : index
    %154 = vector.load %arg8[%c24, %c0_131, %c0_132] : memref<28x32x128xf32, #tpu.memory_space<vmem>>, vector<1x32x128xf32>
    %155 = vector.shape_cast %154 : vector<1x32x128xf32> to vector<32x128xf32>
    %c0_133 = arith.constant 0 : index
    %c0_134 = arith.constant 0 : index
    %156 = vector.load %arg3[%c0_133, %c0_134] : memref<128x128xf32, #tpu.memory_space<vmem>>, vector<128x128xf32>
    %cst_135 = arith.constant dense<0.000000e+00> : vector<32x128xf32>
    %157 = tpu.matmul %153, %156, %cst_135 {dimension_numbers = #tpu.dot_dimension_numbers<[1], [0], [0], [1], [0, 0, 1, 1], [], []>} : vector<32x128xf32>, vector<128x128xf32>, vector<32x128xf32> -> vector<32x128xf32>
    %158 = arith.addf %155, %157 : vector<32x128xf32>
    %159 = math.tanh %158 : vector<32x128xf32>
    %c25 = arith.constant 25 : index
    %c0_136 = arith.constant 0 : index
    %c0_137 = arith.constant 0 : index
    %160 = vector.load %arg8[%c25, %c0_136, %c0_137] : memref<28x32x128xf32, #tpu.memory_space<vmem>>, vector<1x32x128xf32>
    %161 = vector.shape_cast %160 : vector<1x32x128xf32> to vector<32x128xf32>
    %c0_138 = arith.constant 0 : index
    %c0_139 = arith.constant 0 : index
    %162 = vector.load %arg3[%c0_138, %c0_139] : memref<128x128xf32, #tpu.memory_space<vmem>>, vector<128x128xf32>
    %cst_140 = arith.constant dense<0.000000e+00> : vector<32x128xf32>
    %163 = tpu.matmul %159, %162, %cst_140 {dimension_numbers = #tpu.dot_dimension_numbers<[1], [0], [0], [1], [0, 0, 1, 1], [], []>} : vector<32x128xf32>, vector<128x128xf32>, vector<32x128xf32> -> vector<32x128xf32>
    %164 = arith.addf %161, %163 : vector<32x128xf32>
    %165 = math.tanh %164 : vector<32x128xf32>
    %c26 = arith.constant 26 : index
    %c0_141 = arith.constant 0 : index
    %c0_142 = arith.constant 0 : index
    %166 = vector.load %arg8[%c26, %c0_141, %c0_142] : memref<28x32x128xf32, #tpu.memory_space<vmem>>, vector<1x32x128xf32>
    %167 = vector.shape_cast %166 : vector<1x32x128xf32> to vector<32x128xf32>
    %c0_143 = arith.constant 0 : index
    %c0_144 = arith.constant 0 : index
    %168 = vector.load %arg3[%c0_143, %c0_144] : memref<128x128xf32, #tpu.memory_space<vmem>>, vector<128x128xf32>
    %cst_145 = arith.constant dense<0.000000e+00> : vector<32x128xf32>
    %169 = tpu.matmul %165, %168, %cst_145 {dimension_numbers = #tpu.dot_dimension_numbers<[1], [0], [0], [1], [0, 0, 1, 1], [], []>} : vector<32x128xf32>, vector<128x128xf32>, vector<32x128xf32> -> vector<32x128xf32>
    %170 = arith.addf %167, %169 : vector<32x128xf32>
    %171 = math.tanh %170 : vector<32x128xf32>
    %c27 = arith.constant 27 : index
    %c0_146 = arith.constant 0 : index
    %c0_147 = arith.constant 0 : index
    %172 = vector.load %arg8[%c27, %c0_146, %c0_147] : memref<28x32x128xf32, #tpu.memory_space<vmem>>, vector<1x32x128xf32>
    %173 = vector.shape_cast %172 : vector<1x32x128xf32> to vector<32x128xf32>
    %c0_148 = arith.constant 0 : index
    %c0_149 = arith.constant 0 : index
    %174 = vector.load %arg3[%c0_148, %c0_149] : memref<128x128xf32, #tpu.memory_space<vmem>>, vector<128x128xf32>
    %cst_150 = arith.constant dense<0.000000e+00> : vector<32x128xf32>
    %175 = tpu.matmul %171, %174, %cst_150 {dimension_numbers = #tpu.dot_dimension_numbers<[1], [0], [0], [1], [0, 0, 1, 1], [], []>} : vector<32x128xf32>, vector<128x128xf32>, vector<32x128xf32> -> vector<32x128xf32>
    %176 = arith.addf %173, %175 : vector<32x128xf32>
    %177 = math.tanh %176 : vector<32x128xf32>
    %c0_151 = arith.constant 0 : index
    %c0_152 = arith.constant 0 : index
    %178 = vector.load %arg5[%c0_151, %c0_152] : memref<128x128xf32, #tpu.memory_space<vmem>>, vector<128x128xf32>
    %cst_153 = arith.constant dense<0.000000e+00> : vector<32x128xf32>
    %179 = tpu.matmul %177, %178, %cst_153 {dimension_numbers = #tpu.dot_dimension_numbers<[1], [0], [0], [1], [0, 0, 1, 1], [], []>} : vector<32x128xf32>, vector<128x128xf32>, vector<32x128xf32> -> vector<32x128xf32>
    %c0_154 = arith.constant 0 : index
    %c0_155 = arith.constant 0 : index
    %180 = vector.load %arg6[%c0_154, %c0_155] : memref<1x128xf32, #tpu.memory_space<vmem>>, vector<1x128xf32>
    %181 = vector.broadcast %180 : vector<1x128xf32> to vector<32x128xf32>
    %182 = arith.addf %179, %181 : vector<32x128xf32>
    %c0_156 = arith.constant 0 : index
    %c0_157 = arith.constant 0 : index
    %183 = vector.load %arg7[%c0_156, %c0_157] : memref<32x128xf32, #tpu.memory_space<vmem>>, vector<32x128xf32>
    tpu.vector_store %arg7[%c0_156, %c0_157], %182 {strides = array<i32>} : memref<32x128xf32, #tpu.memory_space<vmem>>, vector<32x128xf32>,
    return
  }
  func.func @transform_0(%arg0: i32) -> (i32, i32, i32) {
    %c0_i32 = arith.constant 0 : i32
    %c0_i32_0 = arith.constant 0 : i32
    %c0_i32_1 = arith.constant 0 : i32
    return %c0_i32, %arg0, %c0_i32_0 : i32, i32, i32
  }
  func.func @transform_1(%arg0: i32) -> (i32, i32) {
    %c0_i32 = arith.constant 0 : i32
    %c0_i32_0 = arith.constant 0 : i32
    %c0_i32_1 = arith.constant 0 : i32
    return %c0_i32, %c0_i32_0 : i32, i32
  }
  func.func @transform_2(%arg0: i32) -> (i32, i32) {
    %c0_i32 = arith.constant 0 : i32
    %c0_i32_0 = arith.constant 0 : i32
    %c0_i32_1 = arith.constant 0 : i32
    return %c0_i32, %c0_i32_0 : i32, i32
  }
  func.func @transform_3(%arg0: i32) -> (i32, i32) {
    %c0_i32 = arith.constant 0 : i32
    %c0_i32_0 = arith.constant 0 : i32
    %c0_i32_1 = arith.constant 0 : i32
    return %c0_i32, %c0_i32_0 : i32, i32
  }
  func.func @transform_4(%arg0: i32) -> (i32, i32) {
    %c0_i32 = arith.constant 0 : i32
    %c0_i32_0 = arith.constant 0 : i32
    %c0_i32_1 = arith.constant 0 : i32
    return %c0_i32, %c0_i32_0 : i32, i32
  }
  func.func @transform_5(%arg0: i32) -> (i32, i32) {
    %c0_i32 = arith.constant 0 : i32
    %c0_i32_0 = arith.constant 0 : i32
    %c0_i32_1 = arith.constant 0 : i32
    return %c0_i32, %c0_i32_0 : i32, i32
  }
  func.func @transform_6(%arg0: i32) -> (i32, i32) {
    %c0_i32 = arith.constant 0 : i32
    %c0_i32_0 = arith.constant 0 : i32
    return %arg0, %c0_i32 : i32, i32
  }
}

</mosaic_0001>

<llo_original>
// kernel: tpu_custom_call.1
$region0: #{tpu_custom_call.1}
  #allocation0 [shape = 'u32[]', space=smem, size = 0x4, offset = 0x4, fixed_abs, tag = 'smem constant byte address 0x4 - core index']
  #allocation1 [shape = 'u32[144,128]{1,0:T(1,128)}', space=vmem, size = 0x12000, scoped, tag = 'internal scratch']
  #allocation2 [shape = 'f32[28,32,128]{2,1,0:T(8,128)}', space=vmem, size = 0x70000, scoped, tag = 'scratch operand']
  %s0 = inlined_call_operand.hbm [shape: f32[28,32,128], index: 0, kind: input, shape index: {}]
  %s1 = inlined_call_operand.hbm [shape: f32[128,128], index: 1, kind: input, shape index: {}]
  %s2 = inlined_call_operand.hbm [shape: f32[128,128], index: 2, kind: input, shape index: {}]
  %s3 = inlined_call_operand.vmem [shape: f32[1,128], index: 3, kind: input, shape index: {}]
  %s4 = inlined_call_operand.hbm [shape: f32[128,128], index: 4, kind: input, shape index: {}]
  %s5 = inlined_call_operand.vmem [shape: f32[1,128], index: 5, kind: input, shape index: {}]
  %s6 = inlined_call_operand.hbm [shape: f32[32,128], index: 6, kind: output, shape index: {}]
  %s7 = sld [smem:[#allocation0]]
  $region50: #{tpu_custom_call.1} parent=0
    _
  %s9 = ssub.s32 1, %s7
  %s10 = scalar_select 0, %s9, %s7
  $region1: #{tpu_custom_call.1} parent=0
    #allocation3 [shape = 'u8[458752]{0}', space=vmem, size = 0x70000, scoped, tag = 'input window, operand 0, single buffered']
    #allocation4 [shape = 's32[1]{0}', space=sflag, size = 0x4, scoped, tag = 'scoped memory for tpu_custom_call.1']
    #allocation5 [shape = 's32[1]{0}', space=sflag, size = 0x4, scoped, tag = 'scoped memory for tpu_custom_call.1']
    #allocation6 [shape = 'u8[65536]{0}', space=vmem, size = 0x10000, scoped, tag = 'input window, operand 1, single buffered']
    #allocation7 [shape = 's32[1]{0}', space=sflag, size = 0x4, scoped, tag = 'scoped memory for tpu_custom_call.1']
    #allocation8 [shape = 'u8[65536]{0}', space=vmem, size = 0x10000, scoped, tag = 'input window, operand 2, single buffered']
    #allocation9 [shape = 'u8[65536]{0}', space=vmem, size = 0x10000, scoped, tag = 'input window, operand 4, single buffered']
    #allocation10 [shape = 's32[1]{0}', space=sflag, size = 0x4, scoped, tag = 'scoped memory for tpu_custom_call.1']
    #allocation11 [shape = 'u8[16384]{0}', space=vmem, size = 0x4000, scoped, tag = 'output window, operand 0, single buffered']
    %11 = vsyncpa [#allocation4], 0
    %12 = vsyncpa [#allocation7], 0
    %13 = vsyncpa [#allocation10], 0
    %14 = vsyncpa [#allocation5], 0
    // Predicated region
    $region2: #{tpu_custom_call.1} parent=1 // pred_check
      _
    $region3: #{tpu_custom_call.1} parent=1 // pred_check_branch
      %16 = sbr.rel (0) target = $region5
    $region4: #{tpu_custom_call.1} parent=1 // pred_region
      %s18 = ssub.s32 14336, 14336
      %19 = vsyncadd [#allocation4], %s18
      %s20 = sshll.u32 [#allocation3], 4
      %s21 = int_to_ptr.vmem [resolvable:$true] %s20
      %26 = dma.hbm_to_vmem [thread:$0]  %s0, 14336, %s21, [#allocation4], 128, 128, 8
    $region5: #{tpu_custom_call.1} parent=1 // pred_fallthru
      _
    // Predicated region
    $region6: #{tpu_custom_call.1} parent=1 // pred_check
      _
    $region7: #{tpu_custom_call.1} parent=1 // pred_check_branch
      %28 = sbr.rel (0) target = $region9
    $region8: #{tpu_custom_call.1} parent=1 // pred_region
      %s30 = ssub.s32 2048, 2048
      %31 = vsyncadd [#allocation7], %s30
      %s32 = sshll.u32 [#allocation6], 4
      %s33 = int_to_ptr.vmem [resolvable:$true] %s32
      %38 = dma.hbm_to_vmem [thread:$0]  %s1, 2048, %s33, [#allocation7], 128, 128, 8
    $region9: #{tpu_custom_call.1} parent=1 // pred_fallthru
      _
    // Predicated region
    $region10: #{tpu_custom_call.1} parent=1 // pred_check
      _
    $region11: #{tpu_custom_call.1} parent=1 // pred_check_branch
      %40 = sbr.rel (0) target = $region13
    $region12: #{tpu_custom_call.1} parent=1 // pred_region
      %s42 = ssub.s32 2048, 2048
      %43 = vsyncadd [#allocation7], %s42
      %s44 = sshll.u32 [#allocation8], 4
      %s45 = int_to_ptr.vmem [resolvable:$true] %s44
      %50 = dma.hbm_to_vmem [thread:$0]  %s2, 2048, %s45, [#allocation7], 128, 128, 8
    $region13: #{tpu_custom_call.1} parent=1 // pred_fallthru
      _
    // Predicated region
    $region14: #{tpu_custom_call.1} parent=1 // pred_check
      _
    $region15: #{tpu_custom_call.1} parent=1 // pred_check_branch
      %52 = sbr.rel (0) target = $region17
    $region16: #{tpu_custom_call.1} parent=1 // pred_region
      _
    $region17: #{tpu_custom_call.1} parent=1 // pred_fallthru
      _
    // Predicated region
    $region18: #{tpu_custom_call.1} parent=1 // pred_check
      _
    $region19: #{tpu_custom_call.1} parent=1 // pred_check_branch
      %54 = sbr.rel (0) target = $region21
    $region20: #{tpu_custom_call.1} parent=1 // pred_region
      %s56 = ssub.s32 2048, 2048
      %57 = vsyncadd [#allocation10], %s56
      %s58 = sshll.u32 [#allocation9], 4
      %s59 = int_to_ptr.vmem [resolvable:$true] %s58
      %64 = dma.hbm_to_vmem [thread:$0]  %s4, 2048, %s59, [#allocation10], 128, 128, 8
    $region21: #{tpu_custom_call.1} parent=1 // pred_fallthru
      _
    // Predicated region
    $region22: #{tpu_custom_call.1} parent=1 // pred_check
      _
    $region23: #{tpu_custom_call.1} parent=1 // pred_check_branch
      %66 = sbr.rel (0) target = $region25
    $region24: #{tpu_custom_call.1} parent=1 // pred_region
      _
    $region25: #{tpu_custom_call.1} parent=1 // pred_fallthru
      _
    // Predicated region
    $region26: #{tpu_custom_call.1} parent=1 // pred_check
      _
    $region27: #{tpu_custom_call.1} parent=1 // pred_check_branch
      %68 = sbr.rel (0) target = $region29
    $region28: #{tpu_custom_call.1} parent=1 // pred_region
      %69 = dma.done [#allocation4], 14336
    $region29: #{tpu_custom_call.1} parent=1 // pred_fallthru
      _
    // Predicated region
    $region30: #{tpu_custom_call.1} parent=1 // pred_check
      _
    $region31: #{tpu_custom_call.1} parent=1 // pred_check_branch
      %71 = sbr.rel (0) target = $region33
    $region32: #{tpu_custom_call.1} parent=1 // pred_region
      %72 = dma.done [#allocation7], 2048
    $region33: #{tpu_custom_call.1} parent=1 // pred_fallthru
      _
    // Predicated region
    $region34: #{tpu_custom_call.1} parent=1 // pred_check
      _
    $region35: #{tpu_custom_call.1} parent=1 // pred_check_branch
      %74 = sbr.rel (0) target = $region37
    $region36: #{tpu_custom_call.1} parent=1 // pred_region
      %75 = dma.done [#allocation7], 2048
    $region37: #{tpu_custom_call.1} parent=1 // pred_fallthru
      _
    // Predicated region
    $region38: #{tpu_custom_call.1} parent=1 // pred_check
      _
    $region39: #{tpu_custom_call.1} parent=1 // pred_check_branch
      %77 = sbr.rel (0) target = $region41
    $region40: #{tpu_custom_call.1} parent=1 // pred_region
      %78 = dma.done [#allocation10], 2048
    $region41: #{tpu_custom_call.1} parent=1 // pred_fallthru
      _
    %v79 = vld [vmem:[#allocation3] sm:$0xff]
    %v80 = vld [vmem:[#allocation3 + $0x8] sm:$0xff]
    %v81 = vld [vmem:[#allocation3 + $0x10] sm:$0xff]
    %v82 = vld [vmem:[#allocation3 + $0x18] sm:$0xff]
    %v83 = vld [vmem:[#allocation3 + $0x20] sm:$0xff]
    %v84 = vld [vmem:[#allocation3 + $0x28] sm:$0xff]
    %v85 = vld [vmem:[#allocation3 + $0x30] sm:$0xff]
    %v86 = vld [vmem:[#allocation3 + $0x38] sm:$0xff]
    %v87 = vld [vmem:[#allocation3 + $0x40] sm:$0xff]
    %v88 = vld [vmem:[#allocation3 + $0x48] sm:$0xff]
    %v89 = vld [vmem:[#allocation3 + $0x50] sm:$0xff]
    %v90 = vld [vmem:[#allocation3 + $0x58] sm:$0xff]
    %v91 = vld [vmem:[#allocation3 + $0x60] sm:$0xff]
    %v92 = vld [vmem:[#allocation3 + $0x68] sm:$0xff]
    %v93 = vld [vmem:[#allocation3 + $0x70] sm:$0xff]
    %v94 = vld [vmem:[#allocation3 + $0x78] sm:$0xff]
    %v95 = vld [vmem:[#allocation3 + $0x80] sm:$0xff]
    %v96 = vld [vmem:[#allocation3 + $0x88] sm:$0xff]
    %v97 = vld [vmem:[#allocation3 + $0x90] sm:$0xff]
    %v98 = vld [vmem:[#allocation3 + $0x98] sm:$0xff]
    %v99 = vld [vmem:[#allocation3 + $0xa0] sm:$0xff]
    %v100 = vld [vmem:[#allocation3 + $0xa8] sm:$0xff]
    %v101 = vld [vmem:[#allocation3 + $0xb0] sm:$0xff]
    %v102 = vld [vmem:[#allocation3 + $0xb8] sm:$0xff]
    %v103 = vld [vmem:[#allocation3 + $0xc0] sm:$0xff]
    %v104 = vld [vmem:[#allocation3 + $0xc8] sm:$0xff]
    %v105 = vld [vmem:[#allocation3 + $0xd0] sm:$0xff]
    %v106 = vld [vmem:[#allocation3 + $0xd8] sm:$0xff]
    %v107 = vld [vmem:[#allocation3 + $0xe0] sm:$0xff]
    %v108 = vld [vmem:[#allocation3 + $0xe8] sm:$0xff]
    %v109 = vld [vmem:[#allocation3 + $0xf0] sm:$0xff]
    %v110 = vld [vmem:[#allocation3 + $0xf8] sm:$0xff]
    %v111 = vld [vmem:[#allocation3 + $0x100] sm:$0xff]
    %v112 = vld [vmem:[#allocation3 + $0x108] sm:$0xff]
    %v113 = vld [vmem:[#allocation3 + $0x110] sm:$0xff]
    %v114 = vld [vmem:[#allocation3 + $0x118] sm:$0xff]
    %v115 = vld [vmem:[#allocation3 + $0x120] sm:$0xff]
    %v116 = vld [vmem:[#allocation3 + $0x128] sm:$0xff]
    %v117 = vld [vmem:[#allocation3 + $0x130] sm:$0xff]
    %v118 = vld [vmem:[#allocation3 + $0x138] sm:$0xff]
    %v119 = vld [vmem:[#allocation3 + $0x140] sm:$0xff]
    %v120 = vld [vmem:[#allocation3 + $0x148] sm:$0xff]
    %v121 = vld [vmem:[#allocation3 + $0x150] sm:$0xff]
    %v122 = vld [vmem:[#allocation3 + $0x158] sm:$0xff]
    %v123 = vld [vmem:[#allocation3 + $0x160] sm:$0xff]
    %v124 = vld [vmem:[#allocation3 + $0x168] sm:$0xff]
    %v125 = vld [vmem:[#allocation3 + $0x170] sm:$0xff]
    %v126 = vld [vmem:[#allocation3 + $0x178] sm:$0xff]
    %v127 = vld [vmem:[#allocation3 + $0x180] sm:$0xff]
    %v128 = vld [vmem:[#allocation3 + $0x188] sm:$0xff]
    %v129 = vld [vmem:[#allocation3 + $0x190] sm:$0xff]
    %v130 = vld [vmem:[#allocation3 + $0x198] sm:$0xff]
    %v131 = vld [vmem:[#allocation3 + $0x1a0] sm:$0xff]
    %v132 = vld [vmem:[#allocation3 + $0x1a8] sm:$0xff]
    %v133 = vld [vmem:[#allocation3 + $0x1b0] sm:$0xff]
    %v134 = vld [vmem:[#allocation3 + $0x1b8] sm:$0xff]
    %v135 = vld [vmem:[#allocation3 + $0x1c0] sm:$0xff]
    %v136 = vld [vmem:[#allocation3 + $0x1c8] sm:$0xff]
    %v137 = vld [vmem:[#allocation3 + $0x1d0] sm:$0xff]
    %v138 = vld [vmem:[#allocation3 + $0x1d8] sm:$0xff]
    %v139 = vld [vmem:[#allocation3 + $0x1e0] sm:$0xff]
    %v140 = vld [vmem:[#allocation3 + $0x1e8] sm:$0xff]
    %v141 = vld [vmem:[#allocation3 + $0x1f0] sm:$0xff]
    %v142 = vld [vmem:[#allocation3 + $0x1f8] sm:$0xff]
    %v143 = vld [vmem:[#allocation3 + $0x200] sm:$0xff]
    %v144 = vld [vmem:[#allocation3 + $0x208] sm:$0xff]
    %v145 = vld [vmem:[#allocation3 + $0x210] sm:$0xff]
    %v146 = vld [vmem:[#allocation3 + $0x218] sm:$0xff]
    %v147 = vld [vmem:[#allocation3 + $0x220] sm:$0xff]
    %v148 = vld [vmem:[#allocation3 + $0x228] sm:$0xff]
    %v149 = vld [vmem:[#allocation3 + $0x230] sm:$0xff]
    %v150 = vld [vmem:[#allocation3 + $0x238] sm:$0xff]
    %v151 = vld [vmem:[#allocation3 + $0x240] sm:$0xff]
    %v152 = vld [vmem:[#allocation3 + $0x248] sm:$0xff]
    %v153 = vld [vmem:[#allocation3 + $0x250] sm:$0xff]
    %v154 = vld [vmem:[#allocation3 + $0x258] sm:$0xff]
    %v155 = vld [vmem:[#allocation3 + $0x260] sm:$0xff]
    %v156 = vld [vmem:[#allocation3 + $0x268] sm:$0xff]
    %v157 = vld [vmem:[#allocation3 + $0x270] sm:$0xff]
    %v158 = vld [vmem:[#allocation3 + $0x278] sm:$0xff]
    %v159 = vld [vmem:[#allocation3 + $0x280] sm:$0xff]
    %v160 = vld [vmem:[#allocation3 + $0x288] sm:$0xff]
    %v161 = vld [vmem:[#allocation3 + $0x290] sm:$0xff]
    %v162 = vld [vmem:[#allocation3 + $0x298] sm:$0xff]
    %v163 = vld [vmem:[#allocation3 + $0x2a0] sm:$0xff]
    %v164 = vld [vmem:[#allocation3 + $0x2a8] sm:$0xff]
    %v165 = vld [vmem:[#allocation3 + $0x2b0] sm:$0xff]
    %v166 = vld [vmem:[#allocation3 + $0x2b8] sm:$0xff]
    %v167 = vld [vmem:[#allocation3 + $0x2c0] sm:$0xff]
    %v168 = vld [vmem:[#allocation3 + $0x2c8] sm:$0xff]
    %v169 = vld [vmem:[#allocation3 + $0x2d0] sm:$0xff]
    %v170 = vld [vmem:[#allocation3 + $0x2d8] sm:$0xff]
    %v171 = vld [vmem:[#allocation3 + $0x2e0] sm:$0xff]
    %v172 = vld [vmem:[#allocation3 + $0x2e8] sm:$0xff]
    %v173 = vld [vmem:[#allocation3 + $0x2f0] sm:$0xff]
    %v174 = vld [vmem:[#allocation3 + $0x2f8] sm:$0xff]
    %v175 = vld [vmem:[#allocation3 + $0x300] sm:$0xff]
    %v176 = vld [vmem:[#allocation3 + $0x308] sm:$0xff]
    %v177 = vld [vmem:[#allocation3 + $0x310] sm:$0xff]
    %v178 = vld [vmem:[#allocation3 + $0x318] sm:$0xff]
    %v179 = vld [vmem:[#allocation3 + $0x320] sm:$0xff]
    %v180 = vld [vmem:[#allocation3 + $0x328] sm:$0xff]
    %v181 = vld [vmem:[#allocation3 + $0x330] sm:$0xff]
    %v182 = vld [vmem:[#allocation3 + $0x338] sm:$0xff]
    %v183 = vld [vmem:[#allocation3 + $0x340] sm:$0xff]
    %v184 = vld [vmem:[#allocation3 + $0x348] sm:$0xff]
    %v185 = vld [vmem:[#allocation3 + $0x350] sm:$0xff]
    %v186 = vld [vmem:[#allocation3 + $0x358] sm:$0xff]
    %v187 = vld [vmem:[#allocation3 + $0x360] sm:$0xff]
    %v188 = vld [vmem:[#allocation3 + $0x368] sm:$0xff]
    %v189 = vld [vmem:[#allocation3 + $0x370] sm:$0xff]
    %v190 = vld [vmem:[#allocation3 + $0x378] sm:$0xff]
    %v191 = vld [vmem:[#allocation6] sm:$0xff]
    %v192 = vld [vmem:[#allocation6 + $0x8] sm:$0xff]
    %v193 = vld [vmem:[#allocation6 + $0x10] sm:$0xff]
    %v194 = vld [vmem:[#allocation6 + $0x18] sm:$0xff]
    %v195 = vld [vmem:[#allocation6 + $0x20] sm:$0xff]
    %v196 = vld [vmem:[#allocation6 + $0x28] sm:$0xff]
    %v197 = vld [vmem:[#allocation6 + $0x30] sm:$0xff]
    %v198 = vld [vmem:[#allocation6 + $0x38] sm:$0xff]
    %v199 = vld [vmem:[#allocation6 + $0x40] sm:$0xff]
    %v200 = vld [vmem:[#allocation6 + $0x48] sm:$0xff]
    %v201 = vld [vmem:[#allocation6 + $0x50] sm:$0xff]
    %v202 = vld [vmem:[#allocation6 + $0x58] sm:$0xff]
    %v203 = vld [vmem:[#allocation6 + $0x60] sm:$0xff]
    %v204 = vld [vmem:[#allocation6 + $0x68] sm:$0xff]
    %v205 = vld [vmem:[#allocation6 + $0x70] sm:$0xff]
    %v206 = vld [vmem:[#allocation6 + $0x78] sm:$0xff]
    %v207 = vld [vmem:[%s3] sm:$0x1]
    %v209 = vlaneseq
    %v210 = vshrl.u32 %v209, 7
    %v211 = vsub.s32 0, %v210
    %v212 = vrot.slane %v207, %v211
    %214 = vmatprep.subr.mxu0 0.0
    %215 = vmatpush1.msra.mxu0 %v191
    %216 = vmatprep.subr.mxu0 0.0
    %217 = vmatpush1.msra.mxu0 %v192
    %218 = vmatprep.subr.mxu0 0.0
    %219 = vmatpush1.msra.mxu0 %v193
    %220 = vmatprep.subr.mxu0 0.0
    %221 = vmatpush1.msra.mxu0 %v194
    %222 = vmatprep.subr.mxu0 0.0
    %223 = vmatpush1.msra.mxu0 %v195
    %224 = vmatprep.subr.mxu0 0.0
    %225 = vmatpush1.msra.mxu0 %v196
    %226 = vmatprep.subr.mxu0 0.0
    %227 = vmatpush1.msra.mxu0 %v197
    %228 = vmatprep.subr.mxu0 0.0
    %229 = vmatpush1.msra.mxu0 %v198
    %230 = vmatprep.subr.mxu0 0.0
    %231 = vmatpush1.msra.mxu0 %v199
    %232 = vmatprep.subr.mxu0 0.0
    %233 = vmatpush1.msra.mxu0 %v200
    %234 = vmatprep.subr.mxu0 0.0
    %235 = vmatpush1.msra.mxu0 %v201
    %236 = vmatprep.subr.mxu0 0.0
    %237 = vmatpush1.msra.mxu0 %v202
    %238 = vmatprep.subr.mxu0 0.0
    %239 = vmatpush1.msra.mxu0 %v203
    %240 = vmatprep.subr.mxu0 0.0
    %241 = vmatpush1.msra.mxu0 %v204
    %242 = vmatprep.subr.mxu0 0.0
    %243 = vmatpush1.msra.mxu0 %v205
    %244 = vmatprep.subr.mxu0 0.0
    %245 = vmatpush1.msra.mxu0 %v206
    %246 = vmatprep.subr.mxu0 0.0
    %247 = vmatpush1.msra.mxu0 0.0
    %248 = vmatprep.subr.mxu0 0.0
    %249 = vmatpush1.msra.mxu0 0.0
    %250 = vmatprep.subr.mxu0 0.0
    %251 = vmatpush1.msra.mxu0 0.0
    %252 = vmatprep.subr.mxu0 0.0
    %253 = vmatpush1.msra.mxu0 0.0
    %254 = vmatprep.subr.mxu0 0.0
    %255 = vmatpush1.msra.mxu0 0.0
    %256 = vmatprep.subr.mxu0 0.0
    %257 = vmatpush1.msra.mxu0 0.0
    %258 = vmatprep.subr.mxu0 0.0
    %259 = vmatpush1.msra.mxu0 0.0
    %260 = vmatprep.subr.mxu0 0.0
    %261 = vmatpush1.msra.mxu0 0.0
    %262 = vmatprep.subr.mxu0 0.0
    %263 = vmatpush1.msra.mxu0 0.0
    %264 = vmatprep.subr.mxu0 0.0
    %265 = vmatpush1.msra.mxu0 0.0
    %266 = vmatprep.subr.mxu0 0.0
    %267 = vmatpush1.msra.mxu0 0.0
    %268 = vmatprep.subr.mxu0 0.0
    %269 = vmatpush1.msra.mxu0 0.0
    %270 = vmatprep.subr.mxu0 0.0
    %271 = vmatpush1.msra.mxu0 0.0
    %272 = vmatprep.subr.mxu0 0.0
    %273 = vmatpush1.msra.mxu0 0.0
    %274 = vmatprep.subr.mxu0 0.0
    %275 = vmatpush1.msra.mxu0 0.0
    %276 = vmatprep.subr.mxu0 0.0
    %277 = vmatpush1.msra.mxu0 0.0
    %278 = vmatprep.mubr.f32.mxu0 0.0
    %279 = vmatmul.mubr.f32.gmra.mrb[0].mxu0 %v79
    %v280 = vpop.f32.mrb[0].mxu0
    %v281 = vadd.f32 %v212, %v280
    %v282 = vpop.f32.mrb[0].mxu0
    %283 = vmatprep.mubr.f32.mxu0 0.0
    %284 = vmatmul.mubr.f32.gmra.mrb[0].mxu0 %v80
    %v285 = vpop.f32.mrb[0].mxu0
    %v286 = vadd.f32 %v212, %v285
    %v287 = vpop.f32.mrb[0].mxu0
    %288 = vmatprep.mubr.f32.mxu0 0.0
    %289 = vmatmul.mubr.f32.gmra.mrb[0].mxu0 %v81
    %v290 = vpop.f32.mrb[0].mxu0
    %v291 = vadd.f32 %v212, %v290
    %v292 = vpop.f32.mrb[0].mxu0
    %293 = vmatprep.mubr.f32.mxu0 0.0
    %294 = vmatmul.mubr.f32.gmra.mrb[0].mxu0 %v82
    %v295 = vpop.f32.mrb[0].mxu0
    %v296 = vadd.f32 %v212, %v295
    %v297 = vpop.f32.mrb[0].mxu0
    %298 = vmatprep.mubr.f32.mxu0 0.0
    %299 = vmatmul.mubr.f32.gmra.mrb[0].mxu0 %v83
    %v300 = vpop.f32.mrb[0].mxu0
    %v301 = vadd.f32 %v212, %v300
    %v302 = vpop.f32.mrb[0].mxu0
    %303 = vmatprep.mubr.f32.mxu0 0.0
    %304 = vmatmul.mubr.f32.gmra.mrb[0].mxu0 %v84
    %v305 = vpop.f32.mrb[0].mxu0
    %v306 = vadd.f32 %v212, %v305
    %v307 = vpop.f32.mrb[0].mxu0
    %308 = vmatprep.mubr.f32.mxu0 0.0
    %309 = vmatmul.mubr.f32.gmra.mrb[0].mxu0 %v85
    %v310 = vpop.f32.mrb[0].mxu0
    %v311 = vadd.f32 %v212, %v310
    %v312 = vpop.f32.mrb[0].mxu0
    %313 = vmatprep.mubr.f32.mxu0 0.0
    %314 = vmatmul.mubr.f32.gmra.mrb[0].mxu0 %v86
    %v315 = vpop.f32.mrb[0].mxu0
    %v316 = vadd.f32 %v212, %v315
    %v317 = vpop.f32.mrb[0].mxu0
    %318 = vmatprep.mubr.f32.mxu0 0.0
    %319 = vmatmul.mubr.f32.gmra.mrb[0].mxu0 %v87
    %v320 = vpop.f32.mrb[0].mxu0
    %v321 = vadd.f32 %v212, %v320
    %v322 = vpop.f32.mrb[0].mxu0
    %323 = vmatprep.mubr.f32.mxu0 0.0
    %324 = vmatmul.mubr.f32.gmra.mrb[0].mxu0 %v88
    %v325 = vpop.f32.mrb[0].mxu0
    %v326 = vadd.f32 %v212, %v325
    %v327 = vpop.f32.mrb[0].mxu0
    %328 = vmatprep.mubr.f32.mxu0 0.0
    %329 = vmatmul.mubr.f32.gmra.mrb[0].mxu0 %v89
    %v330 = vpop.f32.mrb[0].mxu0
    %v331 = vadd.f32 %v212, %v330
    %v332 = vpop.f32.mrb[0].mxu0
    %333 = vmatprep.mubr.f32.mxu0 0.0
    %334 = vmatmul.mubr.f32.gmra.mrb[0].mxu0 %v90
    %v335 = vpop.f32.mrb[0].mxu0
    %v336 = vadd.f32 %v212, %v335
    %v337 = vpop.f32.mrb[0].mxu0
    %338 = vmatprep.mubr.f32.mxu0 0.0
    %339 = vmatmul.mubr.f32.gmra.mrb[0].mxu0 %v91
    %v340 = vpop.f32.mrb[0].mxu0
    %v341 = vadd.f32 %v212, %v340
    %v342 = vpop.f32.mrb[0].mxu0
    %343 = vmatprep.mubr.f32.mxu0 0.0
    %344 = vmatmul.mubr.f32.gmra.mrb[0].mxu0 %v92
    %v345 = vpop.f32.mrb[0].mxu0
    %v346 = vadd.f32 %v212, %v345
    %v347 = vpop.f32.mrb[0].mxu0
    %348 = vmatprep.mubr.f32.mxu0 0.0
    %349 = vmatmul.mubr.f32.gmra.mrb[0].mxu0 %v93
    %v350 = vpop.f32.mrb[0].mxu0
    %v351 = vadd.f32 %v212, %v350
    %v352 = vpop.f32.mrb[0].mxu0
    %353 = vmatprep.mubr.f32.mxu0 0.0
    %354 = vmatmul.mubr.f32.gmra.mrb[0].mxu0 %v94
    %v355 = vpop.f32.mrb[0].mxu0
    %v356 = vadd.f32 %v212, %v355
    %v357 = vpop.f32.mrb[0].mxu0
    %358 = vmatprep.mubr.f32.mxu0 0.0
    %359 = vmatmul.mubr.f32.gmra.mrb[0].mxu0 %v95
    %v360 = vpop.f32.mrb[0].mxu0
    %v361 = vadd.f32 %v212, %v360
    %v362 = vpop.f32.mrb[0].mxu0
    %363 = vmatprep.mubr.f32.mxu0 0.0
    %364 = vmatmul.mubr.f32.gmra.mrb[0].mxu0 %v96
    %v365 = vpop.f32.mrb[0].mxu0
    %v366 = vadd.f32 %v212, %v365
    %v367 = vpop.f32.mrb[0].mxu0
    %368 = vmatprep.mubr.f32.mxu0 0.0
    %369 = vmatmul.mubr.f32.gmra.mrb[0].mxu0 %v97
    %v370 = vpop.f32.mrb[0].mxu0
    %v371 = vadd.f32 %v212, %v370
    %v372 = vpop.f32.mrb[0].mxu0
    %373 = vmatprep.mubr.f32.mxu0 0.0
    %374 = vmatmul.mubr.f32.gmra.mrb[0].mxu0 %v98
    %v375 = vpop.f32.mrb[0].mxu0
    %v376 = vadd.f32 %v212, %v375
    %v377 = vpop.f32.mrb[0].mxu0
    %378 = vmatprep.mubr.f32.mxu0 0.0
    %379 = vmatmul.mubr.f32.gmra.mrb[0].mxu0 %v99
    %v380 = vpop.f32.mrb[0].mxu0
    %v381 = vadd.f32 %v212, %v380
    %v382 = vpop.f32.mrb[0].mxu0
    %383 = vmatprep.mubr.f32.mxu0 0.0
    %384 = vmatmul.mubr.f32.gmra.mrb[0].mxu0 %v100
    %v385 = vpop.f32.mrb[0].mxu0
    %v386 = vadd.f32 %v212, %v385
    %v387 = vpop.f32.mrb[0].mxu0
    %388 = vmatprep.mubr.f32.mxu0 0.0
    %389 = vmatmul.mubr.f32.gmra.mrb[0].mxu0 %v101
    %v390 = vpop.f32.mrb[0].mxu0
    %v391 = vadd.f32 %v212, %v390
    %v392 = vpop.f32.mrb[0].mxu0
    %393 = vmatprep.mubr.f32.mxu0 0.0
    %394 = vmatmul.mubr.f32.gmra.mrb[0].mxu0 %v102
    %v395 = vpop.f32.mrb[0].mxu0
    %v396 = vadd.f32 %v212, %v395
    %v397 = vpop.f32.mrb[0].mxu0
    %398 = vmatprep.mubr.f32.mxu0 0.0
    %399 = vmatmul.mubr.f32.gmra.mrb[0].mxu0 %v103
    %v400 = vpop.f32.mrb[0].mxu0
    %v401 = vadd.f32 %v212, %v400
    %v402 = vpop.f32.mrb[0].mxu0
    %403 = vmatprep.mubr.f32.mxu0 0.0
    %404 = vmatmul.mubr.f32.gmra.mrb[0].mxu0 %v104
    %v405 = vpop.f32.mrb[0].mxu0
    %v406 = vadd.f32 %v212, %v405
    %v407 = vpop.f32.mrb[0].mxu0
    %408 = vmatprep.mubr.f32.mxu0 0.0
    %409 = vmatmul.mubr.f32.gmra.mrb[0].mxu0 %v105
    %v410 = vpop.f32.mrb[0].mxu0
    %v411 = vadd.f32 %v212, %v410
    %v412 = vpop.f32.mrb[0].mxu0
    %413 = vmatprep.mubr.f32.mxu0 0.0
    %414 = vmatmul.mubr.f32.gmra.mrb[0].mxu0 %v106
    %v415 = vpop.f32.mrb[0].mxu0
    %v416 = vadd.f32 %v212, %v415
    %v417 = vpop.f32.mrb[0].mxu0
    %418 = vmatprep.mubr.f32.mxu0 0.0
    %419 = vmatmul.mubr.f32.gmra.mrb[0].mxu0 %v107
    %v420 = vpop.f32.mrb[0].mxu0
    %v421 = vadd.f32 %v212, %v420
    %v422 = vpop.f32.mrb[0].mxu0
    %423 = vmatprep.mubr.f32.mxu0 0.0
    %424 = vmatmul.mubr.f32.gmra.mrb[0].mxu0 %v108
    %v425 = vpop.f32.mrb[0].mxu0
    %v426 = vadd.f32 %v212, %v425
    %v427 = vpop.f32.mrb[0].mxu0
    %428 = vmatprep.mubr.f32.mxu0 0.0
    %429 = vmatmul.mubr.f32.gmra.mrb[0].mxu0 %v109
    %v430 = vpop.f32.mrb[0].mxu0
    %v431 = vadd.f32 %v212, %v430
    %v432 = vpop.f32.mrb[0].mxu0
    %433 = vmatprep.mubr.f32.mxu0 0.0
    %434 = vmatmul.mubr.f32.gmra.mrb[0].mxu0 %v110
    %v435 = vpop.f32.mrb[0].mxu0
    %v436 = vadd.f32 %v212, %v435
    %v437 = vpop.f32.mrb[0].mxu0
    %438 = vmatprep.mubr.f32.mxu0 0.0
    %439 = vmatmul.mubr.f32.gmra.mrb[0].mxu0 %v111
    %v440 = vpop.f32.mrb[0].mxu0
    %v441 = vadd.f32 %v212, %v440
    %v442 = vpop.f32.mrb[0].mxu0
    %443 = vmatprep.mubr.f32.mxu0 0.0
    %444 = vmatmul.mubr.f32.gmra.mrb[0].mxu0 %v112
    %v445 = vpop.f32.mrb[0].mxu0
    %v446 = vadd.f32 %v212, %v445
    %v447 = vpop.f32.mrb[0].mxu0
    %448 = vmatprep.mubr.f32.mxu0 0.0
    %449 = vmatmul.mubr.f32.gmra.mrb[0].mxu0 %v113
    %v450 = vpop.f32.mrb[0].mxu0
    %v451 = vadd.f32 %v212, %v450
    %v452 = vpop.f32.mrb[0].mxu0
    %453 = vmatprep.mubr.f32.mxu0 0.0
    %454 = vmatmul.mubr.f32.gmra.mrb[0].mxu0 %v114
    %v455 = vpop.f32.mrb[0].mxu0
    %v456 = vadd.f32 %v212, %v455
    %v457 = vpop.f32.mrb[0].mxu0
    %458 = vmatprep.mubr.f32.mxu0 0.0
    %459 = vmatmul.mubr.f32.gmra.mrb[0].mxu0 %v115
    %v460 = vpop.f32.mrb[0].mxu0
    %v461 = vadd.f32 %v212, %v460
    %v462 = vpop.f32.mrb[0].mxu0
    %463 = vmatprep.mubr.f32.mxu0 0.0
    %464 = vmatmul.mubr.f32.gmra.mrb[0].mxu0 %v116
    %v465 = vpop.f32.mrb[0].mxu0
    %v466 = vadd.f32 %v212, %v465
    %v467 = vpop.f32.mrb[0].mxu0
    %468 = vmatprep.mubr.f32.mxu0 0.0
    %469 = vmatmul.mubr.f32.gmra.mrb[0].mxu0 %v117
    %v470 = vpop.f32.mrb[0].mxu0
    %v471 = vadd.f32 %v212, %v470
    %v472 = vpop.f32.mrb[0].mxu0
    %473 = vmatprep.mubr.f32.mxu0 0.0
    %474 = vmatmul.mubr.f32.gmra.mrb[0].mxu0 %v118
    %v475 = vpop.f32.mrb[0].mxu0
    %v476 = vadd.f32 %v212, %v475
    %v477 = vpop.f32.mrb[0].mxu0
    %478 = vmatprep.mubr.f32.mxu0 0.0
    %479 = vmatmul.mubr.f32.gmra.mrb[0].mxu0 %v119
    %v480 = vpop.f32.mrb[0].mxu0
    %v481 = vadd.f32 %v212, %v480
    %v482 = vpop.f32.mrb[0].mxu0
    %483 = vmatprep.mubr.f32.mxu0 0.0
    %484 = vmatmul.mubr.f32.gmra.mrb[0].mxu0 %v120
    %v485 = vpop.f32.mrb[0].mxu0
    %v486 = vadd.f32 %v212, %v485
    %v487 = vpop.f32.mrb[0].mxu0
    %488 = vmatprep.mubr.f32.mxu0 0.0
    %489 = vmatmul.mubr.f32.gmra.mrb[0].mxu0 %v121
    %v490 = vpop.f32.mrb[0].mxu0
    %v491 = vadd.f32 %v212, %v490
    %v492 = vpop.f32.mrb[0].mxu0
    %493 = vmatprep.mubr.f32.mxu0 0.0
    %494 = vmatmul.mubr.f32.gmra.mrb[0].mxu0 %v122
    %v495 = vpop.f32.mrb[0].mxu0
    %v496 = vadd.f32 %v212, %v495
    %v497 = vpop.f32.mrb[0].mxu0
    %498 = vmatprep.mubr.f32.mxu0 0.0
    %499 = vmatmul.mubr.f32.gmra.mrb[0].mxu0 %v123
    %v500 = vpop.f32.mrb[0].mxu0
    %v501 = vadd.f32 %v212, %v500
    %v502 = vpop.f32.mrb[0].mxu0
    %503 = vmatprep.mubr.f32.mxu0 0.0
    %504 = vmatmul.mubr.f32.gmra.mrb[0].mxu0 %v124
    %v505 = vpop.f32.mrb[0].mxu0
    %v506 = vadd.f32 %v212, %v505
    %v507 = vpop.f32.mrb[0].mxu0
    %508 = vmatprep.mubr.f32.mxu0 0.0
    %509 = vmatmul.mubr.f32.gmra.mrb[0].mxu0 %v125
    %v510 = vpop.f32.mrb[0].mxu0
    %v511 = vadd.f32 %v212, %v510
    %v512 = vpop.f32.mrb[0].mxu0
    %513 = vmatprep.mubr.f32.mxu0 0.0
    %514 = vmatmul.mubr.f32.gmra.mrb[0].mxu0 %v126
    %v515 = vpop.f32.mrb[0].mxu0
    %v516 = vadd.f32 %v212, %v515
    %v517 = vpop.f32.mrb[0].mxu0
    %518 = vmatprep.mubr.f32.mxu0 0.0
    %519 = vmatmul.mubr.f32.gmra.mrb[0].mxu0 %v127
    %v520 = vpop.f32.mrb[0].mxu0
    %v521 = vadd.f32 %v212, %v520
    %v522 = vpop.f32.mrb[0].mxu0
    %523 = vmatprep.mubr.f32.mxu0 0.0
    %524 = vmatmul.mubr.f32.gmra.mrb[0].mxu0 %v128
    %v525 = vpop.f32.mrb[0].mxu0
    %v526 = vadd.f32 %v212, %v525
    %v527 = vpop.f32.mrb[0].mxu0
    %528 = vmatprep.mubr.f32.mxu0 0.0
    %529 = vmatmul.mubr.f32.gmra.mrb[0].mxu0 %v129
    %v530 = vpop.f32.mrb[0].mxu0
    %v531 = vadd.f32 %v212, %v530
    %v532 = vpop.f32.mrb[0].mxu0
    %533 = vmatprep.mubr.f32.mxu0 0.0
    %534 = vmatmul.mubr.f32.gmra.mrb[0].mxu0 %v130
    %v535 = vpop.f32.mrb[0].mxu0
    %v536 = vadd.f32 %v212, %v535
    %v537 = vpop.f32.mrb[0].mxu0
    %538 = vmatprep.mubr.f32.mxu0 0.0
    %539 = vmatmul.mubr.f32.gmra.mrb[0].mxu0 %v131
    %v540 = vpop.f32.mrb[0].mxu0
    %v541 = vadd.f32 %v212, %v540
    %v542 = vpop.f32.mrb[0].mxu0
    %543 = vmatprep.mubr.f32.mxu0 0.0
    %544 = vmatmul.mubr.f32.gmra.mrb[0].mxu0 %v132
    %v545 = vpop.f32.mrb[0].mxu0
    %v546 = vadd.f32 %v212, %v545
    %v547 = vpop.f32.mrb[0].mxu0
    %548 = vmatprep.mubr.f32.mxu0 0.0
    %549 = vmatmul.mubr.f32.gmra.mrb[0].mxu0 %v133
    %v550 = vpop.f32.mrb[0].mxu0
    %v551 = vadd.f32 %v212, %v550
    %v552 = vpop.f32.mrb[0].mxu0
    %553 = vmatprep.mubr.f32.mxu0 0.0
    %554 = vmatmul.mubr.f32.gmra.mrb[0].mxu0 %v134
    %v555 = vpop.f32.mrb[0].mxu0
    %v556 = vadd.f32 %v212, %v555
    %v557 = vpop.f32.mrb[0].mxu0
    %558 = vmatprep.mubr.f32.mxu0 0.0
    %559 = vmatmul.mubr.f32.gmra.mrb[0].mxu0 %v135
    %v560 = vpop.f32.mrb[0].mxu0
    %v561 = vadd.f32 %v212, %v560
    %v562 = vpop.f32.mrb[0].mxu0
    %563 = vmatprep.mubr.f32.mxu0 0.0
    %564 = vmatmul.mubr.f32.gmra.mrb[0].mxu0 %v136
    %v565 = vpop.f32.mrb[0].mxu0
    %v566 = vadd.f32 %v212, %v565
    %v567 = vpop.f32.mrb[0].mxu0
    %568 = vmatprep.mubr.f32.mxu0 0.0
    %569 = vmatmul.mubr.f32.gmra.mrb[0].mxu0 %v137
    %v570 = vpop.f32.mrb[0].mxu0
    %v571 = vadd.f32 %v212, %v570
    %v572 = vpop.f32.mrb[0].mxu0
    %573 = vmatprep.mubr.f32.mxu0 0.0
    %574 = vmatmul.mubr.f32.gmra.mrb[0].mxu0 %v138
    %v575 = vpop.f32.mrb[0].mxu0
    %v576 = vadd.f32 %v212, %v575
    %v577 = vpop.f32.mrb[0].mxu0
    %578 = vmatprep.mubr.f32.mxu0 0.0
    %579 = vmatmul.mubr.f32.gmra.mrb[0].mxu0 %v139
    %v580 = vpop.f32.mrb[0].mxu0
    %v581 = vadd.f32 %v212, %v580
    %v582 = vpop.f32.mrb[0].mxu0
    %583 = vmatprep.mubr.f32.mxu0 0.0
    %584 = vmatmul.mubr.f32.gmra.mrb[0].mxu0 %v140
    %v585 = vpop.f32.mrb[0].mxu0
    %v586 = vadd.f32 %v212, %v585
    %v587 = vpop.f32.mrb[0].mxu0
    %588 = vmatprep.mubr.f32.mxu0 0.0
    %589 = vmatmul.mubr.f32.gmra.mrb[0].mxu0 %v141
    %v590 = vpop.f32.mrb[0].mxu0
    %v591 = vadd.f32 %v212, %v590
    %v592 = vpop.f32.mrb[0].mxu0
    %593 = vmatprep.mubr.f32.mxu0 0.0
    %594 = vmatmul.mubr.f32.gmra.mrb[0].mxu0 %v142
    %v595 = vpop.f32.mrb[0].mxu0
    %v596 = vadd.f32 %v212, %v595
    %v597 = vpop.f32.mrb[0].mxu0
    %598 = vmatprep.mubr.f32.mxu0 0.0
    %599 = vmatmul.mubr.f32.gmra.mrb[0].mxu0 %v143
    %v600 = vpop.f32.mrb[0].mxu0
    %v601 = vadd.f32 %v212, %v600
    %v602 = vpop.f32.mrb[0].mxu0
    %603 = vmatprep.mubr.f32.mxu0 0.0
    %604 = vmatmul.mubr.f32.gmra.mrb[0].mxu0 %v144
    %v605 = vpop.f32.mrb[0].mxu0
    %v606 = vadd.f32 %v212, %v605
    %v607 = vpop.f32.mrb[0].mxu0
    %608 = vmatprep.mubr.f32.mxu0 0.0
    %609 = vmatmul.mubr.f32.gmra.mrb[0].mxu0 %v145
    %v610 = vpop.f32.mrb[0].mxu0
    %v611 = vadd.f32 %v212, %v610
    %v612 = vpop.f32.mrb[0].mxu0
    %613 = vmatprep.mubr.f32.mxu0 0.0
    %614 = vmatmul.mubr.f32.gmra.mrb[0].mxu0 %v146
    %v615 = vpop.f32.mrb[0].mxu0
    %v616 = vadd.f32 %v212, %v615
    %v617 = vpop.f32.mrb[0].mxu0
    %618 = vmatprep.mubr.f32.mxu0 0.0
    %619 = vmatmul.mubr.f32.gmra.mrb[0].mxu0 %v147
    %v620 = vpop.f32.mrb[0].mxu0
    %v621 = vadd.f32 %v212, %v620
    %v622 = vpop.f32.mrb[0].mxu0
    %623 = vmatprep.mubr.f32.mxu0 0.0
    %624 = vmatmul.mubr.f32.gmra.mrb[0].mxu0 %v148
    %v625 = vpop.f32.mrb[0].mxu0
    %v626 = vadd.f32 %v212, %v625
    %v627 = vpop.f32.mrb[0].mxu0
    %628 = vmatprep.mubr.f32.mxu0 0.0
    %629 = vmatmul.mubr.f32.gmra.mrb[0].mxu0 %v149
    %v630 = vpop.f32.mrb[0].mxu0
    %v631 = vadd.f32 %v212, %v630
    %v632 = vpop.f32.mrb[0].mxu0
    %633 = vmatprep.mubr.f32.mxu0 0.0
    %634 = vmatmul.mubr.f32.gmra.mrb[0].mxu0 %v150
    %v635 = vpop.f32.mrb[0].mxu0
    %v636 = vadd.f32 %v212, %v635
    %v637 = vpop.f32.mrb[0].mxu0
    %638 = vmatprep.mubr.f32.mxu0 0.0
    %639 = vmatmul.mubr.f32.gmra.mrb[0].mxu0 %v151
    %v640 = vpop.f32.mrb[0].mxu0
    %v641 = vadd.f32 %v212, %v640
    %v642 = vpop.f32.mrb[0].mxu0
    %643 = vmatprep.mubr.f32.mxu0 0.0
    %644 = vmatmul.mubr.f32.gmra.mrb[0].mxu0 %v152
    %v645 = vpop.f32.mrb[0].mxu0
    %v646 = vadd.f32 %v212, %v645
    %v647 = vpop.f32.mrb[0].mxu0
    %648 = vmatprep.mubr.f32.mxu0 0.0
    %649 = vmatmul.mubr.f32.gmra.mrb[0].mxu0 %v153
    %v650 = vpop.f32.mrb[0].mxu0
    %v651 = vadd.f32 %v212, %v650
    %v652 = vpop.f32.mrb[0].mxu0
    %653 = vmatprep.mubr.f32.mxu0 0.0
    %654 = vmatmul.mubr.f32.gmra.mrb[0].mxu0 %v154
    %v655 = vpop.f32.mrb[0].mxu0
    %v656 = vadd.f32 %v212, %v655
    %v657 = vpop.f32.mrb[0].mxu0
    %658 = vmatprep.mubr.f32.mxu0 0.0
    %659 = vmatmul.mubr.f32.gmra.mrb[0].mxu0 %v155
    %v660 = vpop.f32.mrb[0].mxu0
    %v661 = vadd.f32 %v212, %v660
    %v662 = vpop.f32.mrb[0].mxu0
    %663 = vmatprep.mubr.f32.mxu0 0.0
    %664 = vmatmul.mubr.f32.gmra.mrb[0].mxu0 %v156
    %v665 = vpop.f32.mrb[0].mxu0
    %v666 = vadd.f32 %v212, %v665
    %v667 = vpop.f32.mrb[0].mxu0
    %668 = vmatprep.mubr.f32.mxu0 0.0
    %669 = vmatmul.mubr.f32.gmra.mrb[0].mxu0 %v157
    %v670 = vpop.f32.mrb[0].mxu0
    %v671 = vadd.f32 %v212, %v670
    %v672 = vpop.f32.mrb[0].mxu0
    %673 = vmatprep.mubr.f32.mxu0 0.0
    %674 = vmatmul.mubr.f32.gmra.mrb[0].mxu0 %v158
    %v675 = vpop.f32.mrb[0].mxu0
    %v676 = vadd.f32 %v212, %v675
    %v677 = vpop.f32.mrb[0].mxu0
    %678 = vmatprep.mubr.f32.mxu0 0.0
    %679 = vmatmul.mubr.f32.gmra.mrb[0].mxu0 %v159
    %v680 = vpop.f32.mrb[0].mxu0
    %v681 = vadd.f32 %v212, %v680
    %v682 = vpop.f32.mrb[0].mxu0
    %683 = vmatprep.mubr.f32.mxu0 0.0
    %684 = vmatmul.mubr.f32.gmra.mrb[0].mxu0 %v160
    %v685 = vpop.f32.mrb[0].mxu0
    %v686 = vadd.f32 %v212, %v685
    %v687 = vpop.f32.mrb[0].mxu0
    %688 = vmatprep.mubr.f32.mxu0 0.0
    %689 = vmatmul.mubr.f32.gmra.mrb[0].mxu0 %v161
    %v690 = vpop.f32.mrb[0].mxu0
    %v691 = vadd.f32 %v212, %v690
    %v692 = vpop.f32.mrb[0].mxu0
    %693 = vmatprep.mubr.f32.mxu0 0.0
    %694 = vmatmul.mubr.f32.gmra.mrb[0].mxu0 %v162
    %v695 = vpop.f32.mrb[0].mxu0
    %v696 = vadd.f32 %v212, %v695
    %v697 = vpop.f32.mrb[0].mxu0
    %698 = vmatprep.mubr.f32.mxu0 0.0
    %699 = vmatmul.mubr.f32.gmra.mrb[0].mxu0 %v163
    %v700 = vpop.f32.mrb[0].mxu0
    %v701 = vadd.f32 %v212, %v700
    %v702 = vpop.f32.mrb[0].mxu0
    %703 = vmatprep.mubr.f32.mxu0 0.0
    %704 = vmatmul.mubr.f32.gmra.mrb[0].mxu0 %v164
    %v705 = vpop.f32.mrb[0].mxu0
    %v706 = vadd.f32 %v212, %v705
    %v707 = vpop.f32.mrb[0].mxu0
    %708 = vmatprep.mubr.f32.mxu0 0.0
    %709 = vmatmul.mubr.f32.gmra.mrb[0].mxu0 %v165
    %v710 = vpop.f32.mrb[0].mxu0
    %v711 = vadd.f32 %v212, %v710
    %v712 = vpop.f32.mrb[0].mxu0
    %713 = vmatprep.mubr.f32.mxu0 0.0
    %714 = vmatmul.mubr.f32.gmra.mrb[0].mxu0 %v166
    %v715 = vpop.f32.mrb[0].mxu0
    %v716 = vadd.f32 %v212, %v715
    %v717 = vpop.f32.mrb[0].mxu0
    %718 = vmatprep.mubr.f32.mxu0 0.0
    %719 = vmatmul.mubr.f32.gmra.mrb[0].mxu0 %v167
    %v720 = vpop.f32.mrb[0].mxu0
    %v721 = vadd.f32 %v212, %v720
    %v722 = vpop.f32.mrb[0].mxu0
    %723 = vmatprep.mubr.f32.mxu0 0.0
    %724 = vmatmul.mubr.f32.gmra.mrb[0].mxu0 %v168
    %v725 = vpop.f32.mrb[0].mxu0
    %v726 = vadd.f32 %v212, %v725
    %v727 = vpop.f32.mrb[0].mxu0
    %728 = vmatprep.mubr.f32.mxu0 0.0
    %729 = vmatmul.mubr.f32.gmra.mrb[0].mxu0 %v169
    %v730 = vpop.f32.mrb[0].mxu0
    %v731 = vadd.f32 %v212, %v730
    %v732 = vpop.f32.mrb[0].mxu0
    %733 = vmatprep.mubr.f32.mxu0 0.0
    %734 = vmatmul.mubr.f32.gmra.mrb[0].mxu0 %v170
    %v735 = vpop.f32.mrb[0].mxu0
    %v736 = vadd.f32 %v212, %v735
    %v737 = vpop.f32.mrb[0].mxu0
    %738 = vmatprep.mubr.f32.mxu0 0.0
    %739 = vmatmul.mubr.f32.gmra.mrb[0].mxu0 %v171
    %v740 = vpop.f32.mrb[0].mxu0
    %v741 = vadd.f32 %v212, %v740
    %v742 = vpop.f32.mrb[0].mxu0
    %743 = vmatprep.mubr.f32.mxu0 0.0
    %744 = vmatmul.mubr.f32.gmra.mrb[0].mxu0 %v172
    %v745 = vpop.f32.mrb[0].mxu0
    %v746 = vadd.f32 %v212, %v745
    %v747 = vpop.f32.mrb[0].mxu0
    %748 = vmatprep.mubr.f32.mxu0 0.0
    %749 = vmatmul.mubr.f32.gmra.mrb[0].mxu0 %v173
    %v750 = vpop.f32.mrb[0].mxu0
    %v751 = vadd.f32 %v212, %v750
    %v752 = vpop.f32.mrb[0].mxu0
    %753 = vmatprep.mubr.f32.mxu0 0.0
    %754 = vmatmul.mubr.f32.gmra.mrb[0].mxu0 %v174
    %v755 = vpop.f32.mrb[0].mxu0
    %v756 = vadd.f32 %v212, %v755
    %v757 = vpop.f32.mrb[0].mxu0
    %758 = vmatprep.mubr.f32.mxu0 0.0
    %759 = vmatmul.mubr.f32.gmra.mrb[0].mxu0 %v175
    %v760 = vpop.f32.mrb[0].mxu0
    %v761 = vadd.f32 %v212, %v760
    %v762 = vpop.f32.mrb[0].mxu0
    %763 = vmatprep.mubr.f32.mxu0 0.0
    %764 = vmatmul.mubr.f32.gmra.mrb[0].mxu0 %v176
    %v765 = vpop.f32.mrb[0].mxu0
    %v766 = vadd.f32 %v212, %v765
    %v767 = vpop.f32.mrb[0].mxu0
    %768 = vmatprep.mubr.f32.mxu0 0.0
    %769 = vmatmul.mubr.f32.gmra.mrb[0].mxu0 %v177
    %v770 = vpop.f32.mrb[0].mxu0
    %v771 = vadd.f32 %v212, %v770
    %v772 = vpop.f32.mrb[0].mxu0
    %773 = vmatprep.mubr.f32.mxu0 0.0
    %774 = vmatmul.mubr.f32.gmra.mrb[0].mxu0 %v178
    %v775 = vpop.f32.mrb[0].mxu0
    %v776 = vadd.f32 %v212, %v775
    %v777 = vpop.f32.mrb[0].mxu0
    %778 = vmatprep.mubr.f32.mxu0 0.0
    %779 = vmatmul.mubr.f32.gmra.mrb[0].mxu0 %v179
    %v780 = vpop.f32.mrb[0].mxu0
    %v781 = vadd.f32 %v212, %v780
    %v782 = vpop.f32.mrb[0].mxu0
    %783 = vmatprep.mubr.f32.mxu0 0.0
    %784 = vmatmul.mubr.f32.gmra.mrb[0].mxu0 %v180
    %v785 = vpop.f32.mrb[0].mxu0
    %v786 = vadd.f32 %v212, %v785
    %v787 = vpop.f32.mrb[0].mxu0
    %788 = vmatprep.mubr.f32.mxu0 0.0
    %789 = vmatmul.mubr.f32.gmra.mrb[0].mxu0 %v181
    %v790 = vpop.f32.mrb[0].mxu0
    %v791 = vadd.f32 %v212, %v790
    %v792 = vpop.f32.mrb[0].mxu0
    %793 = vmatprep.mubr.f32.mxu0 0.0
    %794 = vmatmul.mubr.f32.gmra.mrb[0].mxu0 %v182
    %v795 = vpop.f32.mrb[0].mxu0
    %v796 = vadd.f32 %v212, %v795
    %v797 = vpop.f32.mrb[0].mxu0
    %798 = vmatprep.mubr.f32.mxu0 0.0
    %799 = vmatmul.mubr.f32.gmra.mrb[0].mxu0 %v183
    %v800 = vpop.f32.mrb[0].mxu0
    %v801 = vadd.f32 %v212, %v800
    %v802 = vpop.f32.mrb[0].mxu0
    %803 = vmatprep.mubr.f32.mxu0 0.0
    %804 = vmatmul.mubr.f32.gmra.mrb[0].mxu0 %v184
    %v805 = vpop.f32.mrb[0].mxu0
    %v806 = vadd.f32 %v212, %v805
    %v807 = vpop.f32.mrb[0].mxu0
    %808 = vmatprep.mubr.f32.mxu0 0.0
    %809 = vmatmul.mubr.f32.gmra.mrb[0].mxu0 %v185
    %v810 = vpop.f32.mrb[0].mxu0
    %v811 = vadd.f32 %v212, %v810
    %v812 = vpop.f32.mrb[0].mxu0
    %813 = vmatprep.mubr.f32.mxu0 0.0
    %814 = vmatmul.mubr.f32.gmra.mrb[0].mxu0 %v186
    %v815 = vpop.f32.mrb[0].mxu0
    %v816 = vadd.f32 %v212, %v815
    %v817 = vpop.f32.mrb[0].mxu0
    %818 = vmatprep.mubr.f32.mxu0 0.0
    %819 = vmatmul.mubr.f32.gmra.mrb[0].mxu0 %v187
    %v820 = vpop.f32.mrb[0].mxu0
    %v821 = vadd.f32 %v212, %v820
    %v822 = vpop.f32.mrb[0].mxu0
    %823 = vmatprep.mubr.f32.mxu0 0.0
    %824 = vmatmul.mubr.f32.gmra.mrb[0].mxu0 %v188
    %v825 = vpop.f32.mrb[0].mxu0
    %v826 = vadd.f32 %v212, %v825
    %v827 = vpop.f32.mrb[0].mxu0
    %828 = vmatprep.mubr.f32.mxu0 0.0
    %829 = vmatmul.mubr.f32.gmra.mrb[0].mxu0 %v189
    %v830 = vpop.f32.mrb[0].mxu0
    %v831 = vadd.f32 %v212, %v830
    %v832 = vpop.f32.mrb[0].mxu0
    %833 = vmatprep.mubr.f32.mxu0 0.0
    %834 = vmatmul.mubr.f32.gmra.mrb[0].mxu0 %v190
    %v835 = vpop.f32.mrb[0].mxu0
    %v836 = vadd.f32 %v212, %v835
    %v837 = vpop.f32.mrb[0].mxu0
    %838 = vdwg.mxu0
    %839 = vst [vmem:[#allocation2] sm:$0xff] %v281
    %840 = vst [vmem:[#allocation2 + $0x8] sm:$0xff] %v286
    %841 = vst [vmem:[#allocation2 + $0x10] sm:$0xff] %v291
    %842 = vst [vmem:[#allocation2 + $0x18] sm:$0xff] %v296
    %843 = vst [vmem:[#allocation2 + $0x20] sm:$0xff] %v301
    %844 = vst [vmem:[#allocation2 + $0x28] sm:$0xff] %v306
    %845 = vst [vmem:[#allocation2 + $0x30] sm:$0xff] %v311
    %846 = vst [vmem:[#allocation2 + $0x38] sm:$0xff] %v316
    %847 = vst [vmem:[#allocation2 + $0x40] sm:$0xff] %v321
    %848 = vst [vmem:[#allocation2 + $0x48] sm:$0xff] %v326
    %849 = vst [vmem:[#allocation2 + $0x50] sm:$0xff] %v331
    %850 = vst [vmem:[#allocation2 + $0x58] sm:$0xff] %v336
    %851 = vst [vmem:[#allocation2 + $0x60] sm:$0xff] %v341
    %852 = vst [vmem:[#allocation2 + $0x68] sm:$0xff] %v346
    %853 = vst [vmem:[#allocation2 + $0x70] sm:$0xff] %v351
    %854 = vst [vmem:[#allocation2 + $0x78] sm:$0xff] %v356
    %855 = vst [vmem:[#allocation2 + $0x80] sm:$0xff] %v361
    %856 = vst [vmem:[#allocation2 + $0x88] sm:$0xff] %v366
    %857 = vst [vmem:[#allocation2 + $0x90] sm:$0xff] %v371
    %858 = vst [vmem:[#allocation2 + $0x98] sm:$0xff] %v376
    %859 = vst [vmem:[#allocation2 + $0xa0] sm:$0xff] %v381
    %860 = vst [vmem:[#allocation2 + $0xa8] sm:$0xff] %v386
    %861 = vst [vmem:[#allocation2 + $0xb0] sm:$0xff] %v391
    %862 = vst [vmem:[#allocation2 + $0xb8] sm:$0xff] %v396
    %863 = vst [vmem:[#allocation2 + $0xc0] sm:$0xff] %v401
    %864 = vst [vmem:[#allocation2 + $0xc8] sm:$0xff] %v406
    %865 = vst [vmem:[#allocation2 + $0xd0] sm:$0xff] %v411
    %866 = vst [vmem:[#allocation2 + $0xd8] sm:$0xff] %v416
    %867 = vst [vmem:[#allocation2 + $0xe0] sm:$0xff] %v421
    %868 = vst [vmem:[#allocation2 + $0xe8] sm:$0xff] %v426
    %869 = vst [vmem:[#allocation2 + $0xf0] sm:$0xff] %v431
    %870 = vst [vmem:[#allocation2 + $0xf8] sm:$0xff] %v436
    %871 = vst [vmem:[#allocation2 + $0x100] sm:$0xff] %v441
    %872 = vst [vmem:[#allocation2 + $0x108] sm:$0xff] %v446
    %873 = vst [vmem:[#allocation2 + $0x110] sm:$0xff] %v451
    %874 = vst [vmem:[#allocation2 + $0x118] sm:$0xff] %v456
    %875 = vst [vmem:[#allocation2 + $0x120] sm:$0xff] %v461
    %876 = vst [vmem:[#allocation2 + $0x128] sm:$0xff] %v466
    %877 = vst [vmem:[#allocation2 + $0x130] sm:$0xff] %v471
    %878 = vst [vmem:[#allocation2 + $0x138] sm:$0xff] %v476
    %879 = vst [vmem:[#allocation2 + $0x140] sm:$0xff] %v481
    %880 = vst [vmem:[#allocation2 + $0x148] sm:$0xff] %v486
    %881 = vst [vmem:[#allocation2 + $0x150] sm:$0xff] %v491
    %882 = vst [vmem:[#allocation2 + $0x158] sm:$0xff] %v496
    %883 = vst [vmem:[#allocation2 + $0x160] sm:$0xff] %v501
    %884 = vst [vmem:[#allocation2 + $0x168] sm:$0xff] %v506
    %885 = vst [vmem:[#allocation2 + $0x170] sm:$0xff] %v511
    %886 = vst [vmem:[#allocation2 + $0x178] sm:$0xff] %v516
    %887 = vst [vmem:[#allocation2 + $0x180] sm:$0xff] %v521
    %888 = vst [vmem:[#allocation2 + $0x188] sm:$0xff] %v526
    %889 = vst [vmem:[#allocation2 + $0x190] sm:$0xff] %v531
    %890 = vst [vmem:[#allocation2 + $0x198] sm:$0xff] %v536
    %891 = vst [vmem:[#allocation2 + $0x1a0] sm:$0xff] %v541
    %892 = vst [vmem:[#allocation2 + $0x1a8] sm:$0xff] %v546
    %893 = vst [vmem:[#allocation2 + $0x1b0] sm:$0xff] %v551
    %894 = vst [vmem:[#allocation2 + $0x1b8] sm:$0xff] %v556
    %895 = vst [vmem:[#allocation2 + $0x1c0] sm:$0xff] %v561
    %896 = vst [vmem:[#allocation2 + $0x1c8] sm:$0xff] %v566
    %897 = vst [vmem:[#allocation2 + $0x1d0] sm:$0xff] %v571
    %898 = vst [vmem:[#allocation2 + $0x1d8] sm:$0xff] %v576
    %899 = vst [vmem:[#allocation2 + $0x1e0] sm:$0xff] %v581
    %900 = vst [vmem:[#allocation2 + $0x1e8] sm:$0xff] %v586
    %901 = vst [vmem:[#allocation2 + $0x1f0] sm:$0xff] %v591
    %902 = vst [vmem:[#allocation2 + $0x1f8] sm:$0xff] %v596
    %903 = vst [vmem:[#allocation2 + $0x200] sm:$0xff] %v601
    %904 = vst [vmem:[#allocation2 + $0x208] sm:$0xff] %v606
    %905 = vst [vmem:[#allocation2 + $0x210] sm:$0xff] %v611
    %906 = vst [vmem:[#allocation2 + $0x218] sm:$0xff] %v616
    %907 = vst [vmem:[#allocation2 + $0x220] sm:$0xff] %v621
    %908 = vst [vmem:[#allocation2 + $0x228] sm:$0xff] %v626
    %909 = vst [vmem:[#allocation2 + $0x230] sm:$0xff] %v631
    %910 = vst [vmem:[#allocation2 + $0x238] sm:$0xff] %v636
    %911 = vst [vmem:[#allocation2 + $0x240] sm:$0xff] %v641
    %912 = vst [vmem:[#allocation2 + $0x248] sm:$0xff] %v646
    %913 = vst [vmem:[#allocation2 + $0x250] sm:$0xff] %v651
    %914 = vst [vmem:[#allocation2 + $0x258] sm:$0xff] %v656
    %915 = vst [vmem:[#allocation2 + $0x260] sm:$0xff] %v661
    %916 = vst [vmem:[#allocation2 + $0x268] sm:$0xff] %v666
    %917 = vst [vmem:[#allocation2 + $0x270] sm:$0xff] %v671
    %918 = vst [vmem:[#allocation2 + $0x278] sm:$0xff] %v676
    %919 = vst [vmem:[#allocation2 + $0x280] sm:$0xff] %v681
    %920 = vst [vmem:[#allocation2 + $0x288] sm:$0xff] %v686
    %921 = vst [vmem:[#allocation2 + $0x290] sm:$0xff] %v691
    %922 = vst [vmem:[#allocation2 + $0x298] sm:$0xff] %v696
    %923 = vst [vmem:[#allocation2 + $0x2a0] sm:$0xff] %v701
    %924 = vst [vmem:[#allocation2 + $0x2a8] sm:$0xff] %v706
    %925 = vst [vmem:[#allocation2 + $0x2b0] sm:$0xff] %v711
    %926 = vst [vmem:[#allocation2 + $0x2b8] sm:$0xff] %v716
    %927 = vst [vmem:[#allocation2 + $0x2c0] sm:$0xff] %v721
    %928 = vst [vmem:[#allocation2 + $0x2c8] sm:$0xff] %v726
    %929 = vst [vmem:[#allocation2 + $0x2d0] sm:$0xff] %v731
    %930 = vst [vmem:[#allocation2 + $0x2d8] sm:$0xff] %v736
    %931 = vst [vmem:[#allocation2 + $0x2e0] sm:$0xff] %v741
    %932 = vst [vmem:[#allocation2 + $0x2e8] sm:$0xff] %v746
    %933 = vst [vmem:[#allocation2 + $0x2f0] sm:$0xff] %v751
    %934 = vst [vmem:[#allocation2 + $0x2f8] sm:$0xff] %v756
    %935 = vst [vmem:[#allocation2 + $0x300] sm:$0xff] %v761
    %936 = vst [vmem:[#allocation2 + $0x308] sm:$0xff] %v766
    %937 = vst [vmem:[#allocation2 + $0x310] sm:$0xff] %v771
    %938 = vst [vmem:[#allocation2 + $0x318] sm:$0xff] %v776
    %939 = vst [vmem:[#allocation2 + $0x320] sm:$0xff] %v781
    %940 = vst [vmem:[#allocation2 + $0x328] sm:$0xff] %v786
    %941 = vst [vmem:[#allocation2 + $0x330] sm:$0xff] %v791
    %942 = vst [vmem:[#allocation2 + $0x338] sm:$0xff] %v796
    %943 = vst [vmem:[#allocation2 + $0x340] sm:$0xff] %v801
    %944 = vst [vmem:[#allocation2 + $0x348] sm:$0xff] %v806
    %945 = vst [vmem:[#allocation2 + $0x350] sm:$0xff] %v811
    %946 = vst [vmem:[#allocation2 + $0x358] sm:$0xff] %v816
    %947 = vst [vmem:[#allocation2 + $0x360] sm:$0xff] %v821
    %948 = vst [vmem:[#allocation2 + $0x368] sm:$0xff] %v826
    %949 = vst [vmem:[#allocation2 + $0x370] sm:$0xff] %v831
    %950 = vst [vmem:[#allocation2 + $0x378] sm:$0xff] %v836
    %v951 = vld [vmem:[#allocation2] sm:$0xff]
    %v952 = vld [vmem:[#allocation2 + $0x8] sm:$0xff]
    %v953 = vld [vmem:[#allocation2 + $0x10] sm:$0xff]
    %v954 = vld [vmem:[#allocation2 + $0x18] sm:$0xff]
    %v955 = vld [vmem:[#allocation8] sm:$0xff]
    %v956 = vld [vmem:[#allocation8 + $0x8] sm:$0xff]
    %v957 = vld [vmem:[#allocation8 + $0x10] sm:$0xff]
    %v958 = vld [vmem:[#allocation8 + $0x18] sm:$0xff]
    %v959 = vld [vmem:[#allocation8 + $0x20] sm:$0xff]
    %v960 = vld [vmem:[#allocation8 + $0x28] sm:$0xff]
    %v961 = vld [vmem:[#allocation8 + $0x30] sm:$0xff]
    %v962 = vld [vmem:[#allocation8 + $0x38] sm:$0xff]
    %v963 = vld [vmem:[#allocation8 + $0x40] sm:$0xff]
    %v964 = vld [vmem:[#allocation8 + $0x48] sm:$0xff]
    %v965 = vld [vmem:[#allocation8 + $0x50] sm:$0xff]
    %v966 = vld [vmem:[#allocation8 + $0x58] sm:$0xff]
    %v967 = vld [vmem:[#allocation8 + $0x60] sm:$0xff]
    %v968 = vld [vmem:[#allocation8 + $0x68] sm:$0xff]
    %v969 = vld [vmem:[#allocation8 + $0x70] sm:$0xff]
    %v970 = vld [vmem:[#allocation8 + $0x78] sm:$0xff]
    %971 = vmatprep.subr.mxu0 0.0
    %972 = vmatpush1.msra.mxu0 %v955
    %973 = vmatprep.subr.mxu0 0.0
    %974 = vmatpush1.msra.mxu0 %v956
    %975 = vmatprep.subr.mxu0 0.0
    %976 = vmatpush1.msra.mxu0 %v957
    %977 = vmatprep.subr.mxu0 0.0
    %978 = vmatpush1.msra.mxu0 %v958
    %979 = vmatprep.subr.mxu0 0.0
    %980 = vmatpush1.msra.mxu0 %v959
    %981 = vmatprep.subr.mxu0 0.0
    %982 = vmatpush1.msra.mxu0 %v960
    %983 = vmatprep.subr.mxu0 0.0
    %984 = vmatpush1.msra.mxu0 %v961
    %985 = vmatprep.subr.mxu0 0.0
    %986 = vmatpush1.msra.mxu0 %v962
    %987 = vmatprep.subr.mxu0 0.0
    %988 = vmatpush1.msra.mxu0 %v963
    %989 = vmatprep.subr.mxu0 0.0
    %990 = vmatpush1.msra.mxu0 %v964
    %991 = vmatprep.subr.mxu0 0.0
    %992 = vmatpush1.msra.mxu0 %v965
    %993 = vmatprep.subr.mxu0 0.0
    %994 = vmatpush1.msra.mxu0 %v966
    %995 = vmatprep.subr.mxu0 0.0
    %996 = vmatpush1.msra.mxu0 %v967
    %997 = vmatprep.subr.mxu0 0.0
    %998 = vmatpush1.msra.mxu0 %v968
    %999 = vmatprep.subr.mxu0 0.0
    %1000 = vmatpush1.msra.mxu0 %v969
    %1001 = vmatprep.subr.mxu0 0.0
    %1002 = vmatpush1.msra.mxu0 %v970
    %1003 = vmatprep.subr.mxu0 0.0
    %1004 = vmatpush1.msra.mxu0 0.0
    %1005 = vmatprep.subr.mxu0 0.0
    %1006 = vmatpush1.msra.mxu0 0.0
    %1007 = vmatprep.subr.mxu0 0.0
    %1008 = vmatpush1.msra.mxu0 0.0
    %1009 = vmatprep.subr.mxu0 0.0
    %1010 = vmatpush1.msra.mxu0 0.0
    %1011 = vmatprep.subr.mxu0 0.0
    %1012 = vmatpush1.msra.mxu0 0.0
    %1013 = vmatprep.subr.mxu0 0.0
    %1014 = vmatpush1.msra.mxu0 0.0
    %1015 = vmatprep.subr.mxu0 0.0
    %1016 = vmatpush1.msra.mxu0 0.0
    %1017 = vmatprep.subr.mxu0 0.0
    %1018 = vmatpush1.msra.mxu0 0.0
    %1019 = vmatprep.subr.mxu0 0.0
    %1020 = vmatpush1.msra.mxu0 0.0
    %1021 = vmatprep.subr.mxu0 0.0
    %1022 = vmatpush1.msra.mxu0 0.0
    %1023 = vmatprep.subr.mxu0 0.0
    %1024 = vmatpush1.msra.mxu0 0.0
    %1025 = vmatprep.subr.mxu0 0.0
    %1026 = vmatpush1.msra.mxu0 0.0
    %1027 = vmatprep.subr.mxu0 0.0
    %1028 = vmatpush1.msra.mxu0 0.0
    %1029 = vmatprep.subr.mxu0 0.0
    %1030 = vmatpush1.msra.mxu0 0.0
    %1031 = vmatprep.subr.mxu0 0.0
    %1032 = vmatpush1.msra.mxu0 0.0
    %1033 = vmatprep.subr.mxu0 0.0
    %1034 = vmatpush1.msra.mxu0 0.0
    %1035 = vmatprep.mubr.f32.mxu0 0.0
    %1036 = vmatmul.mubr.f32.gmra.mrb[0].mxu0 0.0
    %v1037 = vpop.f32.mrb[0].mxu0
    %v1038 = vadd.f32 0.0, %v1037
    %v1039 = vpop.f32.mrb[0].mxu0
    %1040 = vmatprep.mubr.f32.mxu0 0.0
    %1041 = vmatmul.mubr.f32.gmra.mrb[0].mxu0 0.0
    %v1042 = vpop.f32.mrb[0].mxu0
    %v1043 = vadd.f32 0.0, %v1042
    %v1044 = vpop.f32.mrb[0].mxu0
    %1045 = vmatprep.mubr.f32.mxu0 0.0
    %1046 = vmatmul.mubr.f32.gmra.mrb[0].mxu0 0.0
    %v1047 = vpop.f32.mrb[0].mxu0
    %v1048 = vadd.f32 0.0, %v1047
    %v1049 = vpop.f32.mrb[0].mxu0
    %1050 = vmatprep.mubr.f32.mxu0 0.0
    %1051 = vmatmul.mubr.f32.gmra.mrb[0].mxu0 0.0
    %v1052 = vpop.f32.mrb[0].mxu0
    %v1053 = vadd.f32 0.0, %v1052
    %v1054 = vpop.f32.mrb[0].mxu0
    %1055 = vdwg.mxu0
    %v1056 = vadd.f32 %v951, %v1038
    %v1057 = vadd.f32 %v952, %v1043
    %v1058 = vadd.f32 %v953, %v1048
    %v1059 = vadd.f32 %v954, %v1053
    %v1060 = vtanh.pop %v1056
    %v1061 = vtanh.pop %v1057
    %v1062 = vtanh.pop %v1058
    %v1063 = vtanh.pop %v1059
    %s1064 = scalar_lea.vmem [#allocation2], 32
    %v1065 = vld [vmem:[%s1064] sm:$0xff]
    %v1066 = vld [vmem:[%s1064 + $0x8] sm:$0xff]
    %v1067 = vld [vmem:[%s1064 + $0x10] sm:$0xff]
    %v1068 = vld [vmem:[%s1064 + $0x18] sm:$0xff]
    %1069 = vmatprep.subr.mxu0 0.0
    %1070 = vmatpush1.msra.mxu0 %v955
    %1071 = vmatprep.subr.mxu0 0.0
    %1072 = vmatpush1.msra.mxu0 %v956
    %1073 = vmatprep.subr.mxu0 0.0
    %1074 = vmatpush1.msra.mxu0 %v957
    %1075 = vmatprep.subr.mxu0 0.0
    %1076 = vmatpush1.msra.mxu0 %v958
    %1077 = vmatprep.subr.mxu0 0.0
    %1078 = vmatpush1.msra.mxu0 %v959
    %1079 = vmatprep.subr.mxu0 0.0
    %1080 = vmatpush1.msra.mxu0 %v960
    %1081 = vmatprep.subr.mxu0 0.0
    %1082 = vmatpush1.msra.mxu0 %v961
    %1083 = vmatprep.subr.mxu0 0.0
    %1084 = vmatpush1.msra.mxu0 %v962
    %1085 = vmatprep.subr.mxu0 0.0
    %1086 = vmatpush1.msra.mxu0 %v963
    %1087 = vmatprep.subr.mxu0 0.0
    %1088 = vmatpush1.msra.mxu0 %v964
    %1089 = vmatprep.subr.mxu0 0.0
    %1090 = vmatpush1.msra.mxu0 %v965
    %1091 = vmatprep.subr.mxu0 0.0
    %1092 = vmatpush1.msra.mxu0 %v966
    %1093 = vmatprep.subr.mxu0 0.0
    %1094 = vmatpush1.msra.mxu0 %v967
    %1095 = vmatprep.subr.mxu0 0.0
    %1096 = vmatpush1.msra.mxu0 %v968
    %1097 = vmatprep.subr.mxu0 0.0
    %1098 = vmatpush1.msra.mxu0 %v969
    %1099 = vmatprep.subr.mxu0 0.0
    %1100 = vmatpush1.msra.mxu0 %v970
    %1101 = vmatprep.subr.mxu0 0.0
    %1102 = vmatpush1.msra.mxu0 0.0
    %1103 = vmatprep.subr.mxu0 0.0
    %1104 = vmatpush1.msra.mxu0 0.0
    %1105 = vmatprep.subr.mxu0 0.0
    %1106 = vmatpush1.msra.mxu0 0.0
    %1107 = vmatprep.subr.mxu0 0.0
    %1108 = vmatpush1.msra.mxu0 0.0
    %1109 = vmatprep.subr.mxu0 0.0
    %1110 = vmatpush1.msra.mxu0 0.0
    %1111 = vmatprep.subr.mxu0 0.0
    %1112 = vmatpush1.msra.mxu0 0.0
    %1113 = vmatprep.subr.mxu0 0.0
    %1114 = vmatpush1.msra.mxu0 0.0
    %1115 = vmatprep.subr.mxu0 0.0
    %1116 = vmatpush1.msra.mxu0 0.0
    %1117 = vmatprep.subr.mxu0 0.0
    %1118 = vmatpush1.msra.mxu0 0.0
    %1119 = vmatprep.subr.mxu0 0.0
    %1120 = vmatpush1.msra.mxu0 0.0
    %1121 = vmatprep.subr.mxu0 0.0
    %1122 = vmatpush1.msra.mxu0 0.0
    %1123 = vmatprep.subr.mxu0 0.0
    %1124 = vmatpush1.msra.mxu0 0.0
    %1125 = vmatprep.subr.mxu0 0.0
    %1126 = vmatpush1.msra.mxu0 0.0
    %1127 = vmatprep.subr.mxu0 0.0
    %1128 = vmatpush1.msra.mxu0 0.0
    %1129 = vmatprep.subr.mxu0 0.0
    %1130 = vmatpush1.msra.mxu0 0.0
    %1131 = vmatprep.subr.mxu0 0.0
    %1132 = vmatpush1.msra.mxu0 0.0
    %1133 = vmatprep.mubr.f32.mxu0 0.0
    %1134 = vmatmul.mubr.f32.gmra.mrb[0].mxu0 %v1060
    %v1135 = vpop.f32.mrb[0].mxu0
    %v1136 = vadd.f32 0.0, %v1135
    %v1137 = vpop.f32.mrb[0].mxu0
    %1138 = vmatprep.mubr.f32.mxu0 0.0
    %1139 = vmatmul.mubr.f32.gmra.mrb[0].mxu0 %v1061
    %v1140 = vpop.f32.mrb[0].mxu0
    %v1141 = vadd.f32 0.0, %v1140
    %v1142 = vpop.f32.mrb[0].mxu0
    %1143 = vmatprep.mubr.f32.mxu0 0.0
    %1144 = vmatmul.mubr.f32.gmra.mrb[0].mxu0 %v1062
    %v1145 = vpop.f32.mrb[0].mxu0
    %v1146 = vadd.f32 0.0, %v1145
    %v1147 = vpop.f32.mrb[0].mxu0
    %1148 = vmatprep.mubr.f32.mxu0 0.0
    %1149 = vmatmul.mubr.f32.gmra.mrb[0].mxu0 %v1063
    %v1150 = vpop.f32.mrb[0].mxu0
    %v1151 = vadd.f32 0.0, %v1150
    %v1152 = vpop.f32.mrb[0].mxu0
    %1153 = vdwg.mxu0
    %v1154 = vadd.f32 %v1065, %v1136
    %v1155 = vadd.f32 %v1066, %v1141
    %v1156 = vadd.f32 %v1067, %v1146
    %v1157 = vadd.f32 %v1068, %v1151
    %v1158 = vtanh.pop %v1154
    %v1159 = vtanh.pop %v1155
    %v1160 = vtanh.pop %v1156
    %v1161 = vtanh.pop %v1157
    %s1162 = scalar_lea.vmem [#allocation2], 64
    %v1163 = vld [vmem:[%s1162] sm:$0xff]
    %v1164 = vld [vmem:[%s1162 + $0x8] sm:$0xff]
    %v1165 = vld [vmem:[%s1162 + $0x10] sm:$0xff]
    %v1166 = vld [vmem:[%s1162 + $0x18] sm:$0xff]
    %1167 = vmatprep.subr.mxu0 0.0
    %1168 = vmatpush1.msra.mxu0 %v955
    %1169 = vmatprep.subr.mxu0 0.0
    %1170 = vmatpush1.msra.mxu0 %v956
    %1171 = vmatprep.subr.mxu0 0.0
    %1172 = vmatpush1.msra.mxu0 %v957
    %1173 = vmatprep.subr.mxu0 0.0
    %1174 = vmatpush1.msra.mxu0 %v958
    %1175 = vmatprep.subr.mxu0 0.0
    %1176 = vmatpush1.msra.mxu0 %v959
    %1177 = vmatprep.subr.mxu0 0.0
    %1178 = vmatpush1.msra.mxu0 %v960
    %1179 = vmatprep.subr.mxu0 0.0
    %1180 = vmatpush1.msra.mxu0 %v961
    %1181 = vmatprep.subr.mxu0 0.0
    %1182 = vmatpush1.msra.mxu0 %v962
    %1183 = vmatprep.subr.mxu0 0.0
    %1184 = vmatpush1.msra.mxu0 %v963
    %1185 = vmatprep.subr.mxu0 0.0
    %1186 = vmatpush1.msra.mxu0 %v964
    %1187 = vmatprep.subr.mxu0 0.0
    %1188 = vmatpush1.msra.mxu0 %v965
    %1189 = vmatprep.subr.mxu0 0.0
    %1190 = vmatpush1.msra.mxu0 %v966
    %1191 = vmatprep.subr.mxu0 0.0
    %1192 = vmatpush1.msra.mxu0 %v967
    %1193 = vmatprep.subr.mxu0 0.0
    %1194 = vmatpush1.msra.mxu0 %v968
    %1195 = vmatprep.subr.mxu0 0.0
    %1196 = vmatpush1.msra.mxu0 %v969
    %1197 = vmatprep.subr.mxu0 0.0
    %1198 = vmatpush1.msra.mxu0 %v970
    %1199 = vmatprep.subr.mxu0 0.0
    %1200 = vmatpush1.msra.mxu0 0.0
    %1201 = vmatprep.subr.mxu0 0.0
    %1202 = vmatpush1.msra.mxu0 0.0
    %1203 = vmatprep.subr.mxu0 0.0
    %1204 = vmatpush1.msra.mxu0 0.0
    %1205 = vmatprep.subr.mxu0 0.0
    %1206 = vmatpush1.msra.mxu0 0.0
    %1207 = vmatprep.subr.mxu0 0.0
    %1208 = vmatpush1.msra.mxu0 0.0
    %1209 = vmatprep.subr.mxu0 0.0
    %1210 = vmatpush1.msra.mxu0 0.0
    %1211 = vmatprep.subr.mxu0 0.0
    %1212 = vmatpush1.msra.mxu0 0.0
    %1213 = vmatprep.subr.mxu0 0.0
    %1214 = vmatpush1.msra.mxu0 0.0
    %1215 = vmatprep.subr.mxu0 0.0
    %1216 = vmatpush1.msra.mxu0 0.0
    %1217 = vmatprep.subr.mxu0 0.0
    %1218 = vmatpush1.msra.mxu0 0.0
    %1219 = vmatprep.subr.mxu0 0.0
    %1220 = vmatpush1.msra.mxu0 0.0
    %1221 = vmatprep.subr.mxu0 0.0
    %1222 = vmatpush1.msra.mxu0 0.0
    %1223 = vmatprep.subr.mxu0 0.0
    %1224 = vmatpush1.msra.mxu0 0.0
    %1225 = vmatprep.subr.mxu0 0.0
    %1226 = vmatpush1.msra.mxu0 0.0
    %1227 = vmatprep.subr.mxu0 0.0
    %1228 = vmatpush1.msra.mxu0 0.0
    %1229 = vmatprep.subr.mxu0 0.0
    %1230 = vmatpush1.msra.mxu0 0.0
    %1231 = vmatprep.mubr.f32.mxu0 0.0
    %1232 = vmatmul.mubr.f32.gmra.mrb[0].mxu0 %v1158
    %v1233 = vpop.f32.mrb[0].mxu0
    %v1234 = vadd.f32 0.0, %v1233
    %v1235 = vpop.f32.mrb[0].mxu0
    %1236 = vmatprep.mubr.f32.mxu0 0.0
    %1237 = vmatmul.mubr.f32.gmra.mrb[0].mxu0 %v1159
    %v1238 = vpop.f32.mrb[0].mxu0
    %v1239 = vadd.f32 0.0, %v1238
    %v1240 = vpop.f32.mrb[0].mxu0
    %1241 = vmatprep.mubr.f32.mxu0 0.0
    %1242 = vmatmul.mubr.f32.gmra.mrb[0].mxu0 %v1160
    %v1243 = vpop.f32.mrb[0].mxu0
    %v1244 = vadd.f32 0.0, %v1243
    %v1245 = vpop.f32.mrb[0].mxu0
    %1246 = vmatprep.mubr.f32.mxu0 0.0
    %1247 = vmatmul.mubr.f32.gmra.mrb[0].mxu0 %v1161
    %v1248 = vpop.f32.mrb[0].mxu0
    %v1249 = vadd.f32 0.0, %v1248
    %v1250 = vpop.f32.mrb[0].mxu0
    %1251 = vdwg.mxu0
    %v1252 = vadd.f32 %v1163, %v1234
    %v1253 = vadd.f32 %v1164, %v1239
    %v1254 = vadd.f32 %v1165, %v1244
    %v1255 = vadd.f32 %v1166, %v1249
    %v1256 = vtanh.pop %v1252
    %v1257 = vtanh.pop %v1253
    %v1258 = vtanh.pop %v1254
    %v1259 = vtanh.pop %v1255
    %s1260 = scalar_lea.vmem [#allocation2], 96
    %v1261 = vld [vmem:[%s1260] sm:$0xff]
    %v1262 = vld [vmem:[%s1260 + $0x8] sm:$0xff]
    %v1263 = vld [vmem:[%s1260 + $0x10] sm:$0xff]
    %v1264 = vld [vmem:[%s1260 + $0x18] sm:$0xff]
    %1265 = vmatprep.subr.mxu0 0.0
    %1266 = vmatpush1.msra.mxu0 %v955
    %1267 = vmatprep.subr.mxu0 0.0
    %1268 = vmatpush1.msra.mxu0 %v956
    %1269 = vmatprep.subr.mxu0 0.0
    %1270 = vmatpush1.msra.mxu0 %v957
    %1271 = vmatprep.subr.mxu0 0.0
    %1272 = vmatpush1.msra.mxu0 %v958
    %1273 = vmatprep.subr.mxu0 0.0
    %1274 = vmatpush1.msra.mxu0 %v959
    %1275 = vmatprep.subr.mxu0 0.0
    %1276 = vmatpush1.msra.mxu0 %v960
    %1277 = vmatprep.subr.mxu0 0.0
    %1278 = vmatpush1.msra.mxu0 %v961
    %1279 = vmatprep.subr.mxu0 0.0
    %1280 = vmatpush1.msra.mxu0 %v962
    %1281 = vmatprep.subr.mxu0 0.0
    %1282 = vmatpush1.msra.mxu0 %v963
    %1283 = vmatprep.subr.mxu0 0.0
    %1284 = vmatpush1.msra.mxu0 %v964
    %1285 = vmatprep.subr.mxu0 0.0
    %1286 = vmatpush1.msra.mxu0 %v965
    %1287 = vmatprep.subr.mxu0 0.0
    %1288 = vmatpush1.msra.mxu0 %v966
    %1289 = vmatprep.subr.mxu0 0.0
    %1290 = vmatpush1.msra.mxu0 %v967
    %1291 = vmatprep.subr.mxu0 0.0
    %1292 = vmatpush1.msra.mxu0 %v968
    %1293 = vmatprep.subr.mxu0 0.0
    %1294 = vmatpush1.msra.mxu0 %v969
    %1295 = vmatprep.subr.mxu0 0.0
    %1296 = vmatpush1.msra.mxu0 %v970
    %1297 = vmatprep.subr.mxu0 0.0
    %1298 = vmatpush1.msra.mxu0 0.0
    %1299 = vmatprep.subr.mxu0 0.0
    %1300 = vmatpush1.msra.mxu0 0.0
    %1301 = vmatprep.subr.mxu0 0.0
    %1302 = vmatpush1.msra.mxu0 0.0
    %1303 = vmatprep.subr.mxu0 0.0
    %1304 = vmatpush1.msra.mxu0 0.0
    %1305 = vmatprep.subr.mxu0 0.0
    %1306 = vmatpush1.msra.mxu0 0.0
    %1307 = vmatprep.subr.mxu0 0.0
    %1308 = vmatpush1.msra.mxu0 0.0
    %1309 = vmatprep.subr.mxu0 0.0
    %1310 = vmatpush1.msra.mxu0 0.0
    %1311 = vmatprep.subr.mxu0 0.0
    %1312 = vmatpush1.msra.mxu0 0.0
    %1313 = vmatprep.subr.mxu0 0.0
    %1314 = vmatpush1.msra.mxu0 0.0
    %1315 = vmatprep.subr.mxu0 0.0
    %1316 = vmatpush1.msra.mxu0 0.0
    %1317 = vmatprep.subr.mxu0 0.0
    %1318 = vmatpush1.msra.mxu0 0.0
    %1319 = vmatprep.subr.mxu0 0.0
    %1320 = vmatpush1.msra.mxu0 0.0
    %1321 = vmatprep.subr.mxu0 0.0
    %1322 = vmatpush1.msra.mxu0 0.0
    %1323 = vmatprep.subr.mxu0 0.0
    %1324 = vmatpush1.msra.mxu0 0.0
    %1325 = vmatprep.subr.mxu0 0.0
    %1326 = vmatpush1.msra.mxu0 0.0
    %1327 = vmatprep.subr.mxu0 0.0
    %1328 = vmatpush1.msra.mxu0 0.0
    %1329 = vmatprep.mubr.f32.mxu0 0.0
    %1330 = vmatmul.mubr.f32.gmra.mrb[0].mxu0 %v1256
    %v1331 = vpop.f32.mrb[0].mxu0
    %v1332 = vadd.f32 0.0, %v1331
    %v1333 = vpop.f32.mrb[0].mxu0
    %1334 = vmatprep.mubr.f32.mxu0 0.0
    %1335 = vmatmul.mubr.f32.gmra.mrb[0].mxu0 %v1257
    %v1336 = vpop.f32.mrb[0].mxu0
    %v1337 = vadd.f32 0.0, %v1336
    %v1338 = vpop.f32.mrb[0].mxu0
    %1339 = vmatprep.mubr.f32.mxu0 0.0
    %1340 = vmatmul.mubr.f32.gmra.mrb[0].mxu0 %v1258
    %v1341 = vpop.f32.mrb[0].mxu0
    %v1342 = vadd.f32 0.0, %v1341
    %v1343 = vpop.f32.mrb[0].mxu0
    %1344 = vmatprep.mubr.f32.mxu0 0.0
    %1345 = vmatmul.mubr.f32.gmra.mrb[0].mxu0 %v1259
    %v1346 = vpop.f32.mrb[0].mxu0
    %v1347 = vadd.f32 0.0, %v1346
    %v1348 = vpop.f32.mrb[0].mxu0
    %1349 = vdwg.mxu0
    %v1350 = vadd.f32 %v1261, %v1332
    %v1351 = vadd.f32 %v1262, %v1337
    %v1352 = vadd.f32 %v1263, %v1342
    %v1353 = vadd.f32 %v1264, %v1347
    %v1354 = vtanh.pop %v1350
    %v1355 = vtanh.pop %v1351
    %v1356 = vtanh.pop %v1352
    %v1357 = vtanh.pop %v1353
    %s1358 = scalar_lea.vmem [#allocation2], 128
    %v1359 = vld [vmem:[%s1358] sm:$0xff]
    %v1360 = vld [vmem:[%s1358 + $0x8] sm:$0xff]
    %v1361 = vld [vmem:[%s1358 + $0x10] sm:$0xff]
    %v1362 = vld [vmem:[%s1358 + $0x18] sm:$0xff]
    %1363 = vmatprep.subr.mxu0 0.0
    %1364 = vmatpush1.msra.mxu0 %v955
    %1365 = vmatprep.subr.mxu0 0.0
    %1366 = vmatpush1.msra.mxu0 %v956
    %1367 = vmatprep.subr.mxu0 0.0
    %1368 = vmatpush1.msra.mxu0 %v957
    %1369 = vmatprep.subr.mxu0 0.0
    %1370 = vmatpush1.msra.mxu0 %v958
    %1371 = vmatprep.subr.mxu0 0.0
    %1372 = vmatpush1.msra.mxu0 %v959
    %1373 = vmatprep.subr.mxu0 0.0
    %1374 = vmatpush1.msra.mxu0 %v960
    %1375 = vmatprep.subr.mxu0 0.0
    %1376 = vmatpush1.msra.mxu0 %v961
    %1377 = vmatprep.subr.mxu0 0.0
    %1378 = vmatpush1.msra.mxu0 %v962
    %1379 = vmatprep.subr.mxu0 0.0
    %1380 = vmatpush1.msra.mxu0 %v963
    %1381 = vmatprep.subr.mxu0 0.0
    %1382 = vmatpush1.msra.mxu0 %v964
    %1383 = vmatprep.subr.mxu0 0.0
    %1384 = vmatpush1.msra.mxu0 %v965
    %1385 = vmatprep.subr.mxu0 0.0
    %1386 = vmatpush1.msra.mxu0 %v966
    %1387 = vmatprep.subr.mxu0 0.0
    %1388 = vmatpush1.msra.mxu0 %v967
    %1389 = vmatprep.subr.mxu0 0.0
    %1390 = vmatpush1.msra.mxu0 %v968
    %1391 = vmatprep.subr.mxu0 0.0
    %1392 = vmatpush1.msra.mxu0 %v969
    %1393 = vmatprep.subr.mxu0 0.0
    %1394 = vmatpush1.msra.mxu0 %v970
    %1395 = vmatprep.subr.mxu0 0.0
    %1396 = vmatpush1.msra.mxu0 0.0
    %1397 = vmatprep.subr.mxu0 0.0
    %1398 = vmatpush1.msra.mxu0 0.0
    %1399 = vmatprep.subr.mxu0 0.0
    %1400 = vmatpush1.msra.mxu0 0.0
    %1401 = vmatprep.subr.mxu0 0.0
    %1402 = vmatpush1.msra.mxu0 0.0
    %1403 = vmatprep.subr.mxu0 0.0
    %1404 = vmatpush1.msra.mxu0 0.0
    %1405 = vmatprep.subr.mxu0 0.0
    %1406 = vmatpush1.msra.mxu0 0.0
    %1407 = vmatprep.subr.mxu0 0.0
    %1408 = vmatpush1.msra.mxu0 0.0
    %1409 = vmatprep.subr.mxu0 0.0
    %1410 = vmatpush1.msra.mxu0 0.0
    %1411 = vmatprep.subr.mxu0 0.0
    %1412 = vmatpush1.msra.mxu0 0.0
    %1413 = vmatprep.subr.mxu0 0.0
    %1414 = vmatpush1.msra.mxu0 0.0
    %1415 = vmatprep.subr.mxu0 0.0
    %1416 = vmatpush1.msra.mxu0 0.0
    %1417 = vmatprep.subr.mxu0 0.0
    %1418 = vmatpush1.msra.mxu0 0.0
    %1419 = vmatprep.subr.mxu0 0.0
    %1420 = vmatpush1.msra.mxu0 0.0
    %1421 = vmatprep.subr.mxu0 0.0
    %1422 = vmatpush1.msra.mxu0 0.0
    %1423 = vmatprep.subr.mxu0 0.0
    %1424 = vmatpush1.msra.mxu0 0.0
    %1425 = vmatprep.subr.mxu0 0.0
    %1426 = vmatpush1.msra.mxu0 0.0
    %1427 = vmatprep.mubr.f32.mxu0 0.0
    %1428 = vmatmul.mubr.f32.gmra.mrb[0].mxu0 %v1354
    %v1429 = vpop.f32.mrb[0].mxu0
    %v1430 = vadd.f32 0.0, %v1429
    %v1431 = vpop.f32.mrb[0].mxu0
    %1432 = vmatprep.mubr.f32.mxu0 0.0
    %1433 = vmatmul.mubr.f32.gmra.mrb[0].mxu0 %v1355
    %v1434 = vpop.f32.mrb[0].mxu0
    %v1435 = vadd.f32 0.0, %v1434
    %v1436 = vpop.f32.mrb[0].mxu0
    %1437 = vmatprep.mubr.f32.mxu0 0.0
    %1438 = vmatmul.mubr.f32.gmra.mrb[0].mxu0 %v1356
    %v1439 = vpop.f32.mrb[0].mxu0
    %v1440 = vadd.f32 0.0, %v1439
    %v1441 = vpop.f32.mrb[0].mxu0
    %1442 = vmatprep.mubr.f32.mxu0 0.0
    %1443 = vmatmul.mubr.f32.gmra.mrb[0].mxu0 %v1357
    %v1444 = vpop.f32.mrb[0].mxu0
    %v1445 = vadd.f32 0.0, %v1444
    %v1446 = vpop.f32.mrb[0].mxu0
    %1447 = vdwg.mxu0
    %v1448 = vadd.f32 %v1359, %v1430
    %v1449 = vadd.f32 %v1360, %v1435
    %v1450 = vadd.f32 %v1361, %v1440
    %v1451 = vadd.f32 %v1362, %v1445
    %v1452 = vtanh.pop %v1448
    %v1453 = vtanh.pop %v1449
    %v1454 = vtanh.pop %v1450
    %v1455 = vtanh.pop %v1451
    %s1456 = scalar_lea.vmem [#allocation2], 160
    %v1457 = vld [vmem:[%s1456] sm:$0xff]
    %v1458 = vld [vmem:[%s1456 + $0x8] sm:$0xff]
    %v1459 = vld [vmem:[%s1456 + $0x10] sm:$0xff]
    %v1460 = vld [vmem:[%s1456 + $0x18] sm:$0xff]
    %1461 = vmatprep.subr.mxu0 0.0
    %1462 = vmatpush1.msra.mxu0 %v955
    %1463 = vmatprep.subr.mxu0 0.0
    %1464 = vmatpush1.msra.mxu0 %v956
    %1465 = vmatprep.subr.mxu0 0.0
    %1466 = vmatpush1.msra.mxu0 %v957
    %1467 = vmatprep.subr.mxu0 0.0
    %1468 = vmatpush1.msra.mxu0 %v958
    %1469 = vmatprep.subr.mxu0 0.0
    %1470 = vmatpush1.msra.mxu0 %v959
    %1471 = vmatprep.subr.mxu0 0.0
    %1472 = vmatpush1.msra.mxu0 %v960
    %1473 = vmatprep.subr.mxu0 0.0
    %1474 = vmatpush1.msra.mxu0 %v961
    %1475 = vmatprep.subr.mxu0 0.0
    %1476 = vmatpush1.msra.mxu0 %v962
    %1477 = vmatprep.subr.mxu0 0.0
    %1478 = vmatpush1.msra.mxu0 %v963
    %1479 = vmatprep.subr.mxu0 0.0
    %1480 = vmatpush1.msra.mxu0 %v964
    %1481 = vmatprep.subr.mxu0 0.0
    %1482 = vmatpush1.msra.mxu0 %v965
    %1483 = vmatprep.subr.mxu0 0.0
    %1484 = vmatpush1.msra.mxu0 %v966
    %1485 = vmatprep.subr.mxu0 0.0
    %1486 = vmatpush1.msra.mxu0 %v967
    %1487 = vmatprep.subr.mxu0 0.0
    %1488 = vmatpush1.msra.mxu0 %v968
    %1489 = vmatprep.subr.mxu0 0.0
    %1490 = vmatpush1.msra.mxu0 %v969
    %1491 = vmatprep.subr.mxu0 0.0
    %1492 = vmatpush1.msra.mxu0 %v970
    %1493 = vmatprep.subr.mxu0 0.0
    %1494 = vmatpush1.msra.mxu0 0.0
    %1495 = vmatprep.subr.mxu0 0.0
    %1496 = vmatpush1.msra.mxu0 0.0
    %1497 = vmatprep.subr.mxu0 0.0
    %1498 = vmatpush1.msra.mxu0 0.0
    %1499 = vmatprep.subr.mxu0 0.0
    %1500 = vmatpush1.msra.mxu0 0.0
    %1501 = vmatprep.subr.mxu0 0.0
    %1502 = vmatpush1.msra.mxu0 0.0
    %1503 = vmatprep.subr.mxu0 0.0
    %1504 = vmatpush1.msra.mxu0 0.0
    %1505 = vmatprep.subr.mxu0 0.0
    %1506 = vmatpush1.msra.mxu0 0.0
    %1507 = vmatprep.subr.mxu0 0.0
    %1508 = vmatpush1.msra.mxu0 0.0
    %1509 = vmatprep.subr.mxu0 0.0
    %1510 = vmatpush1.msra.mxu0 0.0
    %1511 = vmatprep.subr.mxu0 0.0
    %1512 = vmatpush1.msra.mxu0 0.0
    %1513 = vmatprep.subr.mxu0 0.0
    %1514 = vmatpush1.msra.mxu0 0.0
    %1515 = vmatprep.subr.mxu0 0.0
    %1516 = vmatpush1.msra.mxu0 0.0
    %1517 = vmatprep.subr.mxu0 0.0
    %1518 = vmatpush1.msra.mxu0 0.0
    %1519 = vmatprep.subr.mxu0 0.0
    %1520 = vmatpush1.msra.mxu0 0.0
    %1521 = vmatprep.subr.mxu0 0.0
    %1522 = vmatpush1.msra.mxu0 0.0
    %1523 = vmatprep.subr.mxu0 0.0
    %1524 = vmatpush1.msra.mxu0 0.0
    %1525 = vmatprep.mubr.f32.mxu0 0.0
    %1526 = vmatmul.mubr.f32.gmra.mrb[0].mxu0 %v1452
    %v1527 = vpop.f32.mrb[0].mxu0
    %v1528 = vadd.f32 0.0, %v1527
    %v1529 = vpop.f32.mrb[0].mxu0
    %1530 = vmatprep.mubr.f32.mxu0 0.0
    %1531 = vmatmul.mubr.f32.gmra.mrb[0].mxu0 %v1453
    %v1532 = vpop.f32.mrb[0].mxu0
    %v1533 = vadd.f32 0.0, %v1532
    %v1534 = vpop.f32.mrb[0].mxu0
    %1535 = vmatprep.mubr.f32.mxu0 0.0
    %1536 = vmatmul.mubr.f32.gmra.mrb[0].mxu0 %v1454
    %v1537 = vpop.f32.mrb[0].mxu0
    %v1538 = vadd.f32 0.0, %v1537
    %v1539 = vpop.f32.mrb[0].mxu0
    %1540 = vmatprep.mubr.f32.mxu0 0.0
    %1541 = vmatmul.mubr.f32.gmra.mrb[0].mxu0 %v1455
    %v1542 = vpop.f32.mrb[0].mxu0
    %v1543 = vadd.f32 0.0, %v1542
    %v1544 = vpop.f32.mrb[0].mxu0
    %1545 = vdwg.mxu0
    %v1546 = vadd.f32 %v1457, %v1528
    %v1547 = vadd.f32 %v1458, %v1533
    %v1548 = vadd.f32 %v1459, %v1538
    %v1549 = vadd.f32 %v1460, %v1543
    %v1550 = vtanh.pop %v1546
    %v1551 = vtanh.pop %v1547
    %v1552 = vtanh.pop %v1548
    %v1553 = vtanh.pop %v1549
    %s1554 = scalar_lea.vmem [#allocation2], 192
    %v1555 = vld [vmem:[%s1554] sm:$0xff]
    %v1556 = vld [vmem:[%s1554 + $0x8] sm:$0xff]
    %v1557 = vld [vmem:[%s1554 + $0x10] sm:$0xff]
    %v1558 = vld [vmem:[%s1554 + $0x18] sm:$0xff]
    %1559 = vmatprep.subr.mxu0 0.0
    %1560 = vmatpush1.msra.mxu0 %v955
    %1561 = vmatprep.subr.mxu0 0.0
    %1562 = vmatpush1.msra.mxu0 %v956
    %1563 = vmatprep.subr.mxu0 0.0
    %1564 = vmatpush1.msra.mxu0 %v957
    %1565 = vmatprep.subr.mxu0 0.0
    %1566 = vmatpush1.msra.mxu0 %v958
    %1567 = vmatprep.subr.mxu0 0.0
    %1568 = vmatpush1.msra.mxu0 %v959
    %1569 = vmatprep.subr.mxu0 0.0
    %1570 = vmatpush1.msra.mxu0 %v960
    %1571 = vmatprep.subr.mxu0 0.0
    %1572 = vmatpush1.msra.mxu0 %v961
    %1573 = vmatprep.subr.mxu0 0.0
    %1574 = vmatpush1.msra.mxu0 %v962
    %1575 = vmatprep.subr.mxu0 0.0
    %1576 = vmatpush1.msra.mxu0 %v963
    %1577 = vmatprep.subr.mxu0 0.0
    %1578 = vmatpush1.msra.mxu0 %v964
    %1579 = vmatprep.subr.mxu0 0.0
    %1580 = vmatpush1.msra.mxu0 %v965
    %1581 = vmatprep.subr.mxu0 0.0
    %1582 = vmatpush1.msra.mxu0 %v966
    %1583 = vmatprep.subr.mxu0 0.0
    %1584 = vmatpush1.msra.mxu0 %v967
    %1585 = vmatprep.subr.mxu0 0.0
    %1586 = vmatpush1.msra.mxu0 %v968
    %1587 = vmatprep.subr.mxu0 0.0
    %1588 = vmatpush1.msra.mxu0 %v969
    %1589 = vmatprep.subr.mxu0 0.0
    %1590 = vmatpush1.msra.mxu0 %v970
    %1591 = vmatprep.subr.mxu0 0.0
    %1592 = vmatpush1.msra.mxu0 0.0
    %1593 = vmatprep.subr.mxu0 0.0
    %1594 = vmatpush1.msra.mxu0 0.0
    %1595 = vmatprep.subr.mxu0 0.0
    %1596 = vmatpush1.msra.mxu0 0.0
    %1597 = vmatprep.subr.mxu0 0.0
    %1598 = vmatpush1.msra.mxu0 0.0
    %1599 = vmatprep.subr.mxu0 0.0
    %1600 = vmatpush1.msra.mxu0 0.0
    %1601 = vmatprep.subr.mxu0 0.0
    %1602 = vmatpush1.msra.mxu0 0.0
    %1603 = vmatprep.subr.mxu0 0.0
    %1604 = vmatpush1.msra.mxu0 0.0
    %1605 = vmatprep.subr.mxu0 0.0
    %1606 = vmatpush1.msra.mxu0 0.0
    %1607 = vmatprep.subr.mxu0 0.0
    %1608 = vmatpush1.msra.mxu0 0.0
    %1609 = vmatprep.subr.mxu0 0.0
    %1610 = vmatpush1.msra.mxu0 0.0
    %1611 = vmatprep.subr.mxu0 0.0
    %1612 = vmatpush1.msra.mxu0 0.0
    %1613 = vmatprep.subr.mxu0 0.0
    %1614 = vmatpush1.msra.mxu0 0.0
    %1615 = vmatprep.subr.mxu0 0.0
    %1616 = vmatpush1.msra.mxu0 0.0
    %1617 = vmatprep.subr.mxu0 0.0
    %1618 = vmatpush1.msra.mxu0 0.0
    %1619 = vmatprep.subr.mxu0 0.0
    %1620 = vmatpush1.msra.mxu0 0.0
    %1621 = vmatprep.subr.mxu0 0.0
    %1622 = vmatpush1.msra.mxu0 0.0
    %1623 = vmatprep.mubr.f32.mxu0 0.0
    %1624 = vmatmul.mubr.f32.gmra.mrb[0].mxu0 %v1550
    %v1625 = vpop.f32.mrb[0].mxu0
    %v1626 = vadd.f32 0.0, %v1625
    %v1627 = vpop.f32.mrb[0].mxu0
    %1628 = vmatprep.mubr.f32.mxu0 0.0
    %1629 = vmatmul.mubr.f32.gmra.mrb[0].mxu0 %v1551
    %v1630 = vpop.f32.mrb[0].mxu0
    %v1631 = vadd.f32 0.0, %v1630
    %v1632 = vpop.f32.mrb[0].mxu0
    %1633 = vmatprep.mubr.f32.mxu0 0.0
    %1634 = vmatmul.mubr.f32.gmra.mrb[0].mxu0 %v1552
    %v1635 = vpop.f32.mrb[0].mxu0
    %v1636 = vadd.f32 0.0, %v1635
    %v1637 = vpop.f32.mrb[0].mxu0
    %1638 = vmatprep.mubr.f32.mxu0 0.0
    %1639 = vmatmul.mubr.f32.gmra.mrb[0].mxu0 %v1553
    %v1640 = vpop.f32.mrb[0].mxu0
    %v1641 = vadd.f32 0.0, %v1640
    %v1642 = vpop.f32.mrb[0].mxu0
    %1643 = vdwg.mxu0
    %v1644 = vadd.f32 %v1555, %v1626
    %v1645 = vadd.f32 %v1556, %v1631
    %v1646 = vadd.f32 %v1557, %v1636
    %v1647 = vadd.f32 %v1558, %v1641
    %v1648 = vtanh.pop %v1644
    %v1649 = vtanh.pop %v1645
    %v1650 = vtanh.pop %v1646
    %v1651 = vtanh.pop %v1647
    %s1652 = scalar_lea.vmem [#allocation2], 224
    %v1653 = vld [vmem:[%s1652] sm:$0xff]
    %v1654 = vld [vmem:[%s1652 + $0x8] sm:$0xff]
    %v1655 = vld [vmem:[%s1652 + $0x10] sm:$0xff]
    %v1656 = vld [vmem:[%s1652 + $0x18] sm:$0xff]
    %1657 = vmatprep.subr.mxu0 0.0
    %1658 = vmatpush1.msra.mxu0 %v955
    %1659 = vmatprep.subr.mxu0 0.0
    %1660 = vmatpush1.msra.mxu0 %v956
    %1661 = vmatprep.subr.mxu0 0.0
    %1662 = vmatpush1.msra.mxu0 %v957
    %1663 = vmatprep.subr.mxu0 0.0
    %1664 = vmatpush1.msra.mxu0 %v958
    %1665 = vmatprep.subr.mxu0 0.0
    %1666 = vmatpush1.msra.mxu0 %v959
    %1667 = vmatprep.subr.mxu0 0.0
    %1668 = vmatpush1.msra.mxu0 %v960
    %1669 = vmatprep.subr.mxu0 0.0
    %1670 = vmatpush1.msra.mxu0 %v961
    %1671 = vmatprep.subr.mxu0 0.0
    %1672 = vmatpush1.msra.mxu0 %v962
    %1673 = vmatprep.subr.mxu0 0.0
    %1674 = vmatpush1.msra.mxu0 %v963
    %1675 = vmatprep.subr.mxu0 0.0
    %1676 = vmatpush1.msra.mxu0 %v964
    %1677 = vmatprep.subr.mxu0 0.0
    %1678 = vmatpush1.msra.mxu0 %v965
    %1679 = vmatprep.subr.mxu0 0.0
    %1680 = vmatpush1.msra.mxu0 %v966
    %1681 = vmatprep.subr.mxu0 0.0
    %1682 = vmatpush1.msra.mxu0 %v967
    %1683 = vmatprep.subr.mxu0 0.0
    %1684 = vmatpush1.msra.mxu0 %v968
    %1685 = vmatprep.subr.mxu0 0.0
    %1686 = vmatpush1.msra.mxu0 %v969
    %1687 = vmatprep.subr.mxu0 0.0
    %1688 = vmatpush1.msra.mxu0 %v970
    %1689 = vmatprep.subr.mxu0 0.0
    %1690 = vmatpush1.msra.mxu0 0.0
    %1691 = vmatprep.subr.mxu0 0.0
    %1692 = vmatpush1.msra.mxu0 0.0
    %1693 = vmatprep.subr.mxu0 0.0
    %1694 = vmatpush1.msra.mxu0 0.0
    %1695 = vmatprep.subr.mxu0 0.0
    %1696 = vmatpush1.msra.mxu0 0.0
    %1697 = vmatprep.subr.mxu0 0.0
    %1698 = vmatpush1.msra.mxu0 0.0
    %1699 = vmatprep.subr.mxu0 0.0
    %1700 = vmatpush1.msra.mxu0 0.0
    %1701 = vmatprep.subr.mxu0 0.0
    %1702 = vmatpush1.msra.mxu0 0.0
    %1703 = vmatprep.subr.mxu0 0.0
    %1704 = vmatpush1.msra.mxu0 0.0
    %1705 = vmatprep.subr.mxu0 0.0
    %1706 = vmatpush1.msra.mxu0 0.0
    %1707 = vmatprep.subr.mxu0 0.0
    %1708 = vmatpush1.msra.mxu0 0.0
    %1709 = vmatprep.subr.mxu0 0.0
    %1710 = vmatpush1.msra.mxu0 0.0
    %1711 = vmatprep.subr.mxu0 0.0
    %1712 = vmatpush1.msra.mxu0 0.0
    %1713 = vmatprep.subr.mxu0 0.0
    %1714 = vmatpush1.msra.mxu0 0.0
    %1715 = vmatprep.subr.mxu0 0.0
    %1716 = vmatpush1.msra.mxu0 0.0
    %1717 = vmatprep.subr.mxu0 0.0
    %1718 = vmatpush1.msra.mxu0 0.0
    %1719 = vmatprep.subr.mxu0 0.0
    %1720 = vmatpush1.msra.mxu0 0.0
    %1721 = vmatprep.mubr.f32.mxu0 0.0
    %1722 = vmatmul.mubr.f32.gmra.mrb[0].mxu0 %v1648
    %v1723 = vpop.f32.mrb[0].mxu0
    %v1724 = vadd.f32 0.0, %v1723
    %v1725 = vpop.f32.mrb[0].mxu0
    %1726 = vmatprep.mubr.f32.mxu0 0.0
    %1727 = vmatmul.mubr.f32.gmra.mrb[0].mxu0 %v1649
    %v1728 = vpop.f32.mrb[0].mxu0
    %v1729 = vadd.f32 0.0, %v1728
    %v1730 = vpop.f32.mrb[0].mxu0
    %1731 = vmatprep.mubr.f32.mxu0 0.0
    %1732 = vmatmul.mubr.f32.gmra.mrb[0].mxu0 %v1650
    %v1733 = vpop.f32.mrb[0].mxu0
    %v1734 = vadd.f32 0.0, %v1733
    %v1735 = vpop.f32.mrb[0].mxu0
    %1736 = vmatprep.mubr.f32.mxu0 0.0
    %1737 = vmatmul.mubr.f32.gmra.mrb[0].mxu0 %v1651
    %v1738 = vpop.f32.mrb[0].mxu0
    %v1739 = vadd.f32 0.0, %v1738
    %v1740 = vpop.f32.mrb[0].mxu0
    %1741 = vdwg.mxu0
    %v1742 = vadd.f32 %v1653, %v1724
    %v1743 = vadd.f32 %v1654, %v1729
    %v1744 = vadd.f32 %v1655, %v1734
    %v1745 = vadd.f32 %v1656, %v1739
    %v1746 = vtanh.pop %v1742
    %v1747 = vtanh.pop %v1743
    %v1748 = vtanh.pop %v1744
    %v1749 = vtanh.pop %v1745
    %s1750 = scalar_lea.vmem [#allocation2], 256
    %v1751 = vld [vmem:[%s1750] sm:$0xff]
    %v1752 = vld [vmem:[%s1750 + $0x8] sm:$0xff]
    %v1753 = vld [vmem:[%s1750 + $0x10] sm:$0xff]
    %v1754 = vld [vmem:[%s1750 + $0x18] sm:$0xff]
    %1755 = vmatprep.subr.mxu0 0.0
    %1756 = vmatpush1.msra.mxu0 %v955
    %1757 = vmatprep.subr.mxu0 0.0
    %1758 = vmatpush1.msra.mxu0 %v956
    %1759 = vmatprep.subr.mxu0 0.0
    %1760 = vmatpush1.msra.mxu0 %v957
    %1761 = vmatprep.subr.mxu0 0.0
    %1762 = vmatpush1.msra.mxu0 %v958
    %1763 = vmatprep.subr.mxu0 0.0
    %1764 = vmatpush1.msra.mxu0 %v959
    %1765 = vmatprep.subr.mxu0 0.0
    %1766 = vmatpush1.msra.mxu0 %v960
    %1767 = vmatprep.subr.mxu0 0.0
    %1768 = vmatpush1.msra.mxu0 %v961
    %1769 = vmatprep.subr.mxu0 0.0
    %1770 = vmatpush1.msra.mxu0 %v962
    %1771 = vmatprep.subr.mxu0 0.0
    %1772 = vmatpush1.msra.mxu0 %v963
    %1773 = vmatprep.subr.mxu0 0.0
    %1774 = vmatpush1.msra.mxu0 %v964
    %1775 = vmatprep.subr.mxu0 0.0
    %1776 = vmatpush1.msra.mxu0 %v965
    %1777 = vmatprep.subr.mxu0 0.0
    %1778 = vmatpush1.msra.mxu0 %v966
    %1779 = vmatprep.subr.mxu0 0.0
    %1780 = vmatpush1.msra.mxu0 %v967
    %1781 = vmatprep.subr.mxu0 0.0
    %1782 = vmatpush1.msra.mxu0 %v968
    %1783 = vmatprep.subr.mxu0 0.0
    %1784 = vmatpush1.msra.mxu0 %v969
    %1785 = vmatprep.subr.mxu0 0.0
    %1786 = vmatpush1.msra.mxu0 %v970
    %1787 = vmatprep.subr.mxu0 0.0
    %1788 = vmatpush1.msra.mxu0 0.0
    %1789 = vmatprep.subr.mxu0 0.0
    %1790 = vmatpush1.msra.mxu0 0.0
    %1791 = vmatprep.subr.mxu0 0.0
    %1792 = vmatpush1.msra.mxu0 0.0
    %1793 = vmatprep.subr.mxu0 0.0
    %1794 = vmatpush1.msra.mxu0 0.0
    %1795 = vmatprep.subr.mxu0 0.0
    %1796 = vmatpush1.msra.mxu0 0.0
    %1797 = vmatprep.subr.mxu0 0.0
    %1798 = vmatpush1.msra.mxu0 0.0
    %1799 = vmatprep.subr.mxu0 0.0
    %1800 = vmatpush1.msra.mxu0 0.0
    %1801 = vmatprep.subr.mxu0 0.0
    %1802 = vmatpush1.msra.mxu0 0.0
    %1803 = vmatprep.subr.mxu0 0.0
    %1804 = vmatpush1.msra.mxu0 0.0
    %1805 = vmatprep.subr.mxu0 0.0
    %1806 = vmatpush1.msra.mxu0 0.0
    %1807 = vmatprep.subr.mxu0 0.0
    %1808 = vmatpush1.msra.mxu0 0.0
    %1809 = vmatprep.subr.mxu0 0.0
    %1810 = vmatpush1.msra.mxu0 0.0
    %1811 = vmatprep.subr.mxu0 0.0
    %1812 = vmatpush1.msra.mxu0 0.0
    %1813 = vmatprep.subr.mxu0 0.0
    %1814 = vmatpush1.msra.mxu0 0.0
    %1815 = vmatprep.subr.mxu0 0.0
    %1816 = vmatpush1.msra.mxu0 0.0
    %1817 = vmatprep.subr.mxu0 0.0
    %1818 = vmatpush1.msra.mxu0 0.0
    %1819 = vmatprep.mubr.f32.mxu0 0.0
    %1820 = vmatmul.mubr.f32.gmra.mrb[0].mxu0 %v1746
    %v1821 = vpop.f32.mrb[0].mxu0
    %v1822 = vadd.f32 0.0, %v1821
    %v1823 = vpop.f32.mrb[0].mxu0
    %1824 = vmatprep.mubr.f32.mxu0 0.0
    %1825 = vmatmul.mubr.f32.gmra.mrb[0].mxu0 %v1747
    %v1826 = vpop.f32.mrb[0].mxu0
    %v1827 = vadd.f32 0.0, %v1826
    %v1828 = vpop.f32.mrb[0].mxu0
    %1829 = vmatprep.mubr.f32.mxu0 0.0
    %1830 = vmatmul.mubr.f32.gmra.mrb[0].mxu0 %v1748
    %v1831 = vpop.f32.mrb[0].mxu0
    %v1832 = vadd.f32 0.0, %v1831
    %v1833 = vpop.f32.mrb[0].mxu0
    %1834 = vmatprep.mubr.f32.mxu0 0.0
    %1835 = vmatmul.mubr.f32.gmra.mrb[0].mxu0 %v1749
    %v1836 = vpop.f32.mrb[0].mxu0
    %v1837 = vadd.f32 0.0, %v1836
    %v1838 = vpop.f32.mrb[0].mxu0
    %1839 = vdwg.mxu0
    %v1840 = vadd.f32 %v1751, %v1822
    %v1841 = vadd.f32 %v1752, %v1827
    %v1842 = vadd.f32 %v1753, %v1832
    %v1843 = vadd.f32 %v1754, %v1837
    %v1844 = vtanh.pop %v1840
    %v1845 = vtanh.pop %v1841
    %v1846 = vtanh.pop %v1842
    %v1847 = vtanh.pop %v1843
    %s1848 = scalar_lea.vmem [#allocation2], 288
    %v1849 = vld [vmem:[%s1848] sm:$0xff]
    %v1850 = vld [vmem:[%s1848 + $0x8] sm:$0xff]
    %v1851 = vld [vmem:[%s1848 + $0x10] sm:$0xff]
    %v1852 = vld [vmem:[%s1848 + $0x18] sm:$0xff]
    %1853 = vmatprep.subr.mxu0 0.0
    %1854 = vmatpush1.msra.mxu0 %v955
    %1855 = vmatprep.subr.mxu0 0.0
    %1856 = vmatpush1.msra.mxu0 %v956
    %1857 = vmatprep.subr.mxu0 0.0
    %1858 = vmatpush1.msra.mxu0 %v957
    %1859 = vmatprep.subr.mxu0 0.0
    %1860 = vmatpush1.msra.mxu0 %v958
    %1861 = vmatprep.subr.mxu0 0.0
    %1862 = vmatpush1.msra.mxu0 %v959
    %1863 = vmatprep.subr.mxu0 0.0
    %1864 = vmatpush1.msra.mxu0 %v960
    %1865 = vmatprep.subr.mxu0 0.0
    %1866 = vmatpush1.msra.mxu0 %v961
    %1867 = vmatprep.subr.mxu0 0.0
    %1868 = vmatpush1.msra.mxu0 %v962
    %1869 = vmatprep.subr.mxu0 0.0
    %1870 = vmatpush1.msra.mxu0 %v963
    %1871 = vmatprep.subr.mxu0 0.0
    %1872 = vmatpush1.msra.mxu0 %v964
    %1873 = vmatprep.subr.mxu0 0.0
    %1874 = vmatpush1.msra.mxu0 %v965
    %1875 = vmatprep.subr.mxu0 0.0
    %1876 = vmatpush1.msra.mxu0 %v966
    %1877 = vmatprep.subr.mxu0 0.0
    %1878 = vmatpush1.msra.mxu0 %v967
    %1879 = vmatprep.subr.mxu0 0.0
    %1880 = vmatpush1.msra.mxu0 %v968
    %1881 = vmatprep.subr.mxu0 0.0
    %1882 = vmatpush1.msra.mxu0 %v969
    %1883 = vmatprep.subr.mxu0 0.0
    %1884 = vmatpush1.msra.mxu0 %v970
    %1885 = vmatprep.subr.mxu0 0.0
    %1886 = vmatpush1.msra.mxu0 0.0
    %1887 = vmatprep.subr.mxu0 0.0
    %1888 = vmatpush1.msra.mxu0 0.0
    %1889 = vmatprep.subr.mxu0 0.0
    %1890 = vmatpush1.msra.mxu0 0.0
    %1891 = vmatprep.subr.mxu0 0.0
    %1892 = vmatpush1.msra.mxu0 0.0
    %1893 = vmatprep.subr.mxu0 0.0
    %1894 = vmatpush1.msra.mxu0 0.0
    %1895 = vmatprep.subr.mxu0 0.0
    %1896 = vmatpush1.msra.mxu0 0.0
    %1897 = vmatprep.subr.mxu0 0.0
    %1898 = vmatpush1.msra.mxu0 0.0
    %1899 = vmatprep.subr.mxu0 0.0
    %1900 = vmatpush1.msra.mxu0 0.0
    %1901 = vmatprep.subr.mxu0 0.0
    %1902 = vmatpush1.msra.mxu0 0.0
    %1903 = vmatprep.subr.mxu0 0.0
    %1904 = vmatpush1.msra.mxu0 0.0
    %1905 = vmatprep.subr.mxu0 0.0
    %1906 = vmatpush1.msra.mxu0 0.0
    %1907 = vmatprep.subr.mxu0 0.0
    %1908 = vmatpush1.msra.mxu0 0.0
    %1909 = vmatprep.subr.mxu0 0.0
    %1910 = vmatpush1.msra.mxu0 0.0
    %1911 = vmatprep.subr.mxu0 0.0
    %1912 = vmatpush1.msra.mxu0 0.0
    %1913 = vmatprep.subr.mxu0 0.0
    %1914 = vmatpush1.msra.mxu0 0.0
    %1915 = vmatprep.subr.mxu0 0.0
    %1916 = vmatpush1.msra.mxu0 0.0
    %1917 = vmatprep.mubr.f32.mxu0 0.0
    %1918 = vmatmul.mubr.f32.gmra.mrb[0].mxu0 %v1844
    %v1919 = vpop.f32.mrb[0].mxu0
    %v1920 = vadd.f32 0.0, %v1919
    %v1921 = vpop.f32.mrb[0].mxu0
    %1922 = vmatprep.mubr.f32.mxu0 0.0
    %1923 = vmatmul.mubr.f32.gmra.mrb[0].mxu0 %v1845
    %v1924 = vpop.f32.mrb[0].mxu0
    %v1925 = vadd.f32 0.0, %v1924
    %v1926 = vpop.f32.mrb[0].mxu0
    %1927 = vmatprep.mubr.f32.mxu0 0.0
    %1928 = vmatmul.mubr.f32.gmra.mrb[0].mxu0 %v1846
    %v1929 = vpop.f32.mrb[0].mxu0
    %v1930 = vadd.f32 0.0, %v1929
    %v1931 = vpop.f32.mrb[0].mxu0
    %1932 = vmatprep.mubr.f32.mxu0 0.0
    %1933 = vmatmul.mubr.f32.gmra.mrb[0].mxu0 %v1847
    %v1934 = vpop.f32.mrb[0].mxu0
    %v1935 = vadd.f32 0.0, %v1934
    %v1936 = vpop.f32.mrb[0].mxu0
    %1937 = vdwg.mxu0
    %v1938 = vadd.f32 %v1849, %v1920
    %v1939 = vadd.f32 %v1850, %v1925
    %v1940 = vadd.f32 %v1851, %v1930
    %v1941 = vadd.f32 %v1852, %v1935
    %v1942 = vtanh.pop %v1938
    %v1943 = vtanh.pop %v1939
    %v1944 = vtanh.pop %v1940
    %v1945 = vtanh.pop %v1941
    %s1946 = scalar_lea.vmem [#allocation2], 320
    %v1947 = vld [vmem:[%s1946] sm:$0xff]
    %v1948 = vld [vmem:[%s1946 + $0x8] sm:$0xff]
    %v1949 = vld [vmem:[%s1946 + $0x10] sm:$0xff]
    %v1950 = vld [vmem:[%s1946 + $0x18] sm:$0xff]
    %1951 = vmatprep.subr.mxu0 0.0
    %1952 = vmatpush1.msra.mxu0 %v955
    %1953 = vmatprep.subr.mxu0 0.0
    %1954 = vmatpush1.msra.mxu0 %v956
    %1955 = vmatprep.subr.mxu0 0.0
    %1956 = vmatpush1.msra.mxu0 %v957
    %1957 = vmatprep.subr.mxu0 0.0
    %1958 = vmatpush1.msra.mxu0 %v958
    %1959 = vmatprep.subr.mxu0 0.0
    %1960 = vmatpush1.msra.mxu0 %v959
    %1961 = vmatprep.subr.mxu0 0.0
    %1962 = vmatpush1.msra.mxu0 %v960
    %1963 = vmatprep.subr.mxu0 0.0
    %1964 = vmatpush1.msra.mxu0 %v961
    %1965 = vmatprep.subr.mxu0 0.0
    %1966 = vmatpush1.msra.mxu0 %v962
    %1967 = vmatprep.subr.mxu0 0.0
    %1968 = vmatpush1.msra.mxu0 %v963
    %1969 = vmatprep.subr.mxu0 0.0
    %1970 = vmatpush1.msra.mxu0 %v964
    %1971 = vmatprep.subr.mxu0 0.0
    %1972 = vmatpush1.msra.mxu0 %v965
    %1973 = vmatprep.subr.mxu0 0.0
    %1974 = vmatpush1.msra.mxu0 %v966
    %1975 = vmatprep.subr.mxu0 0.0
    %1976 = vmatpush1.msra.mxu0 %v967
    %1977 = vmatprep.subr.mxu0 0.0
    %1978 = vmatpush1.msra.mxu0 %v968
    %1979 = vmatprep.subr.mxu0 0.0
    %1980 = vmatpush1.msra.mxu0 %v969
    %1981 = vmatprep.subr.mxu0 0.0
    %1982 = vmatpush1.msra.mxu0 %v970
    %1983 = vmatprep.subr.mxu0 0.0
    %1984 = vmatpush1.msra.mxu0 0.0
    %1985 = vmatprep.subr.mxu0 0.0
    %1986 = vmatpush1.msra.mxu0 0.0
    %1987 = vmatprep.subr.mxu0 0.0
    %1988 = vmatpush1.msra.mxu0 0.0
    %1989 = vmatprep.subr.mxu0 0.0
    %1990 = vmatpush1.msra.mxu0 0.0
    %1991 = vmatprep.subr.mxu0 0.0
    %1992 = vmatpush1.msra.mxu0 0.0
    %1993 = vmatprep.subr.mxu0 0.0
    %1994 = vmatpush1.msra.mxu0 0.0
    %1995 = vmatprep.subr.mxu0 0.0
    %1996 = vmatpush1.msra.mxu0 0.0
    %1997 = vmatprep.subr.mxu0 0.0
    %1998 = vmatpush1.msra.mxu0 0.0
    %1999 = vmatprep.subr.mxu0 0.0
    %2000 = vmatpush1.msra.mxu0 0.0
    %2001 = vmatprep.subr.mxu0 0.0
    %2002 = vmatpush1.msra.mxu0 0.0
    %2003 = vmatprep.subr.mxu0 0.0
    %2004 = vmatpush1.msra.mxu0 0.0
    %2005 = vmatprep.subr.mxu0 0.0
    %2006 = vmatpush1.msra.mxu0 0.0
    %2007 = vmatprep.subr.mxu0 0.0
    %2008 = vmatpush1.msra.mxu0 0.0
    %2009 = vmatprep.subr.mxu0 0.0
    %2010 = vmatpush1.msra.mxu0 0.0
    %2011 = vmatprep.subr.mxu0 0.0
    %2012 = vmatpush1.msra.mxu0 0.0
    %2013 = vmatprep.subr.mxu0 0.0
    %2014 = vmatpush1.msra.mxu0 0.0
    %2015 = vmatprep.mubr.f32.mxu0 0.0
    %2016 = vmatmul.mubr.f32.gmra.mrb[0].mxu0 %v1942
    %v2017 = vpop.f32.mrb[0].mxu0
    %v2018 = vadd.f32 0.0, %v2017
    %v2019 = vpop.f32.mrb[0].mxu0
    %2020 = vmatprep.mubr.f32.mxu0 0.0
    %2021 = vmatmul.mubr.f32.gmra.mrb[0].mxu0 %v1943
    %v2022 = vpop.f32.mrb[0].mxu0
    %v2023 = vadd.f32 0.0, %v2022
    %v2024 = vpop.f32.mrb[0].mxu0
    %2025 = vmatprep.mubr.f32.mxu0 0.0
    %2026 = vmatmul.mubr.f32.gmra.mrb[0].mxu0 %v1944
    %v2027 = vpop.f32.mrb[0].mxu0
    %v2028 = vadd.f32 0.0, %v2027
    %v2029 = vpop.f32.mrb[0].mxu0
    %2030 = vmatprep.mubr.f32.mxu0 0.0
    %2031 = vmatmul.mubr.f32.gmra.mrb[0].mxu0 %v1945
    %v2032 = vpop.f32.mrb[0].mxu0
    %v2033 = vadd.f32 0.0, %v2032
    %v2034 = vpop.f32.mrb[0].mxu0
    %2035 = vdwg.mxu0
    %v2036 = vadd.f32 %v1947, %v2018
    %v2037 = vadd.f32 %v1948, %v2023
    %v2038 = vadd.f32 %v1949, %v2028
    %v2039 = vadd.f32 %v1950, %v2033
    %v2040 = vtanh.pop %v2036
    %v2041 = vtanh.pop %v2037
    %v2042 = vtanh.pop %v2038
    %v2043 = vtanh.pop %v2039
    %s2044 = scalar_lea.vmem [#allocation2], 352
    %v2045 = vld [vmem:[%s2044] sm:$0xff]
    %v2046 = vld [vmem:[%s2044 + $0x8] sm:$0xff]
    %v2047 = vld [vmem:[%s2044 + $0x10] sm:$0xff]
    %v2048 = vld [vmem:[%s2044 + $0x18] sm:$0xff]
    %2049 = vmatprep.subr.mxu0 0.0
    %2050 = vmatpush1.msra.mxu0 %v955
    %2051 = vmatprep.subr.mxu0 0.0
    %2052 = vmatpush1.msra.mxu0 %v956
    %2053 = vmatprep.subr.mxu0 0.0
    %2054 = vmatpush1.msra.mxu0 %v957
    %2055 = vmatprep.subr.mxu0 0.0
    %2056 = vmatpush1.msra.mxu0 %v958
    %2057 = vmatprep.subr.mxu0 0.0
    %2058 = vmatpush1.msra.mxu0 %v959
    %2059 = vmatprep.subr.mxu0 0.0
    %2060 = vmatpush1.msra.mxu0 %v960
    %2061 = vmatprep.subr.mxu0 0.0
    %2062 = vmatpush1.msra.mxu0 %v961
    %2063 = vmatprep.subr.mxu0 0.0
    %2064 = vmatpush1.msra.mxu0 %v962
    %2065 = vmatprep.subr.mxu0 0.0
    %2066 = vmatpush1.msra.mxu0 %v963
    %2067 = vmatprep.subr.mxu0 0.0
    %2068 = vmatpush1.msra.mxu0 %v964
    %2069 = vmatprep.subr.mxu0 0.0
    %2070 = vmatpush1.msra.mxu0 %v965
    %2071 = vmatprep.subr.mxu0 0.0
    %2072 = vmatpush1.msra.mxu0 %v966
    %2073 = vmatprep.subr.mxu0 0.0
    %2074 = vmatpush1.msra.mxu0 %v967
    %2075 = vmatprep.subr.mxu0 0.0
    %2076 = vmatpush1.msra.mxu0 %v968
    %2077 = vmatprep.subr.mxu0 0.0
    %2078 = vmatpush1.msra.mxu0 %v969
    %2079 = vmatprep.subr.mxu0 0.0
    %2080 = vmatpush1.msra.mxu0 %v970
    %2081 = vmatprep.subr.mxu0 0.0
    %2082 = vmatpush1.msra.mxu0 0.0
    %2083 = vmatprep.subr.mxu0 0.0
    %2084 = vmatpush1.msra.mxu0 0.0
    %2085 = vmatprep.subr.mxu0 0.0
    %2086 = vmatpush1.msra.mxu0 0.0
    %2087 = vmatprep.subr.mxu0 0.0
    %2088 = vmatpush1.msra.mxu0 0.0
    %2089 = vmatprep.subr.mxu0 0.0
    %2090 = vmatpush1.msra.mxu0 0.0
    %2091 = vmatprep.subr.mxu0 0.0
    %2092 = vmatpush1.msra.mxu0 0.0
    %2093 = vmatprep.subr.mxu0 0.0
    %2094 = vmatpush1.msra.mxu0 0.0
    %2095 = vmatprep.subr.mxu0 0.0
    %2096 = vmatpush1.msra.mxu0 0.0
    %2097 = vmatprep.subr.mxu0 0.0
    %2098 = vmatpush1.msra.mxu0 0.0
    %2099 = vmatprep.subr.mxu0 0.0
    %2100 = vmatpush1.msra.mxu0 0.0
    %2101 = vmatprep.subr.mxu0 0.0
    %2102 = vmatpush1.msra.mxu0 0.0
    %2103 = vmatprep.subr.mxu0 0.0
    %2104 = vmatpush1.msra.mxu0 0.0
    %2105 = vmatprep.subr.mxu0 0.0
    %2106 = vmatpush1.msra.mxu0 0.0
    %2107 = vmatprep.subr.mxu0 0.0
    %2108 = vmatpush1.msra.mxu0 0.0
    %2109 = vmatprep.subr.mxu0 0.0
    %2110 = vmatpush1.msra.mxu0 0.0
    %2111 = vmatprep.subr.mxu0 0.0
    %2112 = vmatpush1.msra.mxu0 0.0
    %2113 = vmatprep.mubr.f32.mxu0 0.0
    %2114 = vmatmul.mubr.f32.gmra.mrb[0].mxu0 %v2040
    %v2115 = vpop.f32.mrb[0].mxu0
    %v2116 = vadd.f32 0.0, %v2115
    %v2117 = vpop.f32.mrb[0].mxu0
    %2118 = vmatprep.mubr.f32.mxu0 0.0
    %2119 = vmatmul.mubr.f32.gmra.mrb[0].mxu0 %v2041
    %v2120 = vpop.f32.mrb[0].mxu0
    %v2121 = vadd.f32 0.0, %v2120
    %v2122 = vpop.f32.mrb[0].mxu0
    %2123 = vmatprep.mubr.f32.mxu0 0.0
    %2124 = vmatmul.mubr.f32.gmra.mrb[0].mxu0 %v2042
    %v2125 = vpop.f32.mrb[0].mxu0
    %v2126 = vadd.f32 0.0, %v2125
    %v2127 = vpop.f32.mrb[0].mxu0
    %2128 = vmatprep.mubr.f32.mxu0 0.0
    %2129 = vmatmul.mubr.f32.gmra.mrb[0].mxu0 %v2043
    %v2130 = vpop.f32.mrb[0].mxu0
    %v2131 = vadd.f32 0.0, %v2130
    %v2132 = vpop.f32.mrb[0].mxu0
    %2133 = vdwg.mxu0
    %v2134 = vadd.f32 %v2045, %v2116
    %v2135 = vadd.f32 %v2046, %v2121
    %v2136 = vadd.f32 %v2047, %v2126
    %v2137 = vadd.f32 %v2048, %v2131
    %v2138 = vtanh.pop %v2134
    %v2139 = vtanh.pop %v2135
    %v2140 = vtanh.pop %v2136
    %v2141 = vtanh.pop %v2137
    %s2142 = scalar_lea.vmem [#allocation2], 384
    %v2143 = vld [vmem:[%s2142] sm:$0xff]
    %v2144 = vld [vmem:[%s2142 + $0x8] sm:$0xff]
    %v2145 = vld [vmem:[%s2142 + $0x10] sm:$0xff]
    %v2146 = vld [vmem:[%s2142 + $0x18] sm:$0xff]
    %2147 = vmatprep.subr.mxu0 0.0
    %2148 = vmatpush1.msra.mxu0 %v955
    %2149 = vmatprep.subr.mxu0 0.0
    %2150 = vmatpush1.msra.mxu0 %v956
    %2151 = vmatprep.subr.mxu0 0.0
    %2152 = vmatpush1.msra.mxu0 %v957
    %2153 = vmatprep.subr.mxu0 0.0
    %2154 = vmatpush1.msra.mxu0 %v958
    %2155 = vmatprep.subr.mxu0 0.0
    %2156 = vmatpush1.msra.mxu0 %v959
    %2157 = vmatprep.subr.mxu0 0.0
    %2158 = vmatpush1.msra.mxu0 %v960
    %2159 = vmatprep.subr.mxu0 0.0
    %2160 = vmatpush1.msra.mxu0 %v961
    %2161 = vmatprep.subr.mxu0 0.0
    %2162 = vmatpush1.msra.mxu0 %v962
    %2163 = vmatprep.subr.mxu0 0.0
    %2164 = vmatpush1.msra.mxu0 %v963
    %2165 = vmatprep.subr.mxu0 0.0
    %2166 = vmatpush1.msra.mxu0 %v964
    %2167 = vmatprep.subr.mxu0 0.0
    %2168 = vmatpush1.msra.mxu0 %v965
    %2169 = vmatprep.subr.mxu0 0.0
    %2170 = vmatpush1.msra.mxu0 %v966
    %2171 = vmatprep.subr.mxu0 0.0
    %2172 = vmatpush1.msra.mxu0 %v967
    %2173 = vmatprep.subr.mxu0 0.0
    %2174 = vmatpush1.msra.mxu0 %v968
    %2175 = vmatprep.subr.mxu0 0.0
    %2176 = vmatpush1.msra.mxu0 %v969
    %2177 = vmatprep.subr.mxu0 0.0
    %2178 = vmatpush1.msra.mxu0 %v970
    %2179 = vmatprep.subr.mxu0 0.0
    %2180 = vmatpush1.msra.mxu0 0.0
    %2181 = vmatprep.subr.mxu0 0.0
    %2182 = vmatpush1.msra.mxu0 0.0
    %2183 = vmatprep.subr.mxu0 0.0
    %2184 = vmatpush1.msra.mxu0 0.0
    %2185 = vmatprep.subr.mxu0 0.0
    %2186 = vmatpush1.msra.mxu0 0.0
    %2187 = vmatprep.subr.mxu0 0.0
    %2188 = vmatpush1.msra.mxu0 0.0
    %2189 = vmatprep.subr.mxu0 0.0
    %2190 = vmatpush1.msra.mxu0 0.0
    %2191 = vmatprep.subr.mxu0 0.0
    %2192 = vmatpush1.msra.mxu0 0.0
    %2193 = vmatprep.subr.mxu0 0.0
    %2194 = vmatpush1.msra.mxu0 0.0
    %2195 = vmatprep.subr.mxu0 0.0
    %2196 = vmatpush1.msra.mxu0 0.0
    %2197 = vmatprep.subr.mxu0 0.0
    %2198 = vmatpush1.msra.mxu0 0.0
    %2199 = vmatprep.subr.mxu0 0.0
    %2200 = vmatpush1.msra.mxu0 0.0
    %2201 = vmatprep.subr.mxu0 0.0
    %2202 = vmatpush1.msra.mxu0 0.0
    %2203 = vmatprep.subr.mxu0 0.0
    %2204 = vmatpush1.msra.mxu0 0.0
    %2205 = vmatprep.subr.mxu0 0.0
    %2206 = vmatpush1.msra.mxu0 0.0
    %2207 = vmatprep.subr.mxu0 0.0
    %2208 = vmatpush1.msra.mxu0 0.0
    %2209 = vmatprep.subr.mxu0 0.0
    %2210 = vmatpush1.msra.mxu0 0.0
    %2211 = vmatprep.mubr.f32.mxu0 0.0
    %2212 = vmatmul.mubr.f32.gmra.mrb[0].mxu0 %v2138
    %v2213 = vpop.f32.mrb[0].mxu0
    %v2214 = vadd.f32 0.0, %v2213
    %v2215 = vpop.f32.mrb[0].mxu0
    %2216 = vmatprep.mubr.f32.mxu0 0.0
    %2217 = vmatmul.mubr.f32.gmra.mrb[0].mxu0 %v2139
    %v2218 = vpop.f32.mrb[0].mxu0
    %v2219 = vadd.f32 0.0, %v2218
    %v2220 = vpop.f32.mrb[0].mxu0
    %2221 = vmatprep.mubr.f32.mxu0 0.0
    %2222 = vmatmul.mubr.f32.gmra.mrb[0].mxu0 %v2140
    %v2223 = vpop.f32.mrb[0].mxu0
    %v2224 = vadd.f32 0.0, %v2223
    %v2225 = vpop.f32.mrb[0].mxu0
    %2226 = vmatprep.mubr.f32.mxu0 0.0
    %2227 = vmatmul.mubr.f32.gmra.mrb[0].mxu0 %v2141
    %v2228 = vpop.f32.mrb[0].mxu0
    %v2229 = vadd.f32 0.0, %v2228
    %v2230 = vpop.f32.mrb[0].mxu0
    %2231 = vdwg.mxu0
    %v2232 = vadd.f32 %v2143, %v2214
    %v2233 = vadd.f32 %v2144, %v2219
    %v2234 = vadd.f32 %v2145, %v2224
    %v2235 = vadd.f32 %v2146, %v2229
    %v2236 = vtanh.pop %v2232
    %v2237 = vtanh.pop %v2233
    %v2238 = vtanh.pop %v2234
    %v2239 = vtanh.pop %v2235
    %s2240 = scalar_lea.vmem [#allocation2], 416
    %v2241 = vld [vmem:[%s2240] sm:$0xff]
    %v2242 = vld [vmem:[%s2240 + $0x8] sm:$0xff]
    %v2243 = vld [vmem:[%s2240 + $0x10] sm:$0xff]
    %v2244 = vld [vmem:[%s2240 + $0x18] sm:$0xff]
    %2245 = vmatprep.subr.mxu0 0.0
    %2246 = vmatpush1.msra.mxu0 %v955
    %2247 = vmatprep.subr.mxu0 0.0
    %2248 = vmatpush1.msra.mxu0 %v956
    %2249 = vmatprep.subr.mxu0 0.0
    %2250 = vmatpush1.msra.mxu0 %v957
    %2251 = vmatprep.subr.mxu0 0.0
    %2252 = vmatpush1.msra.mxu0 %v958
    %2253 = vmatprep.subr.mxu0 0.0
    %2254 = vmatpush1.msra.mxu0 %v959
    %2255 = vmatprep.subr.mxu0 0.0
    %2256 = vmatpush1.msra.mxu0 %v960
    %2257 = vmatprep.subr.mxu0 0.0
    %2258 = vmatpush1.msra.mxu0 %v961
    %2259 = vmatprep.subr.mxu0 0.0
    %2260 = vmatpush1.msra.mxu0 %v962
    %2261 = vmatprep.subr.mxu0 0.0
    %2262 = vmatpush1.msra.mxu0 %v963
    %2263 = vmatprep.subr.mxu0 0.0
    %2264 = vmatpush1.msra.mxu0 %v964
    %2265 = vmatprep.subr.mxu0 0.0
    %2266 = vmatpush1.msra.mxu0 %v965
    %2267 = vmatprep.subr.mxu0 0.0
    %2268 = vmatpush1.msra.mxu0 %v966
    %2269 = vmatprep.subr.mxu0 0.0
    %2270 = vmatpush1.msra.mxu0 %v967
    %2271 = vmatprep.subr.mxu0 0.0
    %2272 = vmatpush1.msra.mxu0 %v968
    %2273 = vmatprep.subr.mxu0 0.0
    %2274 = vmatpush1.msra.mxu0 %v969
    %2275 = vmatprep.subr.mxu0 0.0
    %2276 = vmatpush1.msra.mxu0 %v970
    %2277 = vmatprep.subr.mxu0 0.0
    %2278 = vmatpush1.msra.mxu0 0.0
    %2279 = vmatprep.subr.mxu0 0.0
    %2280 = vmatpush1.msra.mxu0 0.0
    %2281 = vmatprep.subr.mxu0 0.0
    %2282 = vmatpush1.msra.mxu0 0.0
    %2283 = vmatprep.subr.mxu0 0.0
    %2284 = vmatpush1.msra.mxu0 0.0
    %2285 = vmatprep.subr.mxu0 0.0
    %2286 = vmatpush1.msra.mxu0 0.0
    %2287 = vmatprep.subr.mxu0 0.0
    %2288 = vmatpush1.msra.mxu0 0.0
    %2289 = vmatprep.subr.mxu0 0.0
    %2290 = vmatpush1.msra.mxu0 0.0
    %2291 = vmatprep.subr.mxu0 0.0
    %2292 = vmatpush1.msra.mxu0 0.0
    %2293 = vmatprep.subr.mxu0 0.0
    %2294 = vmatpush1.msra.mxu0 0.0
    %2295 = vmatprep.subr.mxu0 0.0
    %2296 = vmatpush1.msra.mxu0 0.0
    %2297 = vmatprep.subr.mxu0 0.0
    %2298 = vmatpush1.msra.mxu0 0.0
    %2299 = vmatprep.subr.mxu0 0.0
    %2300 = vmatpush1.msra.mxu0 0.0
    %2301 = vmatprep.subr.mxu0 0.0
    %2302 = vmatpush1.msra.mxu0 0.0
    %2303 = vmatprep.subr.mxu0 0.0
    %2304 = vmatpush1.msra.mxu0 0.0
    %2305 = vmatprep.subr.mxu0 0.0
    %2306 = vmatpush1.msra.mxu0 0.0
    %2307 = vmatprep.subr.mxu0 0.0
    %2308 = vmatpush1.msra.mxu0 0.0
    %2309 = vmatprep.mubr.f32.mxu0 0.0
    %2310 = vmatmul.mubr.f32.gmra.mrb[0].mxu0 %v2236
    %v2311 = vpop.f32.mrb[0].mxu0
    %v2312 = vadd.f32 0.0, %v2311
    %v2313 = vpop.f32.mrb[0].mxu0
    %2314 = vmatprep.mubr.f32.mxu0 0.0
    %2315 = vmatmul.mubr.f32.gmra.mrb[0].mxu0 %v2237
    %v2316 = vpop.f32.mrb[0].mxu0
    %v2317 = vadd.f32 0.0, %v2316
    %v2318 = vpop.f32.mrb[0].mxu0
    %2319 = vmatprep.mubr.f32.mxu0 0.0
    %2320 = vmatmul.mubr.f32.gmra.mrb[0].mxu0 %v2238
    %v2321 = vpop.f32.mrb[0].mxu0
    %v2322 = vadd.f32 0.0, %v2321
    %v2323 = vpop.f32.mrb[0].mxu0
    %2324 = vmatprep.mubr.f32.mxu0 0.0
    %2325 = vmatmul.mubr.f32.gmra.mrb[0].mxu0 %v2239
    %v2326 = vpop.f32.mrb[0].mxu0
    %v2327 = vadd.f32 0.0, %v2326
    %v2328 = vpop.f32.mrb[0].mxu0
    %2329 = vdwg.mxu0
    %v2330 = vadd.f32 %v2241, %v2312
    %v2331 = vadd.f32 %v2242, %v2317
    %v2332 = vadd.f32 %v2243, %v2322
    %v2333 = vadd.f32 %v2244, %v2327
    %v2334 = vtanh.pop %v2330
    %v2335 = vtanh.pop %v2331
    %v2336 = vtanh.pop %v2332
    %v2337 = vtanh.pop %v2333
    %s2338 = scalar_lea.vmem [#allocation2], 448
    %v2339 = vld [vmem:[%s2338] sm:$0xff]
    %v2340 = vld [vmem:[%s2338 + $0x8] sm:$0xff]
    %v2341 = vld [vmem:[%s2338 + $0x10] sm:$0xff]
    %v2342 = vld [vmem:[%s2338 + $0x18] sm:$0xff]
    %2343 = vmatprep.subr.mxu0 0.0
    %2344 = vmatpush1.msra.mxu0 %v955
    %2345 = vmatprep.subr.mxu0 0.0
    %2346 = vmatpush1.msra.mxu0 %v956
    %2347 = vmatprep.subr.mxu0 0.0
    %2348 = vmatpush1.msra.mxu0 %v957
    %2349 = vmatprep.subr.mxu0 0.0
    %2350 = vmatpush1.msra.mxu0 %v958
    %2351 = vmatprep.subr.mxu0 0.0
    %2352 = vmatpush1.msra.mxu0 %v959
    %2353 = vmatprep.subr.mxu0 0.0
    %2354 = vmatpush1.msra.mxu0 %v960
    %2355 = vmatprep.subr.mxu0 0.0
    %2356 = vmatpush1.msra.mxu0 %v961
    %2357 = vmatprep.subr.mxu0 0.0
    %2358 = vmatpush1.msra.mxu0 %v962
    %2359 = vmatprep.subr.mxu0 0.0
    %2360 = vmatpush1.msra.mxu0 %v963
    %2361 = vmatprep.subr.mxu0 0.0
    %2362 = vmatpush1.msra.mxu0 %v964
    %2363 = vmatprep.subr.mxu0 0.0
    %2364 = vmatpush1.msra.mxu0 %v965
    %2365 = vmatprep.subr.mxu0 0.0
    %2366 = vmatpush1.msra.mxu0 %v966
    %2367 = vmatprep.subr.mxu0 0.0
    %2368 = vmatpush1.msra.mxu0 %v967
    %2369 = vmatprep.subr.mxu0 0.0
    %2370 = vmatpush1.msra.mxu0 %v968
    %2371 = vmatprep.subr.mxu0 0.0
    %2372 = vmatpush1.msra.mxu0 %v969
    %2373 = vmatprep.subr.mxu0 0.0
    %2374 = vmatpush1.msra.mxu0 %v970
    %2375 = vmatprep.subr.mxu0 0.0
    %2376 = vmatpush1.msra.mxu0 0.0
    %2377 = vmatprep.subr.mxu0 0.0
    %2378 = vmatpush1.msra.mxu0 0.0
    %2379 = vmatprep.subr.mxu0 0.0
    %2380 = vmatpush1.msra.mxu0 0.0
    %2381 = vmatprep.subr.mxu0 0.0
    %2382 = vmatpush1.msra.mxu0 0.0
    %2383 = vmatprep.subr.mxu0 0.0
    %2384 = vmatpush1.msra.mxu0 0.0
    %2385 = vmatprep.subr.mxu0 0.0
    %2386 = vmatpush1.msra.mxu0 0.0
    %2387 = vmatprep.subr.mxu0 0.0
    %2388 = vmatpush1.msra.mxu0 0.0
    %2389 = vmatprep.subr.mxu0 0.0
    %2390 = vmatpush1.msra.mxu0 0.0
    %2391 = vmatprep.subr.mxu0 0.0
    %2392 = vmatpush1.msra.mxu0 0.0
    %2393 = vmatprep.subr.mxu0 0.0
    %2394 = vmatpush1.msra.mxu0 0.0
    %2395 = vmatprep.subr.mxu0 0.0
    %2396 = vmatpush1.msra.mxu0 0.0
    %2397 = vmatprep.subr.mxu0 0.0
    %2398 = vmatpush1.msra.mxu0 0.0
    %2399 = vmatprep.subr.mxu0 0.0
    %2400 = vmatpush1.msra.mxu0 0.0
    %2401 = vmatprep.subr.mxu0 0.0
    %2402 = vmatpush1.msra.mxu0 0.0
    %2403 = vmatprep.subr.mxu0 0.0
    %2404 = vmatpush1.msra.mxu0 0.0
    %2405 = vmatprep.subr.mxu0 0.0
    %2406 = vmatpush1.msra.mxu0 0.0
    %2407 = vmatprep.mubr.f32.mxu0 0.0
    %2408 = vmatmul.mubr.f32.gmra.mrb[0].mxu0 %v2334
    %v2409 = vpop.f32.mrb[0].mxu0
    %v2410 = vadd.f32 0.0, %v2409
    %v2411 = vpop.f32.mrb[0].mxu0
    %2412 = vmatprep.mubr.f32.mxu0 0.0
    %2413 = vmatmul.mubr.f32.gmra.mrb[0].mxu0 %v2335
    %v2414 = vpop.f32.mrb[0].mxu0
    %v2415 = vadd.f32 0.0, %v2414
    %v2416 = vpop.f32.mrb[0].mxu0
    %2417 = vmatprep.mubr.f32.mxu0 0.0
    %2418 = vmatmul.mubr.f32.gmra.mrb[0].mxu0 %v2336
    %v2419 = vpop.f32.mrb[0].mxu0
    %v2420 = vadd.f32 0.0, %v2419
    %v2421 = vpop.f32.mrb[0].mxu0
    %2422 = vmatprep.mubr.f32.mxu0 0.0
    %2423 = vmatmul.mubr.f32.gmra.mrb[0].mxu0 %v2337
    %v2424 = vpop.f32.mrb[0].mxu0
    %v2425 = vadd.f32 0.0, %v2424
    %v2426 = vpop.f32.mrb[0].mxu0
    %2427 = vdwg.mxu0
    %v2428 = vadd.f32 %v2339, %v2410
    %v2429 = vadd.f32 %v2340, %v2415
    %v2430 = vadd.f32 %v2341, %v2420
    %v2431 = vadd.f32 %v2342, %v2425
    %v2432 = vtanh.pop %v2428
    %v2433 = vtanh.pop %v2429
    %v2434 = vtanh.pop %v2430
    %v2435 = vtanh.pop %v2431
    %s2436 = scalar_lea.vmem [#allocation2], 480
    %v2437 = vld [vmem:[%s2436] sm:$0xff]
    %v2438 = vld [vmem:[%s2436 + $0x8] sm:$0xff]
    %v2439 = vld [vmem:[%s2436 + $0x10] sm:$0xff]
    %v2440 = vld [vmem:[%s2436 + $0x18] sm:$0xff]
    %2441 = vmatprep.subr.mxu0 0.0
    %2442 = vmatpush1.msra.mxu0 %v955
    %2443 = vmatprep.subr.mxu0 0.0
    %2444 = vmatpush1.msra.mxu0 %v956
    %2445 = vmatprep.subr.mxu0 0.0
    %2446 = vmatpush1.msra.mxu0 %v957
    %2447 = vmatprep.subr.mxu0 0.0
    %2448 = vmatpush1.msra.mxu0 %v958
    %2449 = vmatprep.subr.mxu0 0.0
    %2450 = vmatpush1.msra.mxu0 %v959
    %2451 = vmatprep.subr.mxu0 0.0
    %2452 = vmatpush1.msra.mxu0 %v960
    %2453 = vmatprep.subr.mxu0 0.0
    %2454 = vmatpush1.msra.mxu0 %v961
    %2455 = vmatprep.subr.mxu0 0.0
    %2456 = vmatpush1.msra.mxu0 %v962
    %2457 = vmatprep.subr.mxu0 0.0
    %2458 = vmatpush1.msra.mxu0 %v963
    %2459 = vmatprep.subr.mxu0 0.0
    %2460 = vmatpush1.msra.mxu0 %v964
    %2461 = vmatprep.subr.mxu0 0.0
    %2462 = vmatpush1.msra.mxu0 %v965
    %2463 = vmatprep.subr.mxu0 0.0
    %2464 = vmatpush1.msra.mxu0 %v966
    %2465 = vmatprep.subr.mxu0 0.0
    %2466 = vmatpush1.msra.mxu0 %v967
    %2467 = vmatprep.subr.mxu0 0.0
    %2468 = vmatpush1.msra.mxu0 %v968
    %2469 = vmatprep.subr.mxu0 0.0
    %2470 = vmatpush1.msra.mxu0 %v969
    %2471 = vmatprep.subr.mxu0 0.0
    %2472 = vmatpush1.msra.mxu0 %v970
    %2473 = vmatprep.subr.mxu0 0.0
    %2474 = vmatpush1.msra.mxu0 0.0
    %2475 = vmatprep.subr.mxu0 0.0
    %2476 = vmatpush1.msra.mxu0 0.0
    %2477 = vmatprep.subr.mxu0 0.0
    %2478 = vmatpush1.msra.mxu0 0.0
    %2479 = vmatprep.subr.mxu0 0.0
    %2480 = vmatpush1.msra.mxu0 0.0
    %2481 = vmatprep.subr.mxu0 0.0
    %2482 = vmatpush1.msra.mxu0 0.0
    %2483 = vmatprep.subr.mxu0 0.0
    %2484 = vmatpush1.msra.mxu0 0.0
    %2485 = vmatprep.subr.mxu0 0.0
    %2486 = vmatpush1.msra.mxu0 0.0
    %2487 = vmatprep.subr.mxu0 0.0
    %2488 = vmatpush1.msra.mxu0 0.0
    %2489 = vmatprep.subr.mxu0 0.0
    %2490 = vmatpush1.msra.mxu0 0.0
    %2491 = vmatprep.subr.mxu0 0.0
    %2492 = vmatpush1.msra.mxu0 0.0
    %2493 = vmatprep.subr.mxu0 0.0
    %2494 = vmatpush1.msra.mxu0 0.0
    %2495 = vmatprep.subr.mxu0 0.0
    %2496 = vmatpush1.msra.mxu0 0.0
    %2497 = vmatprep.subr.mxu0 0.0
    %2498 = vmatpush1.msra.mxu0 0.0
    %2499 = vmatprep.subr.mxu0 0.0
    %2500 = vmatpush1.msra.mxu0 0.0
    %2501 = vmatprep.subr.mxu0 0.0
    %2502 = vmatpush1.msra.mxu0 0.0
    %2503 = vmatprep.subr.mxu0 0.0
    %2504 = vmatpush1.msra.mxu0 0.0
    %2505 = vmatprep.mubr.f32.mxu0 0.0
    %2506 = vmatmul.mubr.f32.gmra.mrb[0].mxu0 %v2432
    %v2507 = vpop.f32.mrb[0].mxu0
    %v2508 = vadd.f32 0.0, %v2507
    %v2509 = vpop.f32.mrb[0].mxu0
    %2510 = vmatprep.mubr.f32.mxu0 0.0
    %2511 = vmatmul.mubr.f32.gmra.mrb[0].mxu0 %v2433
    %v2512 = vpop.f32.mrb[0].mxu0
    %v2513 = vadd.f32 0.0, %v2512
    %v2514 = vpop.f32.mrb[0].mxu0
    %2515 = vmatprep.mubr.f32.mxu0 0.0
    %2516 = vmatmul.mubr.f32.gmra.mrb[0].mxu0 %v2434
    %v2517 = vpop.f32.mrb[0].mxu0
    %v2518 = vadd.f32 0.0, %v2517
    %v2519 = vpop.f32.mrb[0].mxu0
    %2520 = vmatprep.mubr.f32.mxu0 0.0
    %2521 = vmatmul.mubr.f32.gmra.mrb[0].mxu0 %v2435
    %v2522 = vpop.f32.mrb[0].mxu0
    %v2523 = vadd.f32 0.0, %v2522
    %v2524 = vpop.f32.mrb[0].mxu0
    %2525 = vdwg.mxu0
    %v2526 = vadd.f32 %v2437, %v2508
    %v2527 = vadd.f32 %v2438, %v2513
    %v2528 = vadd.f32 %v2439, %v2518
    %v2529 = vadd.f32 %v2440, %v2523
    %v2530 = vtanh.pop %v2526
    %v2531 = vtanh.pop %v2527
    %v2532 = vtanh.pop %v2528
    %v2533 = vtanh.pop %v2529
    %s2534 = scalar_lea.vmem [#allocation2], 512
    %v2535 = vld [vmem:[%s2534] sm:$0xff]
    %v2536 = vld [vmem:[%s2534 + $0x8] sm:$0xff]
    %v2537 = vld [vmem:[%s2534 + $0x10] sm:$0xff]
    %v2538 = vld [vmem:[%s2534 + $0x18] sm:$0xff]
    %2539 = vmatprep.subr.mxu0 0.0
    %2540 = vmatpush1.msra.mxu0 %v955
    %2541 = vmatprep.subr.mxu0 0.0
    %2542 = vmatpush1.msra.mxu0 %v956
    %2543 = vmatprep.subr.mxu0 0.0
    %2544 = vmatpush1.msra.mxu0 %v957
    %2545 = vmatprep.subr.mxu0 0.0
    %2546 = vmatpush1.msra.mxu0 %v958
    %2547 = vmatprep.subr.mxu0 0.0
    %2548 = vmatpush1.msra.mxu0 %v959
    %2549 = vmatprep.subr.mxu0 0.0
    %2550 = vmatpush1.msra.mxu0 %v960
    %2551 = vmatprep.subr.mxu0 0.0
    %2552 = vmatpush1.msra.mxu0 %v961
    %2553 = vmatprep.subr.mxu0 0.0
    %2554 = vmatpush1.msra.mxu0 %v962
    %2555 = vmatprep.subr.mxu0 0.0
    %2556 = vmatpush1.msra.mxu0 %v963
    %2557 = vmatprep.subr.mxu0 0.0
    %2558 = vmatpush1.msra.mxu0 %v964
    %2559 = vmatprep.subr.mxu0 0.0
    %2560 = vmatpush1.msra.mxu0 %v965
    %2561 = vmatprep.subr.mxu0 0.0
    %2562 = vmatpush1.msra.mxu0 %v966
    %2563 = vmatprep.subr.mxu0 0.0
    %2564 = vmatpush1.msra.mxu0 %v967
    %2565 = vmatprep.subr.mxu0 0.0
    %2566 = vmatpush1.msra.mxu0 %v968
    %2567 = vmatprep.subr.mxu0 0.0
    %2568 = vmatpush1.msra.mxu0 %v969
    %2569 = vmatprep.subr.mxu0 0.0
    %2570 = vmatpush1.msra.mxu0 %v970
    %2571 = vmatprep.subr.mxu0 0.0
    %2572 = vmatpush1.msra.mxu0 0.0
    %2573 = vmatprep.subr.mxu0 0.0
    %2574 = vmatpush1.msra.mxu0 0.0
    %2575 = vmatprep.subr.mxu0 0.0
    %2576 = vmatpush1.msra.mxu0 0.0
    %2577 = vmatprep.subr.mxu0 0.0
    %2578 = vmatpush1.msra.mxu0 0.0
    %2579 = vmatprep.subr.mxu0 0.0
    %2580 = vmatpush1.msra.mxu0 0.0
    %2581 = vmatprep.subr.mxu0 0.0
    %2582 = vmatpush1.msra.mxu0 0.0
    %2583 = vmatprep.subr.mxu0 0.0
    %2584 = vmatpush1.msra.mxu0 0.0
    %2585 = vmatprep.subr.mxu0 0.0
    %2586 = vmatpush1.msra.mxu0 0.0
    %2587 = vmatprep.subr.mxu0 0.0
    %2588 = vmatpush1.msra.mxu0 0.0
    %2589 = vmatprep.subr.mxu0 0.0
    %2590 = vmatpush1.msra.mxu0 0.0
    %2591 = vmatprep.subr.mxu0 0.0
    %2592 = vmatpush1.msra.mxu0 0.0
    %2593 = vmatprep.subr.mxu0 0.0
    %2594 = vmatpush1.msra.mxu0 0.0
    %2595 = vmatprep.subr.mxu0 0.0
    %2596 = vmatpush1.msra.mxu0 0.0
    %2597 = vmatprep.subr.mxu0 0.0
    %2598 = vmatpush1.msra.mxu0 0.0
    %2599 = vmatprep.subr.mxu0 0.0
    %2600 = vmatpush1.msra.mxu0 0.0
    %2601 = vmatprep.subr.mxu0 0.0
    %2602 = vmatpush1.msra.mxu0 0.0
    %2603 = vmatprep.mubr.f32.mxu0 0.0
    %2604 = vmatmul.mubr.f32.gmra.mrb[0].mxu0 %v2530
    %v2605 = vpop.f32.mrb[0].mxu0
    %v2606 = vadd.f32 0.0, %v2605
    %v2607 = vpop.f32.mrb[0].mxu0
    %2608 = vmatprep.mubr.f32.mxu0 0.0
    %2609 = vmatmul.mubr.f32.gmra.mrb[0].mxu0 %v2531
    %v2610 = vpop.f32.mrb[0].mxu0
    %v2611 = vadd.f32 0.0, %v2610
    %v2612 = vpop.f32.mrb[0].mxu0
    %2613 = vmatprep.mubr.f32.mxu0 0.0
    %2614 = vmatmul.mubr.f32.gmra.mrb[0].mxu0 %v2532
    %v2615 = vpop.f32.mrb[0].mxu0
    %v2616 = vadd.f32 0.0, %v2615
    %v2617 = vpop.f32.mrb[0].mxu0
    %2618 = vmatprep.mubr.f32.mxu0 0.0
    %2619 = vmatmul.mubr.f32.gmra.mrb[0].mxu0 %v2533
    %v2620 = vpop.f32.mrb[0].mxu0
    %v2621 = vadd.f32 0.0, %v2620
    %v2622 = vpop.f32.mrb[0].mxu0
    %2623 = vdwg.mxu0
    %v2624 = vadd.f32 %v2535, %v2606
    %v2625 = vadd.f32 %v2536, %v2611
    %v2626 = vadd.f32 %v2537, %v2616
    %v2627 = vadd.f32 %v2538, %v2621
    %v2628 = vtanh.pop %v2624
    %v2629 = vtanh.pop %v2625
    %v2630 = vtanh.pop %v2626
    %v2631 = vtanh.pop %v2627
    %s2632 = scalar_lea.vmem [#allocation2], 544
    %v2633 = vld [vmem:[%s2632] sm:$0xff]
    %v2634 = vld [vmem:[%s2632 + $0x8] sm:$0xff]
    %v2635 = vld [vmem:[%s2632 + $0x10] sm:$0xff]
    %v2636 = vld [vmem:[%s2632 + $0x18] sm:$0xff]
    %2637 = vmatprep.subr.mxu0 0.0
    %2638 = vmatpush1.msra.mxu0 %v955
    %2639 = vmatprep.subr.mxu0 0.0
    %2640 = vmatpush1.msra.mxu0 %v956
    %2641 = vmatprep.subr.mxu0 0.0
    %2642 = vmatpush1.msra.mxu0 %v957
    %2643 = vmatprep.subr.mxu0 0.0
    %2644 = vmatpush1.msra.mxu0 %v958
    %2645 = vmatprep.subr.mxu0 0.0
    %2646 = vmatpush1.msra.mxu0 %v959
    %2647 = vmatprep.subr.mxu0 0.0
    %2648 = vmatpush1.msra.mxu0 %v960
    %2649 = vmatprep.subr.mxu0 0.0
    %2650 = vmatpush1.msra.mxu0 %v961
    %2651 = vmatprep.subr.mxu0 0.0
    %2652 = vmatpush1.msra.mxu0 %v962
    %2653 = vmatprep.subr.mxu0 0.0
    %2654 = vmatpush1.msra.mxu0 %v963
    %2655 = vmatprep.subr.mxu0 0.0
    %2656 = vmatpush1.msra.mxu0 %v964
    %2657 = vmatprep.subr.mxu0 0.0
    %2658 = vmatpush1.msra.mxu0 %v965
    %2659 = vmatprep.subr.mxu0 0.0
    %2660 = vmatpush1.msra.mxu0 %v966
    %2661 = vmatprep.subr.mxu0 0.0
    %2662 = vmatpush1.msra.mxu0 %v967
    %2663 = vmatprep.subr.mxu0 0.0
    %2664 = vmatpush1.msra.mxu0 %v968
    %2665 = vmatprep.subr.mxu0 0.0
    %2666 = vmatpush1.msra.mxu0 %v969
    %2667 = vmatprep.subr.mxu0 0.0
    %2668 = vmatpush1.msra.mxu0 %v970
    %2669 = vmatprep.subr.mxu0 0.0
    %2670 = vmatpush1.msra.mxu0 0.0
    %2671 = vmatprep.subr.mxu0 0.0
    %2672 = vmatpush1.msra.mxu0 0.0
    %2673 = vmatprep.subr.mxu0 0.0
    %2674 = vmatpush1.msra.mxu0 0.0
    %2675 = vmatprep.subr.mxu0 0.0
    %2676 = vmatpush1.msra.mxu0 0.0
    %2677 = vmatprep.subr.mxu0 0.0
    %2678 = vmatpush1.msra.mxu0 0.0
    %2679 = vmatprep.subr.mxu0 0.0
    %2680 = vmatpush1.msra.mxu0 0.0
    %2681 = vmatprep.subr.mxu0 0.0
    %2682 = vmatpush1.msra.mxu0 0.0
    %2683 = vmatprep.subr.mxu0 0.0
    %2684 = vmatpush1.msra.mxu0 0.0
    %2685 = vmatprep.subr.mxu0 0.0
    %2686 = vmatpush1.msra.mxu0 0.0
    %2687 = vmatprep.subr.mxu0 0.0
    %2688 = vmatpush1.msra.mxu0 0.0
    %2689 = vmatprep.subr.mxu0 0.0
    %2690 = vmatpush1.msra.mxu0 0.0
    %2691 = vmatprep.subr.mxu0 0.0
    %2692 = vmatpush1.msra.mxu0 0.0
    %2693 = vmatprep.subr.mxu0 0.0
    %2694 = vmatpush1.msra.mxu0 0.0
    %2695 = vmatprep.subr.mxu0 0.0
    %2696 = vmatpush1.msra.mxu0 0.0
    %2697 = vmatprep.subr.mxu0 0.0
    %2698 = vmatpush1.msra.mxu0 0.0
    %2699 = vmatprep.subr.mxu0 0.0
    %2700 = vmatpush1.msra.mxu0 0.0
    %2701 = vmatprep.mubr.f32.mxu0 0.0
    %2702 = vmatmul.mubr.f32.gmra.mrb[0].mxu0 %v2628
    %v2703 = vpop.f32.mrb[0].mxu0
    %v2704 = vadd.f32 0.0, %v2703
    %v2705 = vpop.f32.mrb[0].mxu0
    %2706 = vmatprep.mubr.f32.mxu0 0.0
    %2707 = vmatmul.mubr.f32.gmra.mrb[0].mxu0 %v2629
    %v2708 = vpop.f32.mrb[0].mxu0
    %v2709 = vadd.f32 0.0, %v2708
    %v2710 = vpop.f32.mrb[0].mxu0
    %2711 = vmatprep.mubr.f32.mxu0 0.0
    %2712 = vmatmul.mubr.f32.gmra.mrb[0].mxu0 %v2630
    %v2713 = vpop.f32.mrb[0].mxu0
    %v2714 = vadd.f32 0.0, %v2713
    %v2715 = vpop.f32.mrb[0].mxu0
    %2716 = vmatprep.mubr.f32.mxu0 0.0
    %2717 = vmatmul.mubr.f32.gmra.mrb[0].mxu0 %v2631
    %v2718 = vpop.f32.mrb[0].mxu0
    %v2719 = vadd.f32 0.0, %v2718
    %v2720 = vpop.f32.mrb[0].mxu0
    %2721 = vdwg.mxu0
    %v2722 = vadd.f32 %v2633, %v2704
    %v2723 = vadd.f32 %v2634, %v2709
    %v2724 = vadd.f32 %v2635, %v2714
    %v2725 = vadd.f32 %v2636, %v2719
    %v2726 = vtanh.pop %v2722
    %v2727 = vtanh.pop %v2723
    %v2728 = vtanh.pop %v2724
    %v2729 = vtanh.pop %v2725
    %s2730 = scalar_lea.vmem [#allocation2], 576
    %v2731 = vld [vmem:[%s2730] sm:$0xff]
    %v2732 = vld [vmem:[%s2730 + $0x8] sm:$0xff]
    %v2733 = vld [vmem:[%s2730 + $0x10] sm:$0xff]
    %v2734 = vld [vmem:[%s2730 + $0x18] sm:$0xff]
    %2735 = vmatprep.subr.mxu0 0.0
    %2736 = vmatpush1.msra.mxu0 %v955
    %2737 = vmatprep.subr.mxu0 0.0
    %2738 = vmatpush1.msra.mxu0 %v956
    %2739 = vmatprep.subr.mxu0 0.0
    %2740 = vmatpush1.msra.mxu0 %v957
    %2741 = vmatprep.subr.mxu0 0.0
    %2742 = vmatpush1.msra.mxu0 %v958
    %2743 = vmatprep.subr.mxu0 0.0
    %2744 = vmatpush1.msra.mxu0 %v959
    %2745 = vmatprep.subr.mxu0 0.0
    %2746 = vmatpush1.msra.mxu0 %v960
    %2747 = vmatprep.subr.mxu0 0.0
    %2748 = vmatpush1.msra.mxu0 %v961
    %2749 = vmatprep.subr.mxu0 0.0
    %2750 = vmatpush1.msra.mxu0 %v962
    %2751 = vmatprep.subr.mxu0 0.0
    %2752 = vmatpush1.msra.mxu0 %v963
    %2753 = vmatprep.subr.mxu0 0.0
    %2754 = vmatpush1.msra.mxu0 %v964
    %2755 = vmatprep.subr.mxu0 0.0
    %2756 = vmatpush1.msra.mxu0 %v965
    %2757 = vmatprep.subr.mxu0 0.0
    %2758 = vmatpush1.msra.mxu0 %v966
    %2759 = vmatprep.subr.mxu0 0.0
    %2760 = vmatpush1.msra.mxu0 %v967
    %2761 = vmatprep.subr.mxu0 0.0
    %2762 = vmatpush1.msra.mxu0 %v968
    %2763 = vmatprep.subr.mxu0 0.0
    %2764 = vmatpush1.msra.mxu0 %v969
    %2765 = vmatprep.subr.mxu0 0.0
    %2766 = vmatpush1.msra.mxu0 %v970
    %2767 = vmatprep.subr.mxu0 0.0
    %2768 = vmatpush1.msra.mxu0 0.0
    %2769 = vmatprep.subr.mxu0 0.0
    %2770 = vmatpush1.msra.mxu0 0.0
    %2771 = vmatprep.subr.mxu0 0.0
    %2772 = vmatpush1.msra.mxu0 0.0
    %2773 = vmatprep.subr.mxu0 0.0
    %2774 = vmatpush1.msra.mxu0 0.0
    %2775 = vmatprep.subr.mxu0 0.0
    %2776 = vmatpush1.msra.mxu0 0.0
    %2777 = vmatprep.subr.mxu0 0.0
    %2778 = vmatpush1.msra.mxu0 0.0
    %2779 = vmatprep.subr.mxu0 0.0
    %2780 = vmatpush1.msra.mxu0 0.0
    %2781 = vmatprep.subr.mxu0 0.0
    %2782 = vmatpush1.msra.mxu0 0.0
    %2783 = vmatprep.subr.mxu0 0.0
    %2784 = vmatpush1.msra.mxu0 0.0
    %2785 = vmatprep.subr.mxu0 0.0
    %2786 = vmatpush1.msra.mxu0 0.0
    %2787 = vmatprep.subr.mxu0 0.0
    %2788 = vmatpush1.msra.mxu0 0.0
    %2789 = vmatprep.subr.mxu0 0.0
    %2790 = vmatpush1.msra.mxu0 0.0
    %2791 = vmatprep.subr.mxu0 0.0
    %2792 = vmatpush1.msra.mxu0 0.0
    %2793 = vmatprep.subr.mxu0 0.0
    %2794 = vmatpush1.msra.mxu0 0.0
    %2795 = vmatprep.subr.mxu0 0.0
    %2796 = vmatpush1.msra.mxu0 0.0
    %2797 = vmatprep.subr.mxu0 0.0
    %2798 = vmatpush1.msra.mxu0 0.0
    %2799 = vmatprep.mubr.f32.mxu0 0.0
    %2800 = vmatmul.mubr.f32.gmra.mrb[0].mxu0 %v2726
    %v2801 = vpop.f32.mrb[0].mxu0
    %v2802 = vadd.f32 0.0, %v2801
    %v2803 = vpop.f32.mrb[0].mxu0
    %2804 = vmatprep.mubr.f32.mxu0 0.0
    %2805 = vmatmul.mubr.f32.gmra.mrb[0].mxu0 %v2727
    %v2806 = vpop.f32.mrb[0].mxu0
    %v2807 = vadd.f32 0.0, %v2806
    %v2808 = vpop.f32.mrb[0].mxu0
    %2809 = vmatprep.mubr.f32.mxu0 0.0
    %2810 = vmatmul.mubr.f32.gmra.mrb[0].mxu0 %v2728
    %v2811 = vpop.f32.mrb[0].mxu0
    %v2812 = vadd.f32 0.0, %v2811
    %v2813 = vpop.f32.mrb[0].mxu0
    %2814 = vmatprep.mubr.f32.mxu0 0.0
    %2815 = vmatmul.mubr.f32.gmra.mrb[0].mxu0 %v2729
    %v2816 = vpop.f32.mrb[0].mxu0
    %v2817 = vadd.f32 0.0, %v2816
    %v2818 = vpop.f32.mrb[0].mxu0
    %2819 = vdwg.mxu0
    %v2820 = vadd.f32 %v2731, %v2802
    %v2821 = vadd.f32 %v2732, %v2807
    %v2822 = vadd.f32 %v2733, %v2812
    %v2823 = vadd.f32 %v2734, %v2817
    %v2824 = vtanh.pop %v2820
    %v2825 = vtanh.pop %v2821
    %v2826 = vtanh.pop %v2822
    %v2827 = vtanh.pop %v2823
    %s2828 = scalar_lea.vmem [#allocation2], 608
    %v2829 = vld [vmem:[%s2828] sm:$0xff]
    %v2830 = vld [vmem:[%s2828 + $0x8] sm:$0xff]
    %v2831 = vld [vmem:[%s2828 + $0x10] sm:$0xff]
    %v2832 = vld [vmem:[%s2828 + $0x18] sm:$0xff]
    %2833 = vmatprep.subr.mxu0 0.0
    %2834 = vmatpush1.msra.mxu0 %v955
    %2835 = vmatprep.subr.mxu0 0.0
    %2836 = vmatpush1.msra.mxu0 %v956
    %2837 = vmatprep.subr.mxu0 0.0
    %2838 = vmatpush1.msra.mxu0 %v957
    %2839 = vmatprep.subr.mxu0 0.0
    %2840 = vmatpush1.msra.mxu0 %v958
    %2841 = vmatprep.subr.mxu0 0.0
    %2842 = vmatpush1.msra.mxu0 %v959
    %2843 = vmatprep.subr.mxu0 0.0
    %2844 = vmatpush1.msra.mxu0 %v960
    %2845 = vmatprep.subr.mxu0 0.0
    %2846 = vmatpush1.msra.mxu0 %v961
    %2847 = vmatprep.subr.mxu0 0.0
    %2848 = vmatpush1.msra.mxu0 %v962
    %2849 = vmatprep.subr.mxu0 0.0
    %2850 = vmatpush1.msra.mxu0 %v963
    %2851 = vmatprep.subr.mxu0 0.0
    %2852 = vmatpush1.msra.mxu0 %v964
    %2853 = vmatprep.subr.mxu0 0.0
    %2854 = vmatpush1.msra.mxu0 %v965
    %2855 = vmatprep.subr.mxu0 0.0
    %2856 = vmatpush1.msra.mxu0 %v966
    %2857 = vmatprep.subr.mxu0 0.0
    %2858 = vmatpush1.msra.mxu0 %v967
    %2859 = vmatprep.subr.mxu0 0.0
    %2860 = vmatpush1.msra.mxu0 %v968
    %2861 = vmatprep.subr.mxu0 0.0
    %2862 = vmatpush1.msra.mxu0 %v969
    %2863 = vmatprep.subr.mxu0 0.0
    %2864 = vmatpush1.msra.mxu0 %v970
    %2865 = vmatprep.subr.mxu0 0.0
    %2866 = vmatpush1.msra.mxu0 0.0
    %2867 = vmatprep.subr.mxu0 0.0
    %2868 = vmatpush1.msra.mxu0 0.0
    %2869 = vmatprep.subr.mxu0 0.0
    %2870 = vmatpush1.msra.mxu0 0.0
    %2871 = vmatprep.subr.mxu0 0.0
    %2872 = vmatpush1.msra.mxu0 0.0
    %2873 = vmatprep.subr.mxu0 0.0
    %2874 = vmatpush1.msra.mxu0 0.0
    %2875 = vmatprep.subr.mxu0 0.0
    %2876 = vmatpush1.msra.mxu0 0.0
    %2877 = vmatprep.subr.mxu0 0.0
    %2878 = vmatpush1.msra.mxu0 0.0
    %2879 = vmatprep.subr.mxu0 0.0
    %2880 = vmatpush1.msra.mxu0 0.0
    %2881 = vmatprep.subr.mxu0 0.0
    %2882 = vmatpush1.msra.mxu0 0.0
    %2883 = vmatprep.subr.mxu0 0.0
    %2884 = vmatpush1.msra.mxu0 0.0
    %2885 = vmatprep.subr.mxu0 0.0
    %2886 = vmatpush1.msra.mxu0 0.0
    %2887 = vmatprep.subr.mxu0 0.0
    %2888 = vmatpush1.msra.mxu0 0.0
    %2889 = vmatprep.subr.mxu0 0.0
    %2890 = vmatpush1.msra.mxu0 0.0
    %2891 = vmatprep.subr.mxu0 0.0
    %2892 = vmatpush1.msra.mxu0 0.0
    %2893 = vmatprep.subr.mxu0 0.0
    %2894 = vmatpush1.msra.mxu0 0.0
    %2895 = vmatprep.subr.mxu0 0.0
    %2896 = vmatpush1.msra.mxu0 0.0
    %2897 = vmatprep.mubr.f32.mxu0 0.0
    %2898 = vmatmul.mubr.f32.gmra.mrb[0].mxu0 %v2824
    %v2899 = vpop.f32.mrb[0].mxu0
    %v2900 = vadd.f32 0.0, %v2899
    %v2901 = vpop.f32.mrb[0].mxu0
    %2902 = vmatprep.mubr.f32.mxu0 0.0
    %2903 = vmatmul.mubr.f32.gmra.mrb[0].mxu0 %v2825
    %v2904 = vpop.f32.mrb[0].mxu0
    %v2905 = vadd.f32 0.0, %v2904
    %v2906 = vpop.f32.mrb[0].mxu0
    %2907 = vmatprep.mubr.f32.mxu0 0.0
    %2908 = vmatmul.mubr.f32.gmra.mrb[0].mxu0 %v2826
    %v2909 = vpop.f32.mrb[0].mxu0
    %v2910 = vadd.f32 0.0, %v2909
    %v2911 = vpop.f32.mrb[0].mxu0
    %2912 = vmatprep.mubr.f32.mxu0 0.0
    %2913 = vmatmul.mubr.f32.gmra.mrb[0].mxu0 %v2827
    %v2914 = vpop.f32.mrb[0].mxu0
    %v2915 = vadd.f32 0.0, %v2914
    %v2916 = vpop.f32.mrb[0].mxu0
    %2917 = vdwg.mxu0
    %v2918 = vadd.f32 %v2829, %v2900
    %v2919 = vadd.f32 %v2830, %v2905
    %v2920 = vadd.f32 %v2831, %v2910
    %v2921 = vadd.f32 %v2832, %v2915
    %v2922 = vtanh.pop %v2918
    %v2923 = vtanh.pop %v2919
    %v2924 = vtanh.pop %v2920
    %v2925 = vtanh.pop %v2921
    %s2926 = scalar_lea.vmem [#allocation2], 640
    %v2927 = vld [vmem:[%s2926] sm:$0xff]
    %v2928 = vld [vmem:[%s2926 + $0x8] sm:$0xff]
    %v2929 = vld [vmem:[%s2926 + $0x10] sm:$0xff]
    %v2930 = vld [vmem:[%s2926 + $0x18] sm:$0xff]
    %2931 = vmatprep.subr.mxu0 0.0
    %2932 = vmatpush1.msra.mxu0 %v955
    %2933 = vmatprep.subr.mxu0 0.0
    %2934 = vmatpush1.msra.mxu0 %v956
    %2935 = vmatprep.subr.mxu0 0.0
    %2936 = vmatpush1.msra.mxu0 %v957
    %2937 = vmatprep.subr.mxu0 0.0
    %2938 = vmatpush1.msra.mxu0 %v958
    %2939 = vmatprep.subr.mxu0 0.0
    %2940 = vmatpush1.msra.mxu0 %v959
    %2941 = vmatprep.subr.mxu0 0.0
    %2942 = vmatpush1.msra.mxu0 %v960
    %2943 = vmatprep.subr.mxu0 0.0
    %2944 = vmatpush1.msra.mxu0 %v961
    %2945 = vmatprep.subr.mxu0 0.0
    %2946 = vmatpush1.msra.mxu0 %v962
    %2947 = vmatprep.subr.mxu0 0.0
    %2948 = vmatpush1.msra.mxu0 %v963
    %2949 = vmatprep.subr.mxu0 0.0
    %2950 = vmatpush1.msra.mxu0 %v964
    %2951 = vmatprep.subr.mxu0 0.0
    %2952 = vmatpush1.msra.mxu0 %v965
    %2953 = vmatprep.subr.mxu0 0.0
    %2954 = vmatpush1.msra.mxu0 %v966
    %2955 = vmatprep.subr.mxu0 0.0
    %2956 = vmatpush1.msra.mxu0 %v967
    %2957 = vmatprep.subr.mxu0 0.0
    %2958 = vmatpush1.msra.mxu0 %v968
    %2959 = vmatprep.subr.mxu0 0.0
    %2960 = vmatpush1.msra.mxu0 %v969
    %2961 = vmatprep.subr.mxu0 0.0
    %2962 = vmatpush1.msra.mxu0 %v970
    %2963 = vmatprep.subr.mxu0 0.0
    %2964 = vmatpush1.msra.mxu0 0.0
    %2965 = vmatprep.subr.mxu0 0.0
    %2966 = vmatpush1.msra.mxu0 0.0
    %2967 = vmatprep.subr.mxu0 0.0
    %2968 = vmatpush1.msra.mxu0 0.0
    %2969 = vmatprep.subr.mxu0 0.0
    %2970 = vmatpush1.msra.mxu0 0.0
    %2971 = vmatprep.subr.mxu0 0.0
    %2972 = vmatpush1.msra.mxu0 0.0
    %2973 = vmatprep.subr.mxu0 0.0
    %2974 = vmatpush1.msra.mxu0 0.0
    %2975 = vmatprep.subr.mxu0 0.0
    %2976 = vmatpush1.msra.mxu0 0.0
    %2977 = vmatprep.subr.mxu0 0.0
    %2978 = vmatpush1.msra.mxu0 0.0
    %2979 = vmatprep.subr.mxu0 0.0
    %2980 = vmatpush1.msra.mxu0 0.0
    %2981 = vmatprep.subr.mxu0 0.0
    %2982 = vmatpush1.msra.mxu0 0.0
    %2983 = vmatprep.subr.mxu0 0.0
    %2984 = vmatpush1.msra.mxu0 0.0
    %2985 = vmatprep.subr.mxu0 0.0
    %2986 = vmatpush1.msra.mxu0 0.0
    %2987 = vmatprep.subr.mxu0 0.0
    %2988 = vmatpush1.msra.mxu0 0.0
    %2989 = vmatprep.subr.mxu0 0.0
    %2990 = vmatpush1.msra.mxu0 0.0
    %2991 = vmatprep.subr.mxu0 0.0
    %2992 = vmatpush1.msra.mxu0 0.0
    %2993 = vmatprep.subr.mxu0 0.0
    %2994 = vmatpush1.msra.mxu0 0.0
    %2995 = vmatprep.mubr.f32.mxu0 0.0
    %2996 = vmatmul.mubr.f32.gmra.mrb[0].mxu0 %v2922
    %v2997 = vpop.f32.mrb[0].mxu0
    %v2998 = vadd.f32 0.0, %v2997
    %v2999 = vpop.f32.mrb[0].mxu0
    %3000 = vmatprep.mubr.f32.mxu0 0.0
    %3001 = vmatmul.mubr.f32.gmra.mrb[0].mxu0 %v2923
    %v3002 = vpop.f32.mrb[0].mxu0
    %v3003 = vadd.f32 0.0, %v3002
    %v3004 = vpop.f32.mrb[0].mxu0
    %3005 = vmatprep.mubr.f32.mxu0 0.0
    %3006 = vmatmul.mubr.f32.gmra.mrb[0].mxu0 %v2924
    %v3007 = vpop.f32.mrb[0].mxu0
    %v3008 = vadd.f32 0.0, %v3007
    %v3009 = vpop.f32.mrb[0].mxu0
    %3010 = vmatprep.mubr.f32.mxu0 0.0
    %3011 = vmatmul.mubr.f32.gmra.mrb[0].mxu0 %v2925
    %v3012 = vpop.f32.mrb[0].mxu0
    %v3013 = vadd.f32 0.0, %v3012
    %v3014 = vpop.f32.mrb[0].mxu0
    %3015 = vdwg.mxu0
    %v3016 = vadd.f32 %v2927, %v2998
    %v3017 = vadd.f32 %v2928, %v3003
    %v3018 = vadd.f32 %v2929, %v3008
    %v3019 = vadd.f32 %v2930, %v3013
    %v3020 = vtanh.pop %v3016
    %v3021 = vtanh.pop %v3017
    %v3022 = vtanh.pop %v3018
    %v3023 = vtanh.pop %v3019
    %s3024 = scalar_lea.vmem [#allocation2], 672
    %v3025 = vld [vmem:[%s3024] sm:$0xff]
    %v3026 = vld [vmem:[%s3024 + $0x8] sm:$0xff]
    %v3027 = vld [vmem:[%s3024 + $0x10] sm:$0xff]
    %v3028 = vld [vmem:[%s3024 + $0x18] sm:$0xff]
    %3029 = vmatprep.subr.mxu0 0.0
    %3030 = vmatpush1.msra.mxu0 %v955
    %3031 = vmatprep.subr.mxu0 0.0
    %3032 = vmatpush1.msra.mxu0 %v956
    %3033 = vmatprep.subr.mxu0 0.0
    %3034 = vmatpush1.msra.mxu0 %v957
    %3035 = vmatprep.subr.mxu0 0.0
    %3036 = vmatpush1.msra.mxu0 %v958
    %3037 = vmatprep.subr.mxu0 0.0
    %3038 = vmatpush1.msra.mxu0 %v959
    %3039 = vmatprep.subr.mxu0 0.0
    %3040 = vmatpush1.msra.mxu0 %v960
    %3041 = vmatprep.subr.mxu0 0.0
    %3042 = vmatpush1.msra.mxu0 %v961
    %3043 = vmatprep.subr.mxu0 0.0
    %3044 = vmatpush1.msra.mxu0 %v962
    %3045 = vmatprep.subr.mxu0 0.0
    %3046 = vmatpush1.msra.mxu0 %v963
    %3047 = vmatprep.subr.mxu0 0.0
    %3048 = vmatpush1.msra.mxu0 %v964
    %3049 = vmatprep.subr.mxu0 0.0
    %3050 = vmatpush1.msra.mxu0 %v965
    %3051 = vmatprep.subr.mxu0 0.0
    %3052 = vmatpush1.msra.mxu0 %v966
    %3053 = vmatprep.subr.mxu0 0.0
    %3054 = vmatpush1.msra.mxu0 %v967
    %3055 = vmatprep.subr.mxu0 0.0
    %3056 = vmatpush1.msra.mxu0 %v968
    %3057 = vmatprep.subr.mxu0 0.0
    %3058 = vmatpush1.msra.mxu0 %v969
    %3059 = vmatprep.subr.mxu0 0.0
    %3060 = vmatpush1.msra.mxu0 %v970
    %3061 = vmatprep.subr.mxu0 0.0
    %3062 = vmatpush1.msra.mxu0 0.0
    %3063 = vmatprep.subr.mxu0 0.0
    %3064 = vmatpush1.msra.mxu0 0.0
    %3065 = vmatprep.subr.mxu0 0.0
    %3066 = vmatpush1.msra.mxu0 0.0
    %3067 = vmatprep.subr.mxu0 0.0
    %3068 = vmatpush1.msra.mxu0 0.0
    %3069 = vmatprep.subr.mxu0 0.0
    %3070 = vmatpush1.msra.mxu0 0.0
    %3071 = vmatprep.subr.mxu0 0.0
    %3072 = vmatpush1.msra.mxu0 0.0
    %3073 = vmatprep.subr.mxu0 0.0
    %3074 = vmatpush1.msra.mxu0 0.0
    %3075 = vmatprep.subr.mxu0 0.0
    %3076 = vmatpush1.msra.mxu0 0.0
    %3077 = vmatprep.subr.mxu0 0.0
    %3078 = vmatpush1.msra.mxu0 0.0
    %3079 = vmatprep.subr.mxu0 0.0
    %3080 = vmatpush1.msra.mxu0 0.0
    %3081 = vmatprep.subr.mxu0 0.0
    %3082 = vmatpush1.msra.mxu0 0.0
    %3083 = vmatprep.subr.mxu0 0.0
    %3084 = vmatpush1.msra.mxu0 0.0
    %3085 = vmatprep.subr.mxu0 0.0
    %3086 = vmatpush1.msra.mxu0 0.0
    %3087 = vmatprep.subr.mxu0 0.0
    %3088 = vmatpush1.msra.mxu0 0.0
    %3089 = vmatprep.subr.mxu0 0.0
    %3090 = vmatpush1.msra.mxu0 0.0
    %3091 = vmatprep.subr.mxu0 0.0
    %3092 = vmatpush1.msra.mxu0 0.0
    %3093 = vmatprep.mubr.f32.mxu0 0.0
    %3094 = vmatmul.mubr.f32.gmra.mrb[0].mxu0 %v3020
    %v3095 = vpop.f32.mrb[0].mxu0
    %v3096 = vadd.f32 0.0, %v3095
    %v3097 = vpop.f32.mrb[0].mxu0
    %3098 = vmatprep.mubr.f32.mxu0 0.0
    %3099 = vmatmul.mubr.f32.gmra.mrb[0].mxu0 %v3021
    %v3100 = vpop.f32.mrb[0].mxu0
    %v3101 = vadd.f32 0.0, %v3100
    %v3102 = vpop.f32.mrb[0].mxu0
    %3103 = vmatprep.mubr.f32.mxu0 0.0
    %3104 = vmatmul.mubr.f32.gmra.mrb[0].mxu0 %v3022
    %v3105 = vpop.f32.mrb[0].mxu0
    %v3106 = vadd.f32 0.0, %v3105
    %v3107 = vpop.f32.mrb[0].mxu0
    %3108 = vmatprep.mubr.f32.mxu0 0.0
    %3109 = vmatmul.mubr.f32.gmra.mrb[0].mxu0 %v3023
    %v3110 = vpop.f32.mrb[0].mxu0
    %v3111 = vadd.f32 0.0, %v3110
    %v3112 = vpop.f32.mrb[0].mxu0
    %3113 = vdwg.mxu0
    %v3114 = vadd.f32 %v3025, %v3096
    %v3115 = vadd.f32 %v3026, %v3101
    %v3116 = vadd.f32 %v3027, %v3106
    %v3117 = vadd.f32 %v3028, %v3111
    %v3118 = vtanh.pop %v3114
    %v3119 = vtanh.pop %v3115
    %v3120 = vtanh.pop %v3116
    %v3121 = vtanh.pop %v3117
    %s3122 = scalar_lea.vmem [#allocation2], 704
    %v3123 = vld [vmem:[%s3122] sm:$0xff]
    %v3124 = vld [vmem:[%s3122 + $0x8] sm:$0xff]
    %v3125 = vld [vmem:[%s3122 + $0x10] sm:$0xff]
    %v3126 = vld [vmem:[%s3122 + $0x18] sm:$0xff]
    %3127 = vmatprep.subr.mxu0 0.0
    %3128 = vmatpush1.msra.mxu0 %v955
    %3129 = vmatprep.subr.mxu0 0.0
    %3130 = vmatpush1.msra.mxu0 %v956
    %3131 = vmatprep.subr.mxu0 0.0
    %3132 = vmatpush1.msra.mxu0 %v957
    %3133 = vmatprep.subr.mxu0 0.0
    %3134 = vmatpush1.msra.mxu0 %v958
    %3135 = vmatprep.subr.mxu0 0.0
    %3136 = vmatpush1.msra.mxu0 %v959
    %3137 = vmatprep.subr.mxu0 0.0
    %3138 = vmatpush1.msra.mxu0 %v960
    %3139 = vmatprep.subr.mxu0 0.0
    %3140 = vmatpush1.msra.mxu0 %v961
    %3141 = vmatprep.subr.mxu0 0.0
    %3142 = vmatpush1.msra.mxu0 %v962
    %3143 = vmatprep.subr.mxu0 0.0
    %3144 = vmatpush1.msra.mxu0 %v963
    %3145 = vmatprep.subr.mxu0 0.0
    %3146 = vmatpush1.msra.mxu0 %v964
    %3147 = vmatprep.subr.mxu0 0.0
    %3148 = vmatpush1.msra.mxu0 %v965
    %3149 = vmatprep.subr.mxu0 0.0
    %3150 = vmatpush1.msra.mxu0 %v966
    %3151 = vmatprep.subr.mxu0 0.0
    %3152 = vmatpush1.msra.mxu0 %v967
    %3153 = vmatprep.subr.mxu0 0.0
    %3154 = vmatpush1.msra.mxu0 %v968
    %3155 = vmatprep.subr.mxu0 0.0
    %3156 = vmatpush1.msra.mxu0 %v969
    %3157 = vmatprep.subr.mxu0 0.0
    %3158 = vmatpush1.msra.mxu0 %v970
    %3159 = vmatprep.subr.mxu0 0.0
    %3160 = vmatpush1.msra.mxu0 0.0
    %3161 = vmatprep.subr.mxu0 0.0
    %3162 = vmatpush1.msra.mxu0 0.0
    %3163 = vmatprep.subr.mxu0 0.0
    %3164 = vmatpush1.msra.mxu0 0.0
    %3165 = vmatprep.subr.mxu0 0.0
    %3166 = vmatpush1.msra.mxu0 0.0
    %3167 = vmatprep.subr.mxu0 0.0
    %3168 = vmatpush1.msra.mxu0 0.0
    %3169 = vmatprep.subr.mxu0 0.0
    %3170 = vmatpush1.msra.mxu0 0.0
    %3171 = vmatprep.subr.mxu0 0.0
    %3172 = vmatpush1.msra.mxu0 0.0
    %3173 = vmatprep.subr.mxu0 0.0
    %3174 = vmatpush1.msra.mxu0 0.0
    %3175 = vmatprep.subr.mxu0 0.0
    %3176 = vmatpush1.msra.mxu0 0.0
    %3177 = vmatprep.subr.mxu0 0.0
    %3178 = vmatpush1.msra.mxu0 0.0
    %3179 = vmatprep.subr.mxu0 0.0
    %3180 = vmatpush1.msra.mxu0 0.0
    %3181 = vmatprep.subr.mxu0 0.0
    %3182 = vmatpush1.msra.mxu0 0.0
    %3183 = vmatprep.subr.mxu0 0.0
    %3184 = vmatpush1.msra.mxu0 0.0
    %3185 = vmatprep.subr.mxu0 0.0
    %3186 = vmatpush1.msra.mxu0 0.0
    %3187 = vmatprep.subr.mxu0 0.0
    %3188 = vmatpush1.msra.mxu0 0.0
    %3189 = vmatprep.subr.mxu0 0.0
    %3190 = vmatpush1.msra.mxu0 0.0
    %3191 = vmatprep.mubr.f32.mxu0 0.0
    %3192 = vmatmul.mubr.f32.gmra.mrb[0].mxu0 %v3118
    %v3193 = vpop.f32.mrb[0].mxu0
    %v3194 = vadd.f32 0.0, %v3193
    %v3195 = vpop.f32.mrb[0].mxu0
    %3196 = vmatprep.mubr.f32.mxu0 0.0
    %3197 = vmatmul.mubr.f32.gmra.mrb[0].mxu0 %v3119
    %v3198 = vpop.f32.mrb[0].mxu0
    %v3199 = vadd.f32 0.0, %v3198
    %v3200 = vpop.f32.mrb[0].mxu0
    %3201 = vmatprep.mubr.f32.mxu0 0.0
    %3202 = vmatmul.mubr.f32.gmra.mrb[0].mxu0 %v3120
    %v3203 = vpop.f32.mrb[0].mxu0
    %v3204 = vadd.f32 0.0, %v3203
    %v3205 = vpop.f32.mrb[0].mxu0
    %3206 = vmatprep.mubr.f32.mxu0 0.0
    %3207 = vmatmul.mubr.f32.gmra.mrb[0].mxu0 %v3121
    %v3208 = vpop.f32.mrb[0].mxu0
    %v3209 = vadd.f32 0.0, %v3208
    %v3210 = vpop.f32.mrb[0].mxu0
    %3211 = vdwg.mxu0
    %v3212 = vadd.f32 %v3123, %v3194
    %v3213 = vadd.f32 %v3124, %v3199
    %v3214 = vadd.f32 %v3125, %v3204
    %v3215 = vadd.f32 %v3126, %v3209
    %v3216 = vtanh.pop %v3212
    %v3217 = vtanh.pop %v3213
    %v3218 = vtanh.pop %v3214
    %v3219 = vtanh.pop %v3215
    %s3220 = scalar_lea.vmem [#allocation2], 736
    %v3221 = vld [vmem:[%s3220] sm:$0xff]
    %v3222 = vld [vmem:[%s3220 + $0x8] sm:$0xff]
    %v3223 = vld [vmem:[%s3220 + $0x10] sm:$0xff]
    %v3224 = vld [vmem:[%s3220 + $0x18] sm:$0xff]
    %3225 = vmatprep.subr.mxu0 0.0
    %3226 = vmatpush1.msra.mxu0 %v955
    %3227 = vmatprep.subr.mxu0 0.0
    %3228 = vmatpush1.msra.mxu0 %v956
    %3229 = vmatprep.subr.mxu0 0.0
    %3230 = vmatpush1.msra.mxu0 %v957
    %3231 = vmatprep.subr.mxu0 0.0
    %3232 = vmatpush1.msra.mxu0 %v958
    %3233 = vmatprep.subr.mxu0 0.0
    %3234 = vmatpush1.msra.mxu0 %v959
    %3235 = vmatprep.subr.mxu0 0.0
    %3236 = vmatpush1.msra.mxu0 %v960
    %3237 = vmatprep.subr.mxu0 0.0
    %3238 = vmatpush1.msra.mxu0 %v961
    %3239 = vmatprep.subr.mxu0 0.0
    %3240 = vmatpush1.msra.mxu0 %v962
    %3241 = vmatprep.subr.mxu0 0.0
    %3242 = vmatpush1.msra.mxu0 %v963
    %3243 = vmatprep.subr.mxu0 0.0
    %3244 = vmatpush1.msra.mxu0 %v964
    %3245 = vmatprep.subr.mxu0 0.0
    %3246 = vmatpush1.msra.mxu0 %v965
    %3247 = vmatprep.subr.mxu0 0.0
    %3248 = vmatpush1.msra.mxu0 %v966
    %3249 = vmatprep.subr.mxu0 0.0
    %3250 = vmatpush1.msra.mxu0 %v967
    %3251 = vmatprep.subr.mxu0 0.0
    %3252 = vmatpush1.msra.mxu0 %v968
    %3253 = vmatprep.subr.mxu0 0.0
    %3254 = vmatpush1.msra.mxu0 %v969
    %3255 = vmatprep.subr.mxu0 0.0
    %3256 = vmatpush1.msra.mxu0 %v970
    %3257 = vmatprep.subr.mxu0 0.0
    %3258 = vmatpush1.msra.mxu0 0.0
    %3259 = vmatprep.subr.mxu0 0.0
    %3260 = vmatpush1.msra.mxu0 0.0
    %3261 = vmatprep.subr.mxu0 0.0
    %3262 = vmatpush1.msra.mxu0 0.0
    %3263 = vmatprep.subr.mxu0 0.0
    %3264 = vmatpush1.msra.mxu0 0.0
    %3265 = vmatprep.subr.mxu0 0.0
    %3266 = vmatpush1.msra.mxu0 0.0
    %3267 = vmatprep.subr.mxu0 0.0
    %3268 = vmatpush1.msra.mxu0 0.0
    %3269 = vmatprep.subr.mxu0 0.0
    %3270 = vmatpush1.msra.mxu0 0.0
    %3271 = vmatprep.subr.mxu0 0.0
    %3272 = vmatpush1.msra.mxu0 0.0
    %3273 = vmatprep.subr.mxu0 0.0
    %3274 = vmatpush1.msra.mxu0 0.0
    %3275 = vmatprep.subr.mxu0 0.0
    %3276 = vmatpush1.msra.mxu0 0.0
    %3277 = vmatprep.subr.mxu0 0.0
    %3278 = vmatpush1.msra.mxu0 0.0
    %3279 = vmatprep.subr.mxu0 0.0
    %3280 = vmatpush1.msra.mxu0 0.0
    %3281 = vmatprep.subr.mxu0 0.0
    %3282 = vmatpush1.msra.mxu0 0.0
    %3283 = vmatprep.subr.mxu0 0.0
    %3284 = vmatpush1.msra.mxu0 0.0
    %3285 = vmatprep.subr.mxu0 0.0
    %3286 = vmatpush1.msra.mxu0 0.0
    %3287 = vmatprep.subr.mxu0 0.0
    %3288 = vmatpush1.msra.mxu0 0.0
    %3289 = vmatprep.mubr.f32.mxu0 0.0
    %3290 = vmatmul.mubr.f32.gmra.mrb[0].mxu0 %v3216
    %v3291 = vpop.f32.mrb[0].mxu0
    %v3292 = vadd.f32 0.0, %v3291
    %v3293 = vpop.f32.mrb[0].mxu0
    %3294 = vmatprep.mubr.f32.mxu0 0.0
    %3295 = vmatmul.mubr.f32.gmra.mrb[0].mxu0 %v3217
    %v3296 = vpop.f32.mrb[0].mxu0
    %v3297 = vadd.f32 0.0, %v3296
    %v3298 = vpop.f32.mrb[0].mxu0
    %3299 = vmatprep.mubr.f32.mxu0 0.0
    %3300 = vmatmul.mubr.f32.gmra.mrb[0].mxu0 %v3218
    %v3301 = vpop.f32.mrb[0].mxu0
    %v3302 = vadd.f32 0.0, %v3301
    %v3303 = vpop.f32.mrb[0].mxu0
    %3304 = vmatprep.mubr.f32.mxu0 0.0
    %3305 = vmatmul.mubr.f32.gmra.mrb[0].mxu0 %v3219
    %v3306 = vpop.f32.mrb[0].mxu0
    %v3307 = vadd.f32 0.0, %v3306
    %v3308 = vpop.f32.mrb[0].mxu0
    %3309 = vdwg.mxu0
    %v3310 = vadd.f32 %v3221, %v3292
    %v3311 = vadd.f32 %v3222, %v3297
    %v3312 = vadd.f32 %v3223, %v3302
    %v3313 = vadd.f32 %v3224, %v3307
    %v3314 = vtanh.pop %v3310
    %v3315 = vtanh.pop %v3311
    %v3316 = vtanh.pop %v3312
    %v3317 = vtanh.pop %v3313
    %s3318 = scalar_lea.vmem [#allocation2], 768
    %v3319 = vld [vmem:[%s3318] sm:$0xff]
    %v3320 = vld [vmem:[%s3318 + $0x8] sm:$0xff]
    %v3321 = vld [vmem:[%s3318 + $0x10] sm:$0xff]
    %v3322 = vld [vmem:[%s3318 + $0x18] sm:$0xff]
    %3323 = vmatprep.subr.mxu0 0.0
    %3324 = vmatpush1.msra.mxu0 %v955
    %3325 = vmatprep.subr.mxu0 0.0
    %3326 = vmatpush1.msra.mxu0 %v956
    %3327 = vmatprep.subr.mxu0 0.0
    %3328 = vmatpush1.msra.mxu0 %v957
    %3329 = vmatprep.subr.mxu0 0.0
    %3330 = vmatpush1.msra.mxu0 %v958
    %3331 = vmatprep.subr.mxu0 0.0
    %3332 = vmatpush1.msra.mxu0 %v959
    %3333 = vmatprep.subr.mxu0 0.0
    %3334 = vmatpush1.msra.mxu0 %v960
    %3335 = vmatprep.subr.mxu0 0.0
    %3336 = vmatpush1.msra.mxu0 %v961
    %3337 = vmatprep.subr.mxu0 0.0
    %3338 = vmatpush1.msra.mxu0 %v962
    %3339 = vmatprep.subr.mxu0 0.0
    %3340 = vmatpush1.msra.mxu0 %v963
    %3341 = vmatprep.subr.mxu0 0.0
    %3342 = vmatpush1.msra.mxu0 %v964
    %3343 = vmatprep.subr.mxu0 0.0
    %3344 = vmatpush1.msra.mxu0 %v965
    %3345 = vmatprep.subr.mxu0 0.0
    %3346 = vmatpush1.msra.mxu0 %v966
    %3347 = vmatprep.subr.mxu0 0.0
    %3348 = vmatpush1.msra.mxu0 %v967
    %3349 = vmatprep.subr.mxu0 0.0
    %3350 = vmatpush1.msra.mxu0 %v968
    %3351 = vmatprep.subr.mxu0 0.0
    %3352 = vmatpush1.msra.mxu0 %v969
    %3353 = vmatprep.subr.mxu0 0.0
    %3354 = vmatpush1.msra.mxu0 %v970
    %3355 = vmatprep.subr.mxu0 0.0
    %3356 = vmatpush1.msra.mxu0 0.0
    %3357 = vmatprep.subr.mxu0 0.0
    %3358 = vmatpush1.msra.mxu0 0.0
    %3359 = vmatprep.subr.mxu0 0.0
    %3360 = vmatpush1.msra.mxu0 0.0
    %3361 = vmatprep.subr.mxu0 0.0
    %3362 = vmatpush1.msra.mxu0 0.0
    %3363 = vmatprep.subr.mxu0 0.0
    %3364 = vmatpush1.msra.mxu0 0.0
    %3365 = vmatprep.subr.mxu0 0.0
    %3366 = vmatpush1.msra.mxu0 0.0
    %3367 = vmatprep.subr.mxu0 0.0
    %3368 = vmatpush1.msra.mxu0 0.0
    %3369 = vmatprep.subr.mxu0 0.0
    %3370 = vmatpush1.msra.mxu0 0.0
    %3371 = vmatprep.subr.mxu0 0.0
    %3372 = vmatpush1.msra.mxu0 0.0
    %3373 = vmatprep.subr.mxu0 0.0
    %3374 = vmatpush1.msra.mxu0 0.0
    %3375 = vmatprep.subr.mxu0 0.0
    %3376 = vmatpush1.msra.mxu0 0.0
    %3377 = vmatprep.subr.mxu0 0.0
    %3378 = vmatpush1.msra.mxu0 0.0
    %3379 = vmatprep.subr.mxu0 0.0
    %3380 = vmatpush1.msra.mxu0 0.0
    %3381 = vmatprep.subr.mxu0 0.0
    %3382 = vmatpush1.msra.mxu0 0.0
    %3383 = vmatprep.subr.mxu0 0.0
    %3384 = vmatpush1.msra.mxu0 0.0
    %3385 = vmatprep.subr.mxu0 0.0
    %3386 = vmatpush1.msra.mxu0 0.0
    %3387 = vmatprep.mubr.f32.mxu0 0.0
    %3388 = vmatmul.mubr.f32.gmra.mrb[0].mxu0 %v3314
    %v3389 = vpop.f32.mrb[0].mxu0
    %v3390 = vadd.f32 0.0, %v3389
    %v3391 = vpop.f32.mrb[0].mxu0
    %3392 = vmatprep.mubr.f32.mxu0 0.0
    %3393 = vmatmul.mubr.f32.gmra.mrb[0].mxu0 %v3315
    %v3394 = vpop.f32.mrb[0].mxu0
    %v3395 = vadd.f32 0.0, %v3394
    %v3396 = vpop.f32.mrb[0].mxu0
    %3397 = vmatprep.mubr.f32.mxu0 0.0
    %3398 = vmatmul.mubr.f32.gmra.mrb[0].mxu0 %v3316
    %v3399 = vpop.f32.mrb[0].mxu0
    %v3400 = vadd.f32 0.0, %v3399
    %v3401 = vpop.f32.mrb[0].mxu0
    %3402 = vmatprep.mubr.f32.mxu0 0.0
    %3403 = vmatmul.mubr.f32.gmra.mrb[0].mxu0 %v3317
    %v3404 = vpop.f32.mrb[0].mxu0
    %v3405 = vadd.f32 0.0, %v3404
    %v3406 = vpop.f32.mrb[0].mxu0
    %3407 = vdwg.mxu0
    %v3408 = vadd.f32 %v3319, %v3390
    %v3409 = vadd.f32 %v3320, %v3395
    %v3410 = vadd.f32 %v3321, %v3400
    %v3411 = vadd.f32 %v3322, %v3405
    %v3412 = vtanh.pop %v3408
    %v3413 = vtanh.pop %v3409
    %v3414 = vtanh.pop %v3410
    %v3415 = vtanh.pop %v3411
    %s3416 = scalar_lea.vmem [#allocation2], 800
    %v3417 = vld [vmem:[%s3416] sm:$0xff]
    %v3418 = vld [vmem:[%s3416 + $0x8] sm:$0xff]
    %v3419 = vld [vmem:[%s3416 + $0x10] sm:$0xff]
    %v3420 = vld [vmem:[%s3416 + $0x18] sm:$0xff]
    %3421 = vmatprep.subr.mxu0 0.0
    %3422 = vmatpush1.msra.mxu0 %v955
    %3423 = vmatprep.subr.mxu0 0.0
    %3424 = vmatpush1.msra.mxu0 %v956
    %3425 = vmatprep.subr.mxu0 0.0
    %3426 = vmatpush1.msra.mxu0 %v957
    %3427 = vmatprep.subr.mxu0 0.0
    %3428 = vmatpush1.msra.mxu0 %v958
    %3429 = vmatprep.subr.mxu0 0.0
    %3430 = vmatpush1.msra.mxu0 %v959
    %3431 = vmatprep.subr.mxu0 0.0
    %3432 = vmatpush1.msra.mxu0 %v960
    %3433 = vmatprep.subr.mxu0 0.0
    %3434 = vmatpush1.msra.mxu0 %v961
    %3435 = vmatprep.subr.mxu0 0.0
    %3436 = vmatpush1.msra.mxu0 %v962
    %3437 = vmatprep.subr.mxu0 0.0
    %3438 = vmatpush1.msra.mxu0 %v963
    %3439 = vmatprep.subr.mxu0 0.0
    %3440 = vmatpush1.msra.mxu0 %v964
    %3441 = vmatprep.subr.mxu0 0.0
    %3442 = vmatpush1.msra.mxu0 %v965
    %3443 = vmatprep.subr.mxu0 0.0
    %3444 = vmatpush1.msra.mxu0 %v966
    %3445 = vmatprep.subr.mxu0 0.0
    %3446 = vmatpush1.msra.mxu0 %v967
    %3447 = vmatprep.subr.mxu0 0.0
    %3448 = vmatpush1.msra.mxu0 %v968
    %3449 = vmatprep.subr.mxu0 0.0
    %3450 = vmatpush1.msra.mxu0 %v969
    %3451 = vmatprep.subr.mxu0 0.0
    %3452 = vmatpush1.msra.mxu0 %v970
    %3453 = vmatprep.subr.mxu0 0.0
    %3454 = vmatpush1.msra.mxu0 0.0
    %3455 = vmatprep.subr.mxu0 0.0
    %3456 = vmatpush1.msra.mxu0 0.0
    %3457 = vmatprep.subr.mxu0 0.0
    %3458 = vmatpush1.msra.mxu0 0.0
    %3459 = vmatprep.subr.mxu0 0.0
    %3460 = vmatpush1.msra.mxu0 0.0
    %3461 = vmatprep.subr.mxu0 0.0
    %3462 = vmatpush1.msra.mxu0 0.0
    %3463 = vmatprep.subr.mxu0 0.0
    %3464 = vmatpush1.msra.mxu0 0.0
    %3465 = vmatprep.subr.mxu0 0.0
    %3466 = vmatpush1.msra.mxu0 0.0
    %3467 = vmatprep.subr.mxu0 0.0
    %3468 = vmatpush1.msra.mxu0 0.0
    %3469 = vmatprep.subr.mxu0 0.0
    %3470 = vmatpush1.msra.mxu0 0.0
    %3471 = vmatprep.subr.mxu0 0.0
    %3472 = vmatpush1.msra.mxu0 0.0
    %3473 = vmatprep.subr.mxu0 0.0
    %3474 = vmatpush1.msra.mxu0 0.0
    %3475 = vmatprep.subr.mxu0 0.0
    %3476 = vmatpush1.msra.mxu0 0.0
    %3477 = vmatprep.subr.mxu0 0.0
    %3478 = vmatpush1.msra.mxu0 0.0
    %3479 = vmatprep.subr.mxu0 0.0
    %3480 = vmatpush1.msra.mxu0 0.0
    %3481 = vmatprep.subr.mxu0 0.0
    %3482 = vmatpush1.msra.mxu0 0.0
    %3483 = vmatprep.subr.mxu0 0.0
    %3484 = vmatpush1.msra.mxu0 0.0
    %3485 = vmatprep.mubr.f32.mxu0 0.0
    %3486 = vmatmul.mubr.f32.gmra.mrb[0].mxu0 %v3412
    %v3487 = vpop.f32.mrb[0].mxu0
    %v3488 = vadd.f32 0.0, %v3487
    %v3489 = vpop.f32.mrb[0].mxu0
    %3490 = vmatprep.mubr.f32.mxu0 0.0
    %3491 = vmatmul.mubr.f32.gmra.mrb[0].mxu0 %v3413
    %v3492 = vpop.f32.mrb[0].mxu0
    %v3493 = vadd.f32 0.0, %v3492
    %v3494 = vpop.f32.mrb[0].mxu0
    %3495 = vmatprep.mubr.f32.mxu0 0.0
    %3496 = vmatmul.mubr.f32.gmra.mrb[0].mxu0 %v3414
    %v3497 = vpop.f32.mrb[0].mxu0
    %v3498 = vadd.f32 0.0, %v3497
    %v3499 = vpop.f32.mrb[0].mxu0
    %3500 = vmatprep.mubr.f32.mxu0 0.0
    %3501 = vmatmul.mubr.f32.gmra.mrb[0].mxu0 %v3415
    %v3502 = vpop.f32.mrb[0].mxu0
    %v3503 = vadd.f32 0.0, %v3502
    %v3504 = vpop.f32.mrb[0].mxu0
    %3505 = vdwg.mxu0
    %v3506 = vadd.f32 %v3417, %v3488
    %v3507 = vadd.f32 %v3418, %v3493
    %v3508 = vadd.f32 %v3419, %v3498
    %v3509 = vadd.f32 %v3420, %v3503
    %v3510 = vtanh.pop %v3506
    %v3511 = vtanh.pop %v3507
    %v3512 = vtanh.pop %v3508
    %v3513 = vtanh.pop %v3509
    %s3514 = scalar_lea.vmem [#allocation2], 832
    %v3515 = vld [vmem:[%s3514] sm:$0xff]
    %v3516 = vld [vmem:[%s3514 + $0x8] sm:$0xff]
    %v3517 = vld [vmem:[%s3514 + $0x10] sm:$0xff]
    %v3518 = vld [vmem:[%s3514 + $0x18] sm:$0xff]
    %3519 = vmatprep.subr.mxu0 0.0
    %3520 = vmatpush1.msra.mxu0 %v955
    %3521 = vmatprep.subr.mxu0 0.0
    %3522 = vmatpush1.msra.mxu0 %v956
    %3523 = vmatprep.subr.mxu0 0.0
    %3524 = vmatpush1.msra.mxu0 %v957
    %3525 = vmatprep.subr.mxu0 0.0
    %3526 = vmatpush1.msra.mxu0 %v958
    %3527 = vmatprep.subr.mxu0 0.0
    %3528 = vmatpush1.msra.mxu0 %v959
    %3529 = vmatprep.subr.mxu0 0.0
    %3530 = vmatpush1.msra.mxu0 %v960
    %3531 = vmatprep.subr.mxu0 0.0
    %3532 = vmatpush1.msra.mxu0 %v961
    %3533 = vmatprep.subr.mxu0 0.0
    %3534 = vmatpush1.msra.mxu0 %v962
    %3535 = vmatprep.subr.mxu0 0.0
    %3536 = vmatpush1.msra.mxu0 %v963
    %3537 = vmatprep.subr.mxu0 0.0
    %3538 = vmatpush1.msra.mxu0 %v964
    %3539 = vmatprep.subr.mxu0 0.0
    %3540 = vmatpush1.msra.mxu0 %v965
    %3541 = vmatprep.subr.mxu0 0.0
    %3542 = vmatpush1.msra.mxu0 %v966
    %3543 = vmatprep.subr.mxu0 0.0
    %3544 = vmatpush1.msra.mxu0 %v967
    %3545 = vmatprep.subr.mxu0 0.0
    %3546 = vmatpush1.msra.mxu0 %v968
    %3547 = vmatprep.subr.mxu0 0.0
    %3548 = vmatpush1.msra.mxu0 %v969
    %3549 = vmatprep.subr.mxu0 0.0
    %3550 = vmatpush1.msra.mxu0 %v970
    %3551 = vmatprep.subr.mxu0 0.0
    %3552 = vmatpush1.msra.mxu0 0.0
    %3553 = vmatprep.subr.mxu0 0.0
    %3554 = vmatpush1.msra.mxu0 0.0
    %3555 = vmatprep.subr.mxu0 0.0
    %3556 = vmatpush1.msra.mxu0 0.0
    %3557 = vmatprep.subr.mxu0 0.0
    %3558 = vmatpush1.msra.mxu0 0.0
    %3559 = vmatprep.subr.mxu0 0.0
    %3560 = vmatpush1.msra.mxu0 0.0
    %3561 = vmatprep.subr.mxu0 0.0
    %3562 = vmatpush1.msra.mxu0 0.0
    %3563 = vmatprep.subr.mxu0 0.0
    %3564 = vmatpush1.msra.mxu0 0.0
    %3565 = vmatprep.subr.mxu0 0.0
    %3566 = vmatpush1.msra.mxu0 0.0
    %3567 = vmatprep.subr.mxu0 0.0
    %3568 = vmatpush1.msra.mxu0 0.0
    %3569 = vmatprep.subr.mxu0 0.0
    %3570 = vmatpush1.msra.mxu0 0.0
    %3571 = vmatprep.subr.mxu0 0.0
    %3572 = vmatpush1.msra.mxu0 0.0
    %3573 = vmatprep.subr.mxu0 0.0
    %3574 = vmatpush1.msra.mxu0 0.0
    %3575 = vmatprep.subr.mxu0 0.0
    %3576 = vmatpush1.msra.mxu0 0.0
    %3577 = vmatprep.subr.mxu0 0.0
    %3578 = vmatpush1.msra.mxu0 0.0
    %3579 = vmatprep.subr.mxu0 0.0
    %3580 = vmatpush1.msra.mxu0 0.0
    %3581 = vmatprep.subr.mxu0 0.0
    %3582 = vmatpush1.msra.mxu0 0.0
    %3583 = vmatprep.mubr.f32.mxu0 0.0
    %3584 = vmatmul.mubr.f32.gmra.mrb[0].mxu0 %v3510
    %v3585 = vpop.f32.mrb[0].mxu0
    %v3586 = vadd.f32 0.0, %v3585
    %v3587 = vpop.f32.mrb[0].mxu0
    %3588 = vmatprep.mubr.f32.mxu0 0.0
    %3589 = vmatmul.mubr.f32.gmra.mrb[0].mxu0 %v3511
    %v3590 = vpop.f32.mrb[0].mxu0
    %v3591 = vadd.f32 0.0, %v3590
    %v3592 = vpop.f32.mrb[0].mxu0
    %3593 = vmatprep.mubr.f32.mxu0 0.0
    %3594 = vmatmul.mubr.f32.gmra.mrb[0].mxu0 %v3512
    %v3595 = vpop.f32.mrb[0].mxu0
    %v3596 = vadd.f32 0.0, %v3595
    %v3597 = vpop.f32.mrb[0].mxu0
    %3598 = vmatprep.mubr.f32.mxu0 0.0
    %3599 = vmatmul.mubr.f32.gmra.mrb[0].mxu0 %v3513
    %v3600 = vpop.f32.mrb[0].mxu0
    %v3601 = vadd.f32 0.0, %v3600
    %v3602 = vpop.f32.mrb[0].mxu0
    %3603 = vdwg.mxu0
    %v3604 = vadd.f32 %v3515, %v3586
    %v3605 = vadd.f32 %v3516, %v3591
    %v3606 = vadd.f32 %v3517, %v3596
    %v3607 = vadd.f32 %v3518, %v3601
    %v3608 = vtanh.pop %v3604
    %v3609 = vtanh.pop %v3605
    %v3610 = vtanh.pop %v3606
    %v3611 = vtanh.pop %v3607
    %s3612 = scalar_lea.vmem [#allocation2], 864
    %v3613 = vld [vmem:[%s3612] sm:$0xff]
    %v3614 = vld [vmem:[%s3612 + $0x8] sm:$0xff]
    %v3615 = vld [vmem:[%s3612 + $0x10] sm:$0xff]
    %v3616 = vld [vmem:[%s3612 + $0x18] sm:$0xff]
    %3617 = vmatprep.subr.mxu0 0.0
    %3618 = vmatpush1.msra.mxu0 %v955
    %3619 = vmatprep.subr.mxu0 0.0
    %3620 = vmatpush1.msra.mxu0 %v956
    %3621 = vmatprep.subr.mxu0 0.0
    %3622 = vmatpush1.msra.mxu0 %v957
    %3623 = vmatprep.subr.mxu0 0.0
    %3624 = vmatpush1.msra.mxu0 %v958
    %3625 = vmatprep.subr.mxu0 0.0
    %3626 = vmatpush1.msra.mxu0 %v959
    %3627 = vmatprep.subr.mxu0 0.0
    %3628 = vmatpush1.msra.mxu0 %v960
    %3629 = vmatprep.subr.mxu0 0.0
    %3630 = vmatpush1.msra.mxu0 %v961
    %3631 = vmatprep.subr.mxu0 0.0
    %3632 = vmatpush1.msra.mxu0 %v962
    %3633 = vmatprep.subr.mxu0 0.0
    %3634 = vmatpush1.msra.mxu0 %v963
    %3635 = vmatprep.subr.mxu0 0.0
    %3636 = vmatpush1.msra.mxu0 %v964
    %3637 = vmatprep.subr.mxu0 0.0
    %3638 = vmatpush1.msra.mxu0 %v965
    %3639 = vmatprep.subr.mxu0 0.0
    %3640 = vmatpush1.msra.mxu0 %v966
    %3641 = vmatprep.subr.mxu0 0.0
    %3642 = vmatpush1.msra.mxu0 %v967
    %3643 = vmatprep.subr.mxu0 0.0
    %3644 = vmatpush1.msra.mxu0 %v968
    %3645 = vmatprep.subr.mxu0 0.0
    %3646 = vmatpush1.msra.mxu0 %v969
    %3647 = vmatprep.subr.mxu0 0.0
    %3648 = vmatpush1.msra.mxu0 %v970
    %3649 = vmatprep.subr.mxu0 0.0
    %3650 = vmatpush1.msra.mxu0 0.0
    %3651 = vmatprep.subr.mxu0 0.0
    %3652 = vmatpush1.msra.mxu0 0.0
    %3653 = vmatprep.subr.mxu0 0.0
    %3654 = vmatpush1.msra.mxu0 0.0
    %3655 = vmatprep.subr.mxu0 0.0
    %3656 = vmatpush1.msra.mxu0 0.0
    %3657 = vmatprep.subr.mxu0 0.0
    %3658 = vmatpush1.msra.mxu0 0.0
    %3659 = vmatprep.subr.mxu0 0.0
    %3660 = vmatpush1.msra.mxu0 0.0
    %3661 = vmatprep.subr.mxu0 0.0
    %3662 = vmatpush1.msra.mxu0 0.0
    %3663 = vmatprep.subr.mxu0 0.0
    %3664 = vmatpush1.msra.mxu0 0.0
    %3665 = vmatprep.subr.mxu0 0.0
    %3666 = vmatpush1.msra.mxu0 0.0
    %3667 = vmatprep.subr.mxu0 0.0
    %3668 = vmatpush1.msra.mxu0 0.0
    %3669 = vmatprep.subr.mxu0 0.0
    %3670 = vmatpush1.msra.mxu0 0.0
    %3671 = vmatprep.subr.mxu0 0.0
    %3672 = vmatpush1.msra.mxu0 0.0
    %3673 = vmatprep.subr.mxu0 0.0
    %3674 = vmatpush1.msra.mxu0 0.0
    %3675 = vmatprep.subr.mxu0 0.0
    %3676 = vmatpush1.msra.mxu0 0.0
    %3677 = vmatprep.subr.mxu0 0.0
    %3678 = vmatpush1.msra.mxu0 0.0
    %3679 = vmatprep.subr.mxu0 0.0
    %3680 = vmatpush1.msra.mxu0 0.0
    %3681 = vmatprep.mubr.f32.mxu0 0.0
    %3682 = vmatmul.mubr.f32.gmra.mrb[0].mxu0 %v3608
    %v3683 = vpop.f32.mrb[0].mxu0
    %v3684 = vadd.f32 0.0, %v3683
    %v3685 = vpop.f32.mrb[0].mxu0
    %3686 = vmatprep.mubr.f32.mxu0 0.0
    %3687 = vmatmul.mubr.f32.gmra.mrb[0].mxu0 %v3609
    %v3688 = vpop.f32.mrb[0].mxu0
    %v3689 = vadd.f32 0.0, %v3688
    %v3690 = vpop.f32.mrb[0].mxu0
    %3691 = vmatprep.mubr.f32.mxu0 0.0
    %3692 = vmatmul.mubr.f32.gmra.mrb[0].mxu0 %v3610
    %v3693 = vpop.f32.mrb[0].mxu0
    %v3694 = vadd.f32 0.0, %v3693
    %v3695 = vpop.f32.mrb[0].mxu0
    %3696 = vmatprep.mubr.f32.mxu0 0.0
    %3697 = vmatmul.mubr.f32.gmra.mrb[0].mxu0 %v3611
    %v3698 = vpop.f32.mrb[0].mxu0
    %v3699 = vadd.f32 0.0, %v3698
    %v3700 = vpop.f32.mrb[0].mxu0
    %3701 = vdwg.mxu0
    %v3702 = vadd.f32 %v3613, %v3684
    %v3703 = vadd.f32 %v3614, %v3689
    %v3704 = vadd.f32 %v3615, %v3694
    %v3705 = vadd.f32 %v3616, %v3699
    %v3706 = vtanh.pop %v3702
    %v3707 = vtanh.pop %v3703
    %v3708 = vtanh.pop %v3704
    %v3709 = vtanh.pop %v3705
    %v3710 = vld [vmem:[#allocation9] sm:$0xff]
    %v3711 = vld [vmem:[#allocation9 + $0x8] sm:$0xff]
    %v3712 = vld [vmem:[#allocation9 + $0x10] sm:$0xff]
    %v3713 = vld [vmem:[#allocation9 + $0x18] sm:$0xff]
    %v3714 = vld [vmem:[#allocation9 + $0x20] sm:$0xff]
    %v3715 = vld [vmem:[#allocation9 + $0x28] sm:$0xff]
    %v3716 = vld [vmem:[#allocation9 + $0x30] sm:$0xff]
    %v3717 = vld [vmem:[#allocation9 + $0x38] sm:$0xff]
    %v3718 = vld [vmem:[#allocation9 + $0x40] sm:$0xff]
    %v3719 = vld [vmem:[#allocation9 + $0x48] sm:$0xff]
    %v3720 = vld [vmem:[#allocation9 + $0x50] sm:$0xff]
    %v3721 = vld [vmem:[#allocation9 + $0x58] sm:$0xff]
    %v3722 = vld [vmem:[#allocation9 + $0x60] sm:$0xff]
    %v3723 = vld [vmem:[#allocation9 + $0x68] sm:$0xff]
    %v3724 = vld [vmem:[#allocation9 + $0x70] sm:$0xff]
    %v3725 = vld [vmem:[#allocation9 + $0x78] sm:$0xff]
    %v3726 = vld [vmem:[%s5] sm:$0x1]
    %v3728 = vlaneseq
    %v3729 = vshrl.u32 %v3728, 7
    %v3730 = vsub.s32 0, %v3729
    %v3731 = vrot.slane %v3726, %v3730
    %3733 = vmatprep.subr.mxu0 0.0
    %3734 = vmatpush1.msra.mxu0 %v3710
    %3735 = vmatprep.subr.mxu0 0.0
    %3736 = vmatpush1.msra.mxu0 %v3711
    %3737 = vmatprep.subr.mxu0 0.0
    %3738 = vmatpush1.msra.mxu0 %v3712
    %3739 = vmatprep.subr.mxu0 0.0
    %3740 = vmatpush1.msra.mxu0 %v3713
    %3741 = vmatprep.subr.mxu0 0.0
    %3742 = vmatpush1.msra.mxu0 %v3714
    %3743 = vmatprep.subr.mxu0 0.0
    %3744 = vmatpush1.msra.mxu0 %v3715
    %3745 = vmatprep.subr.mxu0 0.0
    %3746 = vmatpush1.msra.mxu0 %v3716
    %3747 = vmatprep.subr.mxu0 0.0
    %3748 = vmatpush1.msra.mxu0 %v3717
    %3749 = vmatprep.subr.mxu0 0.0
    %3750 = vmatpush1.msra.mxu0 %v3718
    %3751 = vmatprep.subr.mxu0 0.0
    %3752 = vmatpush1.msra.mxu0 %v3719
    %3753 = vmatprep.subr.mxu0 0.0
    %3754 = vmatpush1.msra.mxu0 %v3720
    %3755 = vmatprep.subr.mxu0 0.0
    %3756 = vmatpush1.msra.mxu0 %v3721
    %3757 = vmatprep.subr.mxu0 0.0
    %3758 = vmatpush1.msra.mxu0 %v3722
    %3759 = vmatprep.subr.mxu0 0.0
    %3760 = vmatpush1.msra.mxu0 %v3723
    %3761 = vmatprep.subr.mxu0 0.0
    %3762 = vmatpush1.msra.mxu0 %v3724
    %3763 = vmatprep.subr.mxu0 0.0
    %3764 = vmatpush1.msra.mxu0 %v3725
    %3765 = vmatprep.subr.mxu0 0.0
    %3766 = vmatpush1.msra.mxu0 0.0
    %3767 = vmatprep.subr.mxu0 0.0
    %3768 = vmatpush1.msra.mxu0 0.0
    %3769 = vmatprep.subr.mxu0 0.0
    %3770 = vmatpush1.msra.mxu0 0.0
    %3771 = vmatprep.subr.mxu0 0.0
    %3772 = vmatpush1.msra.mxu0 0.0
    %3773 = vmatprep.subr.mxu0 0.0
    %3774 = vmatpush1.msra.mxu0 0.0
    %3775 = vmatprep.subr.mxu0 0.0
    %3776 = vmatpush1.msra.mxu0 0.0
    %3777 = vmatprep.subr.mxu0 0.0
    %3778 = vmatpush1.msra.mxu0 0.0
    %3779 = vmatprep.subr.mxu0 0.0
    %3780 = vmatpush1.msra.mxu0 0.0
    %3781 = vmatprep.subr.mxu0 0.0
    %3782 = vmatpush1.msra.mxu0 0.0
    %3783 = vmatprep.subr.mxu0 0.0
    %3784 = vmatpush1.msra.mxu0 0.0
    %3785 = vmatprep.subr.mxu0 0.0
    %3786 = vmatpush1.msra.mxu0 0.0
    %3787 = vmatprep.subr.mxu0 0.0
    %3788 = vmatpush1.msra.mxu0 0.0
    %3789 = vmatprep.subr.mxu0 0.0
    %3790 = vmatpush1.msra.mxu0 0.0
    %3791 = vmatprep.subr.mxu0 0.0
    %3792 = vmatpush1.msra.mxu0 0.0
    %3793 = vmatprep.subr.mxu0 0.0
    %3794 = vmatpush1.msra.mxu0 0.0
    %3795 = vmatprep.subr.mxu0 0.0
    %3796 = vmatpush1.msra.mxu0 0.0
    %3797 = vmatprep.mubr.f32.mxu0 0.0
    %3798 = vmatmul.mubr.f32.gmra.mrb[0].mxu0 %v3706
    %v3799 = vpop.f32.mrb[0].mxu0
    %v3800 = vadd.f32 %v3731, %v3799
    %v3801 = vpop.f32.mrb[0].mxu0
    %3802 = vmatprep.mubr.f32.mxu0 0.0
    %3803 = vmatmul.mubr.f32.gmra.mrb[0].mxu0 %v3707
    %v3804 = vpop.f32.mrb[0].mxu0
    %v3805 = vadd.f32 %v3731, %v3804
    %v3806 = vpop.f32.mrb[0].mxu0
    %3807 = vmatprep.mubr.f32.mxu0 0.0
    %3808 = vmatmul.mubr.f32.gmra.mrb[0].mxu0 %v3708
    %v3809 = vpop.f32.mrb[0].mxu0
    %v3810 = vadd.f32 %v3731, %v3809
    %v3811 = vpop.f32.mrb[0].mxu0
    %3812 = vmatprep.mubr.f32.mxu0 0.0
    %3813 = vmatmul.mubr.f32.gmra.mrb[0].mxu0 %v3709
    %v3814 = vpop.f32.mrb[0].mxu0
    %v3815 = vadd.f32 %v3731, %v3814
    %v3816 = vpop.f32.mrb[0].mxu0
    %3817 = vdwg.mxu0
    %3818 = vst [vmem:[#allocation11] sm:$0xff] %v3800
    %3819 = vst [vmem:[#allocation11 + $0x8] sm:$0xff] %v3805
    %3820 = vst [vmem:[#allocation11 + $0x10] sm:$0xff] %v3810
    %3821 = vst [vmem:[#allocation11 + $0x18] sm:$0xff] %v3815
    // Predicated region
    $region42: #{tpu_custom_call.1} parent=1 // pred_check
      _
    $region43: #{tpu_custom_call.1} parent=1 // pred_check_branch
      %3823 = sbr.rel (0) target = $region45
    $region44: #{tpu_custom_call.1} parent=1 // pred_region
      %s3825 = ssub.s32 512, 512
      %3826 = vsyncadd [#allocation5], %s3825
      %s3827 = sshll.u32 [#allocation11], 4
      %s3828 = int_to_ptr.vmem [resolvable:$true] %s3827
      %3833 = dma.vmem_to_hbm [thread:$0]  %s3828, 512, %s6, [#allocation5], 128, 128, 8
    $region45: #{tpu_custom_call.1} parent=1 // pred_fallthru
      _
    // Predicated region
    $region46: #{tpu_custom_call.1} parent=1 // pred_check
      _
    $region47: #{tpu_custom_call.1} parent=1 // pred_check_branch
      %3835 = sbr.rel (0) target = $region49
    $region48: #{tpu_custom_call.1} parent=1 // pred_region
      %3836 = dma.done [#allocation5], 512
    $region49: #{tpu_custom_call.1} parent=1 // pred_fallthru
      _
    %3837 = vsyncpa [#allocation4], 1
    %3838 = vsyncpa [#allocation7], 1
    %3839 = vsyncpa [#allocation10], 1
    %3840 = vsyncpa [#allocation5], 1

</llo_original>
